<compile_context>
chip_gen: v7x
topology: tpu7x:2x2x1
jax: 0.10.0
libtpu: 0.0.40
codegen_flags: <defaults>
</compile_context>

<pallas_src>
import functools
import math

import jax
import jax.numpy as jnp
from jax import lax
from jax.experimental import pallas as pl
from jax.experimental.pallas import tpu as pltpu

LANE = 128


def _round_up(n, m=LANE):
    return ((n + m - 1) // m) * m


def _bytes(shape, dtype):
    return math.prod(shape) * jnp.dtype(dtype).itemsize


def _pick_nb(n, m_img, target_m=256, max_m=1024):
    """Images per grid step: grow GEMM M toward target_m, keep grid >= 2,
    bound VMEM (im2col patch scales with nb*m)."""
    best = 1
    for d in range(1, max(1, n // 2) + 1):
        if n % d == 0 and d * m_img <= max_m:
            best = d
            if d * m_img >= target_m:
                break
    return best


def _vmem_limit(in_bytes, out_bytes, scratch_bytes, temp_bytes):
    tot = 2 * (in_bytes + out_bytes) + scratch_bytes + temp_bytes   # 2x: double-buffered blocks
    tot = int(tot * 1.5) + (8 << 20)                                # headroom for in-kernel temps
    return max(32 << 20, min(tot, 64 << 20))


# ---------------------------------------------------------------------------
# In-kernel helpers
# ---------------------------------------------------------------------------
def _zero_halo(ref, ho, wo):
    """Zero the 1-pixel spatial border of a (NB, ho+2, wo+2, C) VMEM scratch."""
    nb, hp2, wp2, c = ref.shape
    zr = jnp.zeros((nb, 1, wp2, c), ref.dtype)
    zc = jnp.zeros((nb, hp2, 1, c), ref.dtype)
    ref[:, 0:1, :, :] = zr
    ref[:, ho + 1:ho + 2, :, :] = zr
    ref[:, :, 0:1, :] = zc
    ref[:, :, wo + 1:wo + 2, :] = zc


def _taps_3x3(a, ho, wo):
    """a: (NB, ho+2, wo+2, C) -> (NB*ho*wo, 9*C) im2col patches (K-packed)."""
    nb, _, _, c = a.shape
    m = nb * ho * wo
    return jnp.concatenate(
        [a[:, kh:kh + ho, kw:kw + wo, :].reshape(m, c)
         for kh in range(3) for kw in range(3)], axis=-1)


# ---------------------------------------------------------------------------
# Kernel A: stride-1 BasicBlock (halo built in VMEM, no wrapper pad / mask)
# ---------------------------------------------------------------------------
def _bb_s1_kernel(x_ref, s1_ref, b1_ref, w1_ref, s2_ref, b2_ref, w2_ref, *rest,
                  equal_in_out, H, W):
    if equal_in_out:
        o_ref, hpad_ref, zpad_ref = rest
        wsc_ref = None
    else:
        wsc_ref, o_ref, hpad_ref, zpad_ref = rest
    nb, _, _, cp = x_ref.shape
    cop = o_ref.shape[-1]
    m = nb * H * W

    # prologue: h = relu(bn1(x)) on the VPU (f32), bf16 into zero-halo scratch
    x = x_ref[...]
    h = jnp.maximum(x * s1_ref[...] + b1_ref[...], 0.0)
    _zero_halo(hpad_ref, H, W)
    hpad_ref[:, 1:H + 1, 1:W + 1, :] = h.astype(hpad_ref.dtype)

    # conv1: one K-packed bf16 GEMM (K = 9*Cp), f32 accumulation on the MXU
    acc = jnp.dot(_taps_3x3(hpad_ref[...], H, W), w1_ref[...],
                  preferred_element_type=jnp.float32)

    # bn2 + relu epilogue (f32), bf16 into the conv2 zero-halo scratch
    # TODO(synk): dropRate > 0 (training-mode dropout) not implemented; dropRate=0 is identity.
    z = jnp.maximum(acc * s2_ref[...] + b2_ref[...], 0.0)
    _zero_halo(zpad_ref, H, W)
    zpad_ref[:, 1:H + 1, 1:W + 1, :] = z.reshape(nb, H, W, cop).astype(zpad_ref.dtype)

    # conv2: second K-packed bf16 GEMM
    acc2 = jnp.dot(_taps_3x3(zpad_ref[...], H, W), w2_ref[...],
                   preferred_element_type=jnp.float32)

    # residual: identity read from the already-resident x block, or 1x1 GEMM on h
    if equal_in_out:
        res = x.reshape(m, cp)
    else:
        res = jnp.dot(h.astype(jnp.bfloat16).reshape(m, cp), wsc_ref[...],
                      preferred_element_type=jnp.float32)

    o_ref[...] = (acc2 + res).reshape(nb, H, W, cop).astype(o_ref.dtype)


# ---------------------------------------------------------------------------
# Kernel B: strided (stride >= 2) BasicBlock; wrapper phase-splits the padded
# input so every in-kernel conv tap is a unit-stride static slice.
# ---------------------------------------------------------------------------
def _bb_strided_kernel(ph_ref, mask_ref, s1_ref, b1_ref, w1_ref, s2_ref, b2_ref,
                       w2_ref, wsc_ref, o_ref, zpad_ref, *, stride, Ho, Wo, Hph):
    nb, _, _, cp = ph_ref.shape
    cop = o_ref.shape[-1]
    m = nb * Ho * Wo

    # fused prologue: h = relu(bn1(x)); conv halo forced to exactly 0 via mask
    x = ph_ref[...]
    h = (jnp.maximum(x * s1_ref[...] + b1_ref[...], 0.0)
         * mask_ref[...]).astype(jnp.bfloat16)

    def tap(kh, kw):
        p = (kh % stride) * stride + (kw % stride)
        r0 = p * Hph + kh // stride
        c0 = kw // stride
        return h[:, r0:r0 + Ho, c0:c0 + Wo, :].reshape(m, cp)

    # conv1 (3x3 / stride) as one K-packed bf16 GEMM
    patches = jnp.concatenate([tap(kh, kw) for kh in range(3) for kw in range(3)],
                              axis=-1)
    acc = jnp.dot(patches, w1_ref[...], preferred_element_type=jnp.float32)

    # bn2 + relu epilogue
    z = jnp.maximum(acc * s2_ref[...] + b2_ref[...], 0.0)
    _zero_halo(zpad_ref, Ho, Wo)
    zpad_ref[:, 1:Ho + 1, 1:Wo + 1, :] = z.reshape(nb, Ho, Wo, cop).astype(zpad_ref.dtype)

    # conv2 (3x3 / stride 1) as one K-packed bf16 GEMM
    acc2 = jnp.dot(_taps_3x3(zpad_ref[...], Ho, Wo), w2_ref[...],
                   preferred_element_type=jnp.float32)

    # 1x1 / stride shortcut on h (center tap of the padded input)
    res = jnp.dot(tap(1, 1), wsc_ref[...], preferred_element_type=jnp.float32)

    o_ref[...] = (acc2 + res).reshape(nb, Ho, Wo, cop).astype(o_ref.dtype)


# ---------------------------------------------------------------------------
# Wrappers
# ---------------------------------------------------------------------------
def _phase_split(x, s):
    """(N, Hp, Wp, C) -> (N, s*s*Hph, Wph, C); row p*Hph+i, col j of phase
    p = rh*s + rw holds x[:, s*i + rh, s*j + rw, :] (zero-padded at far edge)."""
    n, hp, wp, c = x.shape
    hph, wph = -(-hp // s), -(-wp // s)
    x = jnp.pad(x, ((0, 0), (0, hph * s - hp), (0, wph * s - wp), (0, 0)))
    x = x.reshape(n, hph, s, wph, s, c)
    x = jnp.transpose(x, (0, 2, 4, 1, 3, 5))          # (N, rh, rw, Hph, Wph, C)
    return x.reshape(n, s * s * hph, wph, c)


def _bb_stride1(x, p):
    n, h, w, cp = x.shape
    cop = p["cp_out"]
    eio = p["equal_in_out"]
    nb = _pick_nb(n, h * w)

    in_specs = [
        pl.BlockSpec((nb, h, w, cp), lambda i: (i, 0, 0, 0)),
        pl.BlockSpec((1, cp), lambda i: (0, 0)),
        pl.BlockSpec((1, cp), lambda i: (0, 0)),
        pl.BlockSpec((9 * cp, cop), lambda i: (0, 0)),
        pl.BlockSpec((1, cop), lambda i: (0, 0)),
        pl.BlockSpec((1, cop), lambda i: (0, 0)),
        pl.BlockSpec((9 * cop, cop), lambda i: (0, 0)),
    ]
    args = [x, p["bn1_scale_p"], p["bn1_bias_p"], p["w1p"],
            p["bn2_scale_p"], p["bn2_bias_p"], p["w2p"]]
    if not eio:
        in_specs.append(pl.BlockSpec((cp, cop), lambda i: (0, 0)))
        args.append(p["wscp"])

    in_bytes = (_bytes((nb, h, w, cp), x.dtype)
                + _bytes((9 * cp, cop), jnp.bfloat16)
                + _bytes((9 * cop, cop), jnp.bfloat16)
                + (0 if eio else _bytes((cp, cop), jnp.bfloat16))
                + 4 * _bytes((1, max(cp, cop)), jnp.float32))
    out_bytes = _bytes((nb, h, w, cop), x.dtype)
    scratch_bytes = _bytes((nb, h + 2, w + 2, cp + cop), jnp.bfloat16)
    temp_bytes = (2 * _bytes((nb * h * w, 9 * max(cp, cop)), jnp.bfloat16)
                  + _bytes((nb, h, w, cp), jnp.float32))

    kernel = functools.partial(_bb_s1_kernel, equal_in_out=eio, H=h, W=w)
    return pl.pallas_call(
        kernel,
        out_shape=jax.ShapeDtypeStruct((n, h, w, cop), x.dtype),
        grid=(n // nb,),
        in_specs=in_specs,
        out_specs=pl.BlockSpec((nb, h, w, cop), lambda i: (i, 0, 0, 0)),
        scratch_shapes=[pltpu.VMEM((nb, h + 2, w + 2, cp), jnp.bfloat16),
                        pltpu.VMEM((nb, h + 2, w + 2, cop), jnp.bfloat16)],
        compiler_params=pltpu.CompilerParams(
            dimension_semantics=("parallel",),
            vmem_limit_bytes=_vmem_limit(in_bytes, out_bytes, scratch_bytes,
                                         temp_bytes)),
    )(*args)


def _bb_strided(x, p):
    n, h, w, cp = x.shape
    s = p["stride"]
    cop = p["cp_out"]
    ho = (h + 2 - 3) // s + 1
    wo = (w + 2 - 3) // s + 1
    hph, wph = -(-(h + 2) // s), -(-(w + 2) // s)
    sph = s * s
    nb = _pick_nb(n, ho * wo)

    xp = jnp.pad(x, ((0, 0), (1, 1), (1, 1), (0, 0)))
    phases = _phase_split(xp, s)                                  # (N, s*s*Hph, Wph, Cp)
    valid = jnp.pad(jnp.ones((1, h, w, 1), x.dtype),
                    ((0, 0), (1, 1), (1, 1), (0, 0)))
    mask = _phase_split(valid, s)                                 # (1, s*s*Hph, Wph, 1)

    in_specs = [
        pl.BlockSpec((nb, sph * hph, wph, cp), lambda i: (i, 0, 0, 0)),
        pl.BlockSpec((1, sph * hph, wph, 1), lambda i: (0, 0, 0, 0)),
        pl.BlockSpec((1, cp), lambda i: (0, 0)),
        pl.BlockSpec((1, cp), lambda i: (0, 0)),
        pl.BlockSpec((9 * cp, cop), lambda i: (0, 0)),
        pl.BlockSpec((1, cop), lambda i: (0, 0)),
        pl.BlockSpec((1, cop), lambda i: (0, 0)),
        pl.BlockSpec((9 * cop, cop), lambda i: (0, 0)),
        pl.BlockSpec((cp, cop), lambda i: (0, 0)),
    ]
    in_bytes = (_bytes((nb, sph * hph, wph, cp), x.dtype)
                + _bytes((1, sph * hph, wph, 1), x.dtype)
                + _bytes((9 * cp, cop), jnp.bfloat16)
                + _bytes((9 * cop, cop), jnp.bfloat16)
                + _bytes((cp, cop), jnp.bfloat16)
                + 4 * _bytes((1, max(cp, cop)), jnp.float32))
    out_bytes = _bytes((nb, ho, wo, cop), x.dtype)
    scratch_bytes = _bytes((nb, ho + 2, wo + 2, cop), jnp.bfloat16)
    temp_bytes = (2 * _bytes((nb * ho * wo, 9 * max(cp, cop)), jnp.bfloat16)
                  + _bytes((nb, sph * hph, wph, cp), jnp.float32))

    kernel = functools.partial(_bb_strided_kernel, stride=s, Ho=ho, Wo=wo, Hph=hph)
    return pl.pallas_call(
        kernel,
        out_shape=jax.ShapeDtypeStruct((n, ho, wo, cop), x.dtype),
        grid=(n // nb,),
        in_specs=in_specs,
        out_specs=pl.BlockSpec((nb, ho, wo, cop), lambda i: (i, 0, 0, 0)),
        scratch_shapes=[pltpu.VMEM((nb, ho + 2, wo + 2, cop), jnp.bfloat16)],
        compiler_params=pltpu.CompilerParams(
            dimension_semantics=("parallel",),
            vmem_limit_bytes=_vmem_limit(in_bytes, out_bytes, scratch_bytes,
                                         temp_bytes)),
    )(phases, mask, p["bn1_scale_p"], p["bn1_bias_p"], p["w1p"],
      p["bn2_scale_p"], p["bn2_bias_p"], p["w2p"], p["wscp"])


def basic_block_forward(x, p):
    """x: (N, H, W, Cp) channel-padded NHWC -> (N, Ho, Wo, Cop)."""
    if p["stride"] == 1:
        return _bb_stride1(x, p)
    return _bb_strided(x, p)


def network_block_forward(x_nchw, layers):
    x = jnp.transpose(x_nchw, (0, 2, 3, 1))                       # NCHW -> NHWC
    x = jnp.pad(x, ((0, 0), (0, 0), (0, 0), (0, layers[0]["cp_in"] - x.shape[-1])))
    for p in layers:
        x = basic_block_forward(x, p)
    x = x[..., :layers[-1]["out_planes"]]                         # drop channel padding
    return jnp.transpose(x, (0, 3, 1, 2))                         # NHWC -> NCHW


# ---------------------------------------------------------------------------
# Parameters: deterministic init (PyTorch layout) + padded GEMM-layout prep
# ---------------------------------------------------------------------------
def _init_bn(key, c, eps=1e-5):
    k1, k2, k3, k4 = jax.random.split(key, 4)
    gamma = jax.random.uniform(k1, (c,), jnp.float32, 0.5, 1.5)
    beta = jax.random.normal(k2, (c,), jnp.float32) * 0.1
    running_mean = jax.random.normal(k3, (c,), jnp.float32) * 0.1
    running_var = jax.random.uniform(k4, (c,), jnp.float32, 0.5, 1.5)
    scale = gamma / jnp.sqrt(running_var + eps)
    bias = beta - running_mean * scale
    return scale, bias


def _init_conv(key, cout, cin, k):
    fan = k * k * cout  # WideResNet He-style init
    return jax.random.normal(key, (cout, cin, k, k), jnp.float32) * (2.0 / fan) ** 0.5


def _prep_layer(p, cp_in, cp_out):
    cout, cin = p["w1"].shape[0], p["w1"].shape[1]

    def pad_vec(v, c, cpad, fill):
        if cpad > c:
            v = jnp.concatenate([v, jnp.full((cpad - c,), fill, v.dtype)])
        return v.reshape(1, cpad)

    def conv3_to_gemm(w, cpi, cpo):
        co, ci, _, _ = w.shape
        g = jnp.transpose(w, (2, 3, 1, 0))                         # (3,3,Cin,Cout)
        g = jnp.pad(g, ((0, 0), (0, 0), (0, cpi - ci), (0, cpo - co)))
        return g.reshape(9 * cpi, cpo).astype(jnp.bfloat16)        # taps packed along K

    q = dict(p)
    q["cp_in"], q["cp_out"] = cp_in, cp_out
    q["bn1_scale_p"] = pad_vec(p["bn1_scale"], cin, cp_in, 1.0)
    q["bn1_bias_p"] = pad_vec(p["bn1_bias"], cin, cp_in, 0.0)
    q["bn2_scale_p"] = pad_vec(p["bn2_scale"], cout, cp_out, 1.0)
    q["bn2_bias_p"] = pad_vec(p["bn2_bias"], cout, cp_out, 0.0)
    q["w1p"] = conv3_to_gemm(p["w1"], cp_in, cp_out)
    q["w2p"] = conv3_to_gemm(p["w2"], cp_out, cp_out)
    if not p["equal_in_out"]:
        wsc = jnp.transpose(p["w_sc"][:, :, 0, 0], (1, 0))          # (Cin, Cout)
        q["wscp"] = jnp.pad(wsc, ((0, cp_in - cin), (0, cp_out - cout))).astype(jnp.bfloat16)
    return q


def init_network_block(key, nb_layers, in_planes, out_planes, stride):
    layers = []
    for i in range(int(nb_layers)):
        cin = in_planes if i == 0 else out_planes
        s = stride if i == 0 else 1
        key, kb1, kb2, kw1, kw2, kws = jax.random.split(key, 6)
        bn1_scale, bn1_bias = _init_bn(kb1, cin)
        bn2_scale, bn2_bias = _init_bn(kb2, out_planes)
        p = {
            "stride": s,
            "equal_in_out": cin == out_planes,
            "out_planes": out_planes,
            "bn1_scale": bn1_scale, "bn1_bias": bn1_bias,
            "bn2_scale": bn2_scale, "bn2_bias": bn2_bias,
            "w1": _init_conv(kw1, out_planes, cin, 3),
            "w2": _init_conv(kw2, out_planes, out_planes, 3),
        }
        if not p["equal_in_out"]:
            p["w_sc"] = _init_conv(kws, out_planes, cin, 1)
        # identity shortcut with stride>1 is an invalid config in the PyTorch module too
        assert not (p["equal_in_out"] and s != 1), "equal_in_out requires stride == 1"
        layers.append(_prep_layer(p, _round_up(cin), _round_up(out_planes)))
    return layers, key


# ---------------------------------------------------------------------------
# Pure-JAX (XLA) references for correctness checks
# ---------------------------------------------------------------------------
def reference_forward(x_nchw, layers, weight_dtype=jnp.float32, act_dtype=jnp.float32):
    """f32 reference (module semantics).  With bf16 dtypes it mirrors the
    kernel's quantization points exactly (f32 accumulation kept)."""
    dn = ("NHWC", "OIHW", "NHWC")
    x = jnp.transpose(x_nchw, (0, 2, 3, 1))
    for p in layers:
        s = p["stride"]
        h = jnp.maximum(x * p["bn1_scale"] + p["bn1_bias"], 0.0)
        hq = h.astype(act_dtype)
        if p["equal_in_out"]:
            res = x
        else:
            res = lax.conv_general_dilated(hq, p["w_sc"].astype(weight_dtype), (s, s),
                                           "VALID", dimension_numbers=dn,
                                           preferred_element_type=jnp.float32)
        y = lax.conv_general_dilated(hq, p["w1"].astype(weight_dtype), (s, s),
                                     [(1, 1), (1, 1)], dimension_numbers=dn,
                                     preferred_element_type=jnp.float32)
        z = jnp.maximum(y * p["bn2_scale"] + p["bn2_bias"], 0.0)
        x = lax.conv_general_dilated(z.astype(act_dtype), p["w2"].astype(weight_dtype),
                                     (1, 1), [(1, 1), (1, 1)], dimension_numbers=dn,
                                     preferred_element_type=jnp.float32) + res
    return jnp.transpose(x, (0, 3, 1, 2))


# ---------------------------------------------------------------------------
if __name__ == "__main__":
    key = jax.random.PRNGKey(0)

    # NetworkBlock(nb_layers=2, in_planes=4, out_planes=8, block=BasicBlock, stride=2)
    N, C_IN, H, W = 2, 4, 16, 16
    NB_LAYERS, OUT_PLANES, STRIDE = 2, 8, 2

    key, kx = jax.random.split(key)
    x = jax.random.normal(kx, (N, C_IN, H, W), jnp.float32)   # PyTorch NCHW input

    layers, key = init_network_block(key, NB_LAYERS, C_IN, OUT_PLANES, STRIDE)
    y = jax.block_until_ready(network_block_forward(x, layers))
    assert y.shape == (N, OUT_PLANES, H // STRIDE, W // STRIDE), y.shape
    assert bool(jnp.all(jnp.isfinite(y)))

    # tight structural check vs a reference quantized at the same points (bf16
    # weights / GEMM operands, f32 accumulation) -> catches any tap/stride bug
    y_q = jax.block_until_ready(reference_forward(x, layers, jnp.bfloat16, jnp.bfloat16))
    err_q = float(jnp.max(jnp.abs(y - y_q)))
    assert err_q < 5e-2, f"mismatch vs bf16-matched reference: {err_q}"

    # loose numerical sanity vs the pure-f32 reference of the original module
    y_f = jax.block_until_ready(reference_forward(x, layers))
    err_f = float(jnp.max(jnp.abs(y - y_f)))
    assert err_f < 3e-1, f"mismatch vs f32 reference: {err_f}"

    # second config: stride-1 first block with a channel change (exercises the
    # stride-1 kernel's 1x1-shortcut path)
    layers2, key = init_network_block(key, 1, C_IN, OUT_PLANES, 1)
    y2 = jax.block_until_ready(network_block_forward(x, layers2))
    assert y2.shape == (N, OUT_PLANES, H, W), y2.shape
    y2_q = jax.block_until_ready(reference_forward(x, layers2, jnp.bfloat16, jnp.bfloat16))
    err2 = float(jnp.max(jnp.abs(y2 - y2_q)))
    assert err2 < 5e-2, f"mismatch vs bf16-matched reference (stride-1 cfg): {err2}"

    print("KERNEL_OK")
</pallas_src>

<mosaic_0001>
module attributes {stable_mosaic.version = 11 : i64} {
  func.func @_bb_strided_kernel(%arg0: i32, %arg1: memref<1x36x9x128xf32, #tpu.memory_space<vmem>>, %arg2: memref<1x36x9x1xf32, #tpu.memory_space<vmem>>, %arg3: memref<1x128xf32, #tpu.memory_space<vmem>>, %arg4: memref<1x128xf32, #tpu.memory_space<vmem>>, %arg5: memref<1152x128xbf16, #tpu.memory_space<vmem>>, %arg6: memref<1x128xf32, #tpu.memory_space<vmem>>, %arg7: memref<1x128xf32, #tpu.memory_space<vmem>>, %arg8: memref<1152x128xbf16, #tpu.memory_space<vmem>>, %arg9: memref<128x128xbf16, #tpu.memory_space<vmem>>, %arg10: memref<1x8x8x128xf32, #tpu.memory_space<vmem>>, %arg11: memref<1x10x10x128xbf16, #tpu.memory_space<vmem>>) attributes {dimension_semantics = [#tpu.dimension_semantics<parallel>], iteration_bounds = array<i64: 2>, scalar_prefetch = 0 : i64, scratch_operands = 1 : i64, tpu.core_type = #tpu.core_type<tc>, window_params = [{transform_indices = @transform_0, window_bounds = array<i64: 1, 36, 9, 128>}, {pipeline_mode = #tpu.pipeline_mode<synchronous>, transform_indices = @transform_1, window_bounds = array<i64: 1, 36, 9, 1>}, {pipeline_mode = #tpu.pipeline_mode<synchronous>, transform_indices = @transform_2, window_bounds = array<i64: 1, 128>}, {pipeline_mode = #tpu.pipeline_mode<synchronous>, transform_indices = @transform_3, window_bounds = array<i64: 1, 128>}, {pipeline_mode = #tpu.pipeline_mode<synchronous>, transform_indices = @transform_4, window_bounds = array<i64: 1152, 128>}, {pipeline_mode = #tpu.pipeline_mode<synchronous>, transform_indices = @transform_5, window_bounds = array<i64: 1, 128>}, {pipeline_mode = #tpu.pipeline_mode<synchronous>, transform_indices = @transform_6, window_bounds = array<i64: 1, 128>}, {pipeline_mode = #tpu.pipeline_mode<synchronous>, transform_indices = @transform_7, window_bounds = array<i64: 1152, 128>}, {pipeline_mode = #tpu.pipeline_mode<synchronous>, transform_indices = @transform_8, window_bounds = array<i64: 128, 128>}, {transform_indices = @transform_9, window_bounds = array<i64: 1, 8, 8, 128>}]} {
    %c0 = arith.constant 0 : index
    %c0_0 = arith.constant 0 : index
    %c0_1 = arith.constant 0 : index
    %c0_2 = arith.constant 0 : index
    %0 = vector.load %arg1[%c0, %c0_0, %c0_1, %c0_2] : memref<1x36x9x128xf32, #tpu.memory_space<vmem>>, vector<1x36x9x128xf32>
    %c0_3 = arith.constant 0 : index
    %c0_4 = arith.constant 0 : index
    %1 = vector.load %arg3[%c0_3, %c0_4] : memref<1x128xf32, #tpu.memory_space<vmem>>, vector<1x128xf32>
    %2 = vector.shape_cast %1 : vector<1x128xf32> to vector<1x1x1x128xf32>
    %3 = vector.broadcast %2 : vector<1x1x1x128xf32> to vector<1x36x9x128xf32>
    %4 = arith.mulf %0, %3 : vector<1x36x9x128xf32>
    %c0_5 = arith.constant 0 : index
    %c0_6 = arith.constant 0 : index
    %5 = vector.load %arg4[%c0_5, %c0_6] : memref<1x128xf32, #tpu.memory_space<vmem>>, vector<1x128xf32>
    %6 = vector.shape_cast %5 : vector<1x128xf32> to vector<1x1x1x128xf32>
    %7 = vector.broadcast %6 : vector<1x1x1x128xf32> to vector<1x36x9x128xf32>
    %8 = arith.addf %4, %7 : vector<1x36x9x128xf32>
    %cst = arith.constant 0.000000e+00 : f32
    %9 = vector.broadcast %cst : f32 to vector<1x36x9x128xf32>
    %10 = arith.maximumf %8, %9 : vector<1x36x9x128xf32>
    %c0_7 = arith.constant 0 : index
    %c0_8 = arith.constant 0 : index
    %c0_9 = arith.constant 0 : index
    %c0_10 = arith.constant 0 : index
    %11 = vector.load %arg2[%c0_7, %c0_8, %c0_9, %c0_10] : memref<1x36x9x1xf32, #tpu.memory_space<vmem>>, vector<1x36x9x1xf32>
    %12 = vector.broadcast %11 : vector<1x36x9x1xf32> to vector<1x36x9x128xf32>
    %13 = arith.mulf %10, %12 : vector<1x36x9x128xf32>
    %14 = arith.truncf %13 : vector<1x36x9x128xf32> to vector<1x36x9x128xbf16>
    %15 = vector.extract_strided_slice %14 {offsets = [0, 0, 0, 0], sizes = [1, 8, 8, 128], strides = [1, 1, 1, 1]} : vector<1x36x9x128xbf16> to vector<1x8x8x128xbf16>
    %16 = vector.shape_cast %15 : vector<1x8x8x128xbf16> to vector<64x128xbf16>
    %17 = vector.extract_strided_slice %14 {offsets = [0, 9, 0, 0], sizes = [1, 8, 8, 128], strides = [1, 1, 1, 1]} : vector<1x36x9x128xbf16> to vector<1x8x8x128xbf16>
    %18 = vector.shape_cast %17 : vector<1x8x8x128xbf16> to vector<64x128xbf16>
    %19 = vector.extract_strided_slice %14 {offsets = [0, 0, 1, 0], sizes = [1, 8, 8, 128], strides = [1, 1, 1, 1]} : vector<1x36x9x128xbf16> to vector<1x8x8x128xbf16>
    %20 = vector.shape_cast %19 : vector<1x8x8x128xbf16> to vector<64x128xbf16>
    %21 = vector.extract_strided_slice %14 {offsets = [0, 18, 0, 0], sizes = [1, 8, 8, 128], strides = [1, 1, 1, 1]} : vector<1x36x9x128xbf16> to vector<1x8x8x128xbf16>
    %22 = vector.shape_cast %21 : vector<1x8x8x128xbf16> to vector<64x128xbf16>
    %23 = vector.extract_strided_slice %14 {offsets = [0, 27, 0, 0], sizes = [1, 8, 8, 128], strides = [1, 1, 1, 1]} : vector<1x36x9x128xbf16> to vector<1x8x8x128xbf16>
    %24 = vector.shape_cast %23 : vector<1x8x8x128xbf16> to vector<64x128xbf16>
    %25 = vector.extract_strided_slice %14 {offsets = [0, 18, 1, 0], sizes = [1, 8, 8, 128], strides = [1, 1, 1, 1]} : vector<1x36x9x128xbf16> to vector<1x8x8x128xbf16>
    %26 = vector.shape_cast %25 : vector<1x8x8x128xbf16> to vector<64x128xbf16>
    %27 = vector.extract_strided_slice %14 {offsets = [0, 1, 0, 0], sizes = [1, 8, 8, 128], strides = [1, 1, 1, 1]} : vector<1x36x9x128xbf16> to vector<1x8x8x128xbf16>
    %28 = vector.shape_cast %27 : vector<1x8x8x128xbf16> to vector<64x128xbf16>
    %29 = vector.extract_strided_slice %14 {offsets = [0, 10, 0, 0], sizes = [1, 8, 8, 128], strides = [1, 1, 1, 1]} : vector<1x36x9x128xbf16> to vector<1x8x8x128xbf16>
    %30 = vector.shape_cast %29 : vector<1x8x8x128xbf16> to vector<64x128xbf16>
    %31 = vector.extract_strided_slice %14 {offsets = [0, 1, 1, 0], sizes = [1, 8, 8, 128], strides = [1, 1, 1, 1]} : vector<1x36x9x128xbf16> to vector<1x8x8x128xbf16>
    %32 = vector.shape_cast %31 : vector<1x8x8x128xbf16> to vector<64x128xbf16>
    %33 = tpu.concatenate %16, %18, %20, %22, %24, %26, %28, %30, %32 in 1 : vector<64x128xbf16>, vector<64x128xbf16>, vector<64x128xbf16>, vector<64x128xbf16>, vector<64x128xbf16>, vector<64x128xbf16>, vector<64x128xbf16>, vector<64x128xbf16>, vector<64x128xbf16> -> vector<64x1152xbf16>
    %c0_11 = arith.constant 0 : index
    %c0_12 = arith.constant 0 : index
    %34 = vector.load %arg5[%c0_11, %c0_12] : memref<1152x128xbf16, #tpu.memory_space<vmem>>, vector<1152x128xbf16>
    %cst_13 = arith.constant dense<0.000000e+00> : vector<64x128xf32>
    %35 = tpu.matmul %33, %34, %cst_13 {dimension_numbers = #tpu.dot_dimension_numbers<[1], [0], [0], [1], [0, 0, 1, 1], [], []>} : vector<64x1152xbf16>, vector<1152x128xbf16>, vector<64x128xf32> -> vector<64x128xf32>
    %c0_14 = arith.constant 0 : index
    %c0_15 = arith.constant 0 : index
    %36 = vector.load %arg6[%c0_14, %c0_15] : memref<1x128xf32, #tpu.memory_space<vmem>>, vector<1x128xf32>
    %37 = vector.broadcast %36 : vector<1x128xf32> to vector<64x128xf32>
    %38 = arith.mulf %35, %37 : vector<64x128xf32>
    %c0_16 = arith.constant 0 : index
    %c0_17 = arith.constant 0 : index
    %39 = vector.load %arg7[%c0_16, %c0_17] : memref<1x128xf32, #tpu.memory_space<vmem>>, vector<1x128xf32>
    %40 = vector.broadcast %39 : vector<1x128xf32> to vector<64x128xf32>
    %41 = arith.addf %38, %40 : vector<64x128xf32>
    %cst_18 = arith.constant 0.000000e+00 : f32
    %42 = vector.broadcast %cst_18 : f32 to vector<64x128xf32>
    %43 = arith.maximumf %41, %42 : vector<64x128xf32>
    %cst_19 = arith.constant 0.000000e+00 : bf16
    %44 = vector.broadcast %cst_19 : bf16 to vector<1x1x10x128xbf16>
    %cst_20 = arith.constant 0.000000e+00 : bf16
    %45 = vector.broadcast %cst_20 : bf16 to vector<1x10x1x128xbf16>
    %c0_21 = arith.constant 0 : index
    %c0_22 = arith.constant 0 : index
    %c0_23 = arith.constant 0 : index
    %c0_24 = arith.constant 0 : index
    %46 = vector.load %arg11[%c0_21, %c0_22, %c0_23, %c0_24] : memref<1x10x10x128xbf16, #tpu.memory_space<vmem>>, vector<1x1x10x128xbf16>
    tpu.vector_store %arg11[%c0_21, %c0_22, %c0_23, %c0_24], %44 {strides = array<i32>} : memref<1x10x10x128xbf16, #tpu.memory_space<vmem>>, vector<1x1x10x128xbf16>,
    %c0_25 = arith.constant 0 : index
    %c9 = arith.constant 9 : index
    %c0_26 = arith.constant 0 : index
    %c0_27 = arith.constant 0 : index
    %47 = vector.load %arg11[%c0_25, %c9, %c0_26, %c0_27] : memref<1x10x10x128xbf16, #tpu.memory_space<vmem>>, vector<1x1x10x128xbf16>
    tpu.vector_store %arg11[%c0_25, %c9, %c0_26, %c0_27], %44 {strides = array<i32>} : memref<1x10x10x128xbf16, #tpu.memory_space<vmem>>, vector<1x1x10x128xbf16>,
    %c0_28 = arith.constant 0 : index
    %c0_29 = arith.constant 0 : index
    %c0_30 = arith.constant 0 : index
    %c0_31 = arith.constant 0 : index
    %48 = vector.load %arg11[%c0_28, %c0_29, %c0_30, %c0_31] : memref<1x10x10x128xbf16, #tpu.memory_space<vmem>>, vector<1x10x1x128xbf16>
    tpu.vector_store %arg11[%c0_28, %c0_29, %c0_30, %c0_31], %45 {strides = array<i32>} : memref<1x10x10x128xbf16, #tpu.memory_space<vmem>>, vector<1x10x1x128xbf16>,
    %c0_32 = arith.constant 0 : index
    %c0_33 = arith.constant 0 : index
    %c9_34 = arith.constant 9 : index
    %c0_35 = arith.constant 0 : index
    %49 = vector.load %arg11[%c0_32, %c0_33, %c9_34, %c0_35] : memref<1x10x10x128xbf16, #tpu.memory_space<vmem>>, vector<1x10x1x128xbf16>
    tpu.vector_store %arg11[%c0_32, %c0_33, %c9_34, %c0_35], %45 {strides = array<i32>} : memref<1x10x10x128xbf16, #tpu.memory_space<vmem>>, vector<1x10x1x128xbf16>,
    %50 = vector.shape_cast %43 : vector<64x128xf32> to vector<1x8x8x128xf32>
    %51 = arith.truncf %50 : vector<1x8x8x128xf32> to vector<1x8x8x128xbf16>
    %c0_36 = arith.constant 0 : index
    %c1 = arith.constant 1 : index
    %c1_37 = arith.constant 1 : index
    %c0_38 = arith.constant 0 : index
    %52 = vector.load %arg11[%c0_36, %c1, %c1_37, %c0_38] : memref<1x10x10x128xbf16, #tpu.memory_space<vmem>>, vector<1x8x8x128xbf16>
    tpu.vector_store %arg11[%c0_36, %c1, %c1_37, %c0_38], %51 {strides = array<i32>} : memref<1x10x10x128xbf16, #tpu.memory_space<vmem>>, vector<1x8x8x128xbf16>,
    %c0_39 = arith.constant 0 : index
    %c0_40 = arith.constant 0 : index
    %c0_41 = arith.constant 0 : index
    %c0_42 = arith.constant 0 : index
    %53 = vector.load %arg11[%c0_39, %c0_40, %c0_41, %c0_42] : memref<1x10x10x128xbf16, #tpu.memory_space<vmem>>, vector<1x10x10x128xbf16>
    %54 = vector.extract_strided_slice %53 {offsets = [0, 0, 0, 0], sizes = [1, 8, 8, 128], strides = [1, 1, 1, 1]} : vector<1x10x10x128xbf16> to vector<1x8x8x128xbf16>
    %55 = vector.shape_cast %54 : vector<1x8x8x128xbf16> to vector<64x128xbf16>
    %56 = vector.extract_strided_slice %53 {offsets = [0, 0, 1, 0], sizes = [1, 8, 8, 128], strides = [1, 1, 1, 1]} : vector<1x10x10x128xbf16> to vector<1x8x8x128xbf16>
    %57 = vector.shape_cast %56 : vector<1x8x8x128xbf16> to vector<64x128xbf16>
    %58 = vector.extract_strided_slice %53 {offsets = [0, 0, 2, 0], sizes = [1, 8, 8, 128], strides = [1, 1, 1, 1]} : vector<1x10x10x128xbf16> to vector<1x8x8x128xbf16>
    %59 = vector.shape_cast %58 : vector<1x8x8x128xbf16> to vector<64x128xbf16>
    %60 = vector.extract_strided_slice %53 {offsets = [0, 1, 0, 0], sizes = [1, 8, 8, 128], strides = [1, 1, 1, 1]} : vector<1x10x10x128xbf16> to vector<1x8x8x128xbf16>
    %61 = vector.shape_cast %60 : vector<1x8x8x128xbf16> to vector<64x128xbf16>
    %62 = vector.extract_strided_slice %53 {offsets = [0, 1, 1, 0], sizes = [1, 8, 8, 128], strides = [1, 1, 1, 1]} : vector<1x10x10x128xbf16> to vector<1x8x8x128xbf16>
    %63 = vector.shape_cast %62 : vector<1x8x8x128xbf16> to vector<64x128xbf16>
    %64 = vector.extract_strided_slice %53 {offsets = [0, 1, 2, 0], sizes = [1, 8, 8, 128], strides = [1, 1, 1, 1]} : vector<1x10x10x128xbf16> to vector<1x8x8x128xbf16>
    %65 = vector.shape_cast %64 : vector<1x8x8x128xbf16> to vector<64x128xbf16>
    %66 = vector.extract_strided_slice %53 {offsets = [0, 2, 0, 0], sizes = [1, 8, 8, 128], strides = [1, 1, 1, 1]} : vector<1x10x10x128xbf16> to vector<1x8x8x128xbf16>
    %67 = vector.shape_cast %66 : vector<1x8x8x128xbf16> to vector<64x128xbf16>
    %68 = vector.extract_strided_slice %53 {offsets = [0, 2, 1, 0], sizes = [1, 8, 8, 128], strides = [1, 1, 1, 1]} : vector<1x10x10x128xbf16> to vector<1x8x8x128xbf16>
    %69 = vector.shape_cast %68 : vector<1x8x8x128xbf16> to vector<64x128xbf16>
    %70 = vector.extract_strided_slice %53 {offsets = [0, 2, 2, 0], sizes = [1, 8, 8, 128], strides = [1, 1, 1, 1]} : vector<1x10x10x128xbf16> to vector<1x8x8x128xbf16>
    %71 = vector.shape_cast %70 : vector<1x8x8x128xbf16> to vector<64x128xbf16>
    %72 = tpu.concatenate %55, %57, %59, %61, %63, %65, %67, %69, %71 in 1 : vector<64x128xbf16>, vector<64x128xbf16>, vector<64x128xbf16>, vector<64x128xbf16>, vector<64x128xbf16>, vector<64x128xbf16>, vector<64x128xbf16>, vector<64x128xbf16>, vector<64x128xbf16> -> vector<64x1152xbf16>
    %c0_43 = arith.constant 0 : index
    %c0_44 = arith.constant 0 : index
    %73 = vector.load %arg8[%c0_43, %c0_44] : memref<1152x128xbf16, #tpu.memory_space<vmem>>, vector<1152x128xbf16>
    %cst_45 = arith.constant dense<0.000000e+00> : vector<64x128xf32>
    %74 = tpu.matmul %72, %73, %cst_45 {dimension_numbers = #tpu.dot_dimension_numbers<[1], [0], [0], [1], [0, 0, 1, 1], [], []>} : vector<64x1152xbf16>, vector<1152x128xbf16>, vector<64x128xf32> -> vector<64x128xf32>
    %75 = vector.extract_strided_slice %14 {offsets = [0, 27, 0, 0], sizes = [1, 8, 8, 128], strides = [1, 1, 1, 1]} : vector<1x36x9x128xbf16> to vector<1x8x8x128xbf16>
    %76 = vector.shape_cast %75 : vector<1x8x8x128xbf16> to vector<64x128xbf16>
    %c0_46 = arith.constant 0 : index
    %c0_47 = arith.constant 0 : index
    %77 = vector.load %arg9[%c0_46, %c0_47] : memref<128x128xbf16, #tpu.memory_space<vmem>>, vector<128x128xbf16>
    %cst_48 = arith.constant dense<0.000000e+00> : vector<64x128xf32>
    %78 = tpu.matmul %76, %77, %cst_48 {dimension_numbers = #tpu.dot_dimension_numbers<[1], [0], [0], [1], [0, 0, 1, 1], [], []>} : vector<64x128xbf16>, vector<128x128xbf16>, vector<64x128xf32> -> vector<64x128xf32>
    %79 = arith.addf %74, %78 : vector<64x128xf32>
    %80 = vector.shape_cast %79 : vector<64x128xf32> to vector<1x8x8x128xf32>
    %c0_49 = arith.constant 0 : index
    %c0_50 = arith.constant 0 : index
    %c0_51 = arith.constant 0 : index
    %c0_52 = arith.constant 0 : index
    %81 = vector.load %arg10[%c0_49, %c0_50, %c0_51, %c0_52] : memref<1x8x8x128xf32, #tpu.memory_space<vmem>>, vector<1x8x8x128xf32>
    tpu.vector_store %arg10[%c0_49, %c0_50, %c0_51, %c0_52], %80 {strides = array<i32>} : memref<1x8x8x128xf32, #tpu.memory_space<vmem>>, vector<1x8x8x128xf32>,
    return
  }
  func.func @transform_0(%arg0: i32) -> (i32, i32, i32, i32) {
    %c0_i32 = arith.constant 0 : i32
    %c0_i32_0 = arith.constant 0 : i32
    %c0_i32_1 = arith.constant 0 : i32
    %c0_i32_2 = arith.constant 0 : i32
    return %arg0, %c0_i32, %c0_i32_0, %c0_i32_1 : i32, i32, i32, i32
  }
  func.func @transform_1(%arg0: i32) -> (i32, i32, i32, i32) {
    %c0_i32 = arith.constant 0 : i32
    %c0_i32_0 = arith.constant 0 : i32
    %c0_i32_1 = arith.constant 0 : i32
    %c0_i32_2 = arith.constant 0 : i32
    %c0_i32_3 = arith.constant 0 : i32
    return %c0_i32, %c0_i32_0, %c0_i32_1, %c0_i32_2 : i32, i32, i32, i32
  }
  func.func @transform_2(%arg0: i32) -> (i32, i32) {
    %c0_i32 = arith.constant 0 : i32
    %c0_i32_0 = arith.constant 0 : i32
    %c0_i32_1 = arith.constant 0 : i32
    return %c0_i32, %c0_i32_0 : i32, i32
  }
  func.func @transform_3(%arg0: i32) -> (i32, i32) {
    %c0_i32 = arith.constant 0 : i32
    %c0_i32_0 = arith.constant 0 : i32
    %c0_i32_1 = arith.constant 0 : i32
    return %c0_i32, %c0_i32_0 : i32, i32
  }
  func.func @transform_4(%arg0: i32) -> (i32, i32) {
    %c0_i32 = arith.constant 0 : i32
    %c0_i32_0 = arith.constant 0 : i32
    %c0_i32_1 = arith.constant 0 : i32
    return %c0_i32, %c0_i32_0 : i32, i32
  }
  func.func @transform_5(%arg0: i32) -> (i32, i32) {
    %c0_i32 = arith.constant 0 : i32
    %c0_i32_0 = arith.constant 0 : i32
    %c0_i32_1 = arith.constant 0 : i32
    return %c0_i32, %c0_i32_0 : i32, i32
  }
  func.func @transform_6(%arg0: i32) -> (i32, i32) {
    %c0_i32 = arith.constant 0 : i32
    %c0_i32_0 = arith.constant 0 : i32
    %c0_i32_1 = arith.constant 0 : i32
    return %c0_i32, %c0_i32_0 : i32, i32
  }
  func.func @transform_7(%arg0: i32) -> (i32, i32) {
    %c0_i32 = arith.constant 0 : i32
    %c0_i32_0 = arith.constant 0 : i32
    %c0_i32_1 = arith.constant 0 : i32
    return %c0_i32, %c0_i32_0 : i32, i32
  }
  func.func @transform_8(%arg0: i32) -> (i32, i32) {
    %c0_i32 = arith.constant 0 : i32
    %c0_i32_0 = arith.constant 0 : i32
    %c0_i32_1 = arith.constant 0 : i32
    return %c0_i32, %c0_i32_0 : i32, i32
  }
  func.func @transform_9(%arg0: i32) -> (i32, i32, i32, i32) {
    %c0_i32 = arith.constant 0 : i32
    %c0_i32_0 = arith.constant 0 : i32
    %c0_i32_1 = arith.constant 0 : i32
    %c0_i32_2 = arith.constant 0 : i32
    return %arg0, %c0_i32, %c0_i32_0, %c0_i32_1 : i32, i32, i32, i32
  }
}

</mosaic_0001>

<llo_original>
// kernel: tpu_custom_call.1
$region0: #{tpu_custom_call.1}
  #allocation0 [shape = 'u32[]', space=smem, size = 0x4, offset = 0x4, fixed_abs, tag = 'smem constant byte address 0x4 - core index']
  #allocation1 [shape = 'u32[144,128]{1,0:T(1,128)}', space=vmem, size = 0x12000, scoped, tag = 'internal scratch']
  #allocation2 [shape = 'bf16[1,10,10,128]{3,2,1,0:T(8,128)(2,1)}', space=vmem, size = 0xa000, scoped, tag = 'scratch operand']
  %s0 = inlined_call_operand.vmem [shape: f32[2,36,9,128], index: 0, kind: input, shape index: {}]
  %s1 = inlined_call_operand.vmem [shape: f32[1,36,9,1], index: 1, kind: input, shape index: {}]
  %s2 = inlined_call_operand.vmem [shape: f32[1,128], index: 2, kind: input, shape index: {}]
  %s3 = inlined_call_operand.vmem [shape: f32[1,128], index: 3, kind: input, shape index: {}]
  %s4 = inlined_call_operand.vmem [shape: bf16[1152,128], index: 4, kind: input, shape index: {}]
  %s5 = inlined_call_operand.vmem [shape: f32[1,128], index: 5, kind: input, shape index: {}]
  %s6 = inlined_call_operand.vmem [shape: f32[1,128], index: 6, kind: input, shape index: {}]
  %s7 = inlined_call_operand.vmem [shape: bf16[1152,128], index: 7, kind: input, shape index: {}]
  %s8 = inlined_call_operand.vmem [shape: bf16[128,128], index: 8, kind: input, shape index: {}]
  %s9 = inlined_call_operand.hbm [shape: f32[2,8,8,128], index: 9, kind: output, shape index: {}]
  %s10 = sld [smem:[#allocation0]]
  $region69: #{tpu_custom_call.1} parent=0
    _
  %s12 = ssub.s32 1, %s10
  %s13 = scalar_select 0, %s12, %s10
  $region1: #{tpu_custom_call.1} parent=0
    #allocation3 [shape = 'u8[65536]{0}', space=vmem, size = 0x10000, scoped, tag = 'output window, operand 0']
    #allocation4 [shape = 's32[2]{0}', space=sflag, size = 0x8, scoped, tag = 'scoped memory for tpu_custom_call.1']
    %14 = vsyncpa [#allocation4], 0
    %s15 = scalar_lea.sflag [#allocation4], 1
    %16 = vsyncpa %s15, 0
    loop: start=0, step=1, limit=4
    $region2: #{tpu_custom_call.1} parent=1 // loop_pre_header
      _
    $region3: #{tpu_custom_call.1} parent=1 // loop_header
      %s18 = sphi 0, %s22
      %p19 = scmp.ge.s32.totalorder %s18, 4
      %s28 = sphi 0, %s30
      %s31 = sphi 0, %s28
      %s32 = sphi 0, %s31
      %s48 = sphi 0, %s32
      %s52 = sphi 0, %s52
      %s54 = sphi 0, %s52
      %s55 = sphi 0, %s54
      %s69 = sphi 0, %s55
      %s73 = sphi 0, %s73
      %s75 = sphi 0, %s73
      %s76 = sphi 0, %s75
      %s90 = sphi 0, %s76
      %s94 = sphi 0, %s94
      %s96 = sphi 0, %s94
      %s97 = sphi 0, %s96
      %s111 = sphi 0, %s97
      %s115 = sphi 0, %s115
      %s117 = sphi 0, %s115
      %s118 = sphi 0, %s117
      %s132 = sphi 0, %s118
      %s136 = sphi 0, %s136
      %s138 = sphi 0, %s136
      %s139 = sphi 0, %s138
      %s153 = sphi 0, %s139
      %s157 = sphi 0, %s157
      %s159 = sphi 0, %s157
      %s160 = sphi 0, %s159
      %s174 = sphi 0, %s160
      %s178 = sphi 0, %s178
      %s180 = sphi 0, %s178
      %s181 = sphi 0, %s180
      %s195 = sphi 0, %s181
      %s199 = sphi 0, %s199
      %s201 = sphi 0, %s199
      %s202 = sphi 0, %s201
      %s216 = sphi 0, %s202
      %s222 = sphi 0, %s224
      %s225 = sphi 0, %s222
      %s226 = sphi 0, %s225
      %s242 = sphi 0, %s226
    $region4: #{tpu_custom_call.1} parent=1 // loop_header_branch
      %21 = sbr.rel (%p19) target = $region8
    $region5: #{tpu_custom_call.1} parent=1 // loop_body
      %s23 = ssub.s32 %s18, 1
      %s24 = ssub.s32 %s18, 2
      %s25 = sadd.s32 %s18, 1
      %s26 = ssub.s32 %s18, %s25
      %p27 = scmp.eq.s32.totalorder %s26, 0
      %s29 = sadd.s32 %s28, 1
      %s30 = scalar_select %p27, %s28, %s29
      %p33 = pneg %p27
      %p34 = scmp.eq.s32.totalorder %s18, 1
      %p35 = por %p33, %p34
      %p36 = scmp.ne.s32.totalorder %s28, %s31
      %p37 = scmp.eq.s32.totalorder %s18, 0
      %p38 = por %p36, %p37
      %p39 = scmp.ne.s32.totalorder %s28, %s31
      %p40 = scmp.eq.s32.totalorder %s23, 1
      %p41 = por %p39, %p40
      %p42 = scmp.ne.s32.totalorder %s31, %s32
      %p43 = scmp.eq.s32.totalorder %s23, 0
      %p44 = por %p42, %p43
      %p45 = scmp.ne.s32.totalorder %s31, %s32
      %p46 = scmp.eq.s32.totalorder %s24, 1
      %p47 = por %p45, %p46
      %p49 = scmp.ne.s32.totalorder %s32, %s48
      %p50 = scmp.eq.s32.totalorder %s24, 0
      %p51 = por %p49, %p50
      %s53 = sadd.s32 %s52, 1
      %p56 = scmp.eq.s32.totalorder %s18, 1
      %p57 = scmp.ne.s32.totalorder %s52, %s54
      %p58 = scmp.eq.s32.totalorder %s18, 0
      %p59 = por %p57, %p58
      %p60 = scmp.ne.s32.totalorder %s52, %s54
      %p61 = scmp.eq.s32.totalorder %s23, 1
      %p62 = por %p60, %p61
      %p63 = scmp.ne.s32.totalorder %s54, %s55
      %p64 = scmp.eq.s32.totalorder %s23, 0
      %p65 = por %p63, %p64
      %p66 = scmp.ne.s32.totalorder %s54, %s55
      %p67 = scmp.eq.s32.totalorder %s24, 1
      %p68 = por %p66, %p67
      %p70 = scmp.ne.s32.totalorder %s55, %s69
      %p71 = scmp.eq.s32.totalorder %s24, 0
      %p72 = por %p70, %p71
      %s74 = sadd.s32 %s73, 1
      %p77 = scmp.eq.s32.totalorder %s18, 1
      %p78 = scmp.ne.s32.totalorder %s73, %s75
      %p79 = scmp.eq.s32.totalorder %s18, 0
      %p80 = por %p78, %p79
      %p81 = scmp.ne.s32.totalorder %s73, %s75
      %p82 = scmp.eq.s32.totalorder %s23, 1
      %p83 = por %p81, %p82
      %p84 = scmp.ne.s32.totalorder %s75, %s76
      %p85 = scmp.eq.s32.totalorder %s23, 0
      %p86 = por %p84, %p85
      %p87 = scmp.ne.s32.totalorder %s75, %s76
      %p88 = scmp.eq.s32.totalorder %s24, 1
      %p89 = por %p87, %p88
      %p91 = scmp.ne.s32.totalorder %s76, %s90
      %p92 = scmp.eq.s32.totalorder %s24, 0
      %p93 = por %p91, %p92
      %s95 = sadd.s32 %s94, 1
      %p98 = scmp.eq.s32.totalorder %s18, 1
      %p99 = scmp.ne.s32.totalorder %s94, %s96
      %p100 = scmp.eq.s32.totalorder %s18, 0
      %p101 = por %p99, %p100
      %p102 = scmp.ne.s32.totalorder %s94, %s96
      %p103 = scmp.eq.s32.totalorder %s23, 1
      %p104 = por %p102, %p103
      %p105 = scmp.ne.s32.totalorder %s96, %s97
      %p106 = scmp.eq.s32.totalorder %s23, 0
      %p107 = por %p105, %p106
      %p108 = scmp.ne.s32.totalorder %s96, %s97
      %p109 = scmp.eq.s32.totalorder %s24, 1
      %p110 = por %p108, %p109
      %p112 = scmp.ne.s32.totalorder %s97, %s111
      %p113 = scmp.eq.s32.totalorder %s24, 0
      %p114 = por %p112, %p113
      %s116 = sadd.s32 %s115, 1
      %p119 = scmp.eq.s32.totalorder %s18, 1
      %p120 = scmp.ne.s32.totalorder %s115, %s117
      %p121 = scmp.eq.s32.totalorder %s18, 0
      %p122 = por %p120, %p121
      %p123 = scmp.ne.s32.totalorder %s115, %s117
      %p124 = scmp.eq.s32.totalorder %s23, 1
      %p125 = por %p123, %p124
      %p126 = scmp.ne.s32.totalorder %s117, %s118
      %p127 = scmp.eq.s32.totalorder %s23, 0
      %p128 = por %p126, %p127
      %p129 = scmp.ne.s32.totalorder %s117, %s118
      %p130 = scmp.eq.s32.totalorder %s24, 1
      %p131 = por %p129, %p130
      %p133 = scmp.ne.s32.totalorder %s118, %s132
      %p134 = scmp.eq.s32.totalorder %s24, 0
      %p135 = por %p133, %p134
      %s137 = sadd.s32 %s136, 1
      %p140 = scmp.eq.s32.totalorder %s18, 1
      %p141 = scmp.ne.s32.totalorder %s136, %s138
      %p142 = scmp.eq.s32.totalorder %s18, 0
      %p143 = por %p141, %p142
      %p144 = scmp.ne.s32.totalorder %s136, %s138
      %p145 = scmp.eq.s32.totalorder %s23, 1
      %p146 = por %p144, %p145
      %p147 = scmp.ne.s32.totalorder %s138, %s139
      %p148 = scmp.eq.s32.totalorder %s23, 0
      %p149 = por %p147, %p148
      %p150 = scmp.ne.s32.totalorder %s138, %s139
      %p151 = scmp.eq.s32.totalorder %s24, 1
      %p152 = por %p150, %p151
      %p154 = scmp.ne.s32.totalorder %s139, %s153
      %p155 = scmp.eq.s32.totalorder %s24, 0
      %p156 = por %p154, %p155
      %s158 = sadd.s32 %s157, 1
      %p161 = scmp.eq.s32.totalorder %s18, 1
      %p162 = scmp.ne.s32.totalorder %s157, %s159
      %p163 = scmp.eq.s32.totalorder %s18, 0
      %p164 = por %p162, %p163
      %p165 = scmp.ne.s32.totalorder %s157, %s159
      %p166 = scmp.eq.s32.totalorder %s23, 1
      %p167 = por %p165, %p166
      %p168 = scmp.ne.s32.totalorder %s159, %s160
      %p169 = scmp.eq.s32.totalorder %s23, 0
      %p170 = por %p168, %p169
      %p171 = scmp.ne.s32.totalorder %s159, %s160
      %p172 = scmp.eq.s32.totalorder %s24, 1
      %p173 = por %p171, %p172
      %p175 = scmp.ne.s32.totalorder %s160, %s174
      %p176 = scmp.eq.s32.totalorder %s24, 0
      %p177 = por %p175, %p176
      %s179 = sadd.s32 %s178, 1
      %p182 = scmp.eq.s32.totalorder %s18, 1
      %p183 = scmp.ne.s32.totalorder %s178, %s180
      %p184 = scmp.eq.s32.totalorder %s18, 0
      %p185 = por %p183, %p184
      %p186 = scmp.ne.s32.totalorder %s178, %s180
      %p187 = scmp.eq.s32.totalorder %s23, 1
      %p188 = por %p186, %p187
      %p189 = scmp.ne.s32.totalorder %s180, %s181
      %p190 = scmp.eq.s32.totalorder %s23, 0
      %p191 = por %p189, %p190
      %p192 = scmp.ne.s32.totalorder %s180, %s181
      %p193 = scmp.eq.s32.totalorder %s24, 1
      %p194 = por %p192, %p193
      %p196 = scmp.ne.s32.totalorder %s181, %s195
      %p197 = scmp.eq.s32.totalorder %s24, 0
      %p198 = por %p196, %p197
      %s200 = sadd.s32 %s199, 1
      %p203 = scmp.eq.s32.totalorder %s18, 1
      %p204 = scmp.ne.s32.totalorder %s199, %s201
      %p205 = scmp.eq.s32.totalorder %s18, 0
      %p206 = por %p204, %p205
      %p207 = scmp.ne.s32.totalorder %s199, %s201
      %p208 = scmp.eq.s32.totalorder %s23, 1
      %p209 = por %p207, %p208
      %p210 = scmp.ne.s32.totalorder %s201, %s202
      %p211 = scmp.eq.s32.totalorder %s23, 0
      %p212 = por %p210, %p211
      %p213 = scmp.ne.s32.totalorder %s201, %s202
      %p214 = scmp.eq.s32.totalorder %s24, 1
      %p215 = por %p213, %p214
      %p217 = scmp.ne.s32.totalorder %s202, %s216
      %p218 = scmp.eq.s32.totalorder %s24, 0
      %p219 = por %p217, %p218
      %s220 = ssub.s32 %s18, %s25
      %p221 = scmp.eq.s32.totalorder %s220, 0
      %s223 = sadd.s32 %s222, 1
      %s224 = scalar_select %p221, %s222, %s223
      %p227 = pneg %p221
      %p228 = scmp.eq.s32.totalorder %s18, 1
      %p229 = por %p227, %p228
      %p230 = scmp.ne.s32.totalorder %s222, %s225
      %p231 = scmp.eq.s32.totalorder %s18, 0
      %p232 = por %p230, %p231
      %p233 = scmp.ne.s32.totalorder %s222, %s225
      %p234 = scmp.eq.s32.totalorder %s23, 1
      %p235 = por %p233, %p234
      %p236 = scmp.ne.s32.totalorder %s225, %s226
      %p237 = scmp.eq.s32.totalorder %s23, 0
      %p238 = por %p236, %p237
      %p239 = scmp.ne.s32.totalorder %s225, %s226
      %p240 = scmp.eq.s32.totalorder %s24, 1
      %p241 = por %p239, %p240
      %p243 = scmp.ne.s32.totalorder %s226, %s242
      %p244 = scmp.eq.s32.totalorder %s24, 0
      %p245 = por %p243, %p244
      %p246 = scmp.le.s32.totalorder 1, %s18
      %p247 = scmp.lt.s32.totalorder %s18, 3
      %p248 = pnand %p246, %p247
      %p249 = pneg %p248
      // Predicated region
      $region9: #{tpu_custom_call.1} parent=5 // pred_check
        _
      $region10: #{tpu_custom_call.1} parent=5 // pred_check_branch
        %251 = sbr.rel (%p248) target = $region12
      $region11: #{tpu_custom_call.1} parent=5 // pred_region
        %s252 = ssub.s32 %s18, 1
        // Predicated region
        $region13: #{tpu_custom_call.1} parent=11 // pred_check
          %p253 = pneg %p65
        $region14: #{tpu_custom_call.1} parent=11 // pred_check_branch
          %255 = sbr.rel (%p253) target = $region16
        $region15: #{tpu_custom_call.1} parent=11 // pred_region
          _
        $region16: #{tpu_custom_call.1} parent=11 // pred_fallthru
          _
        // Predicated region
        $region17: #{tpu_custom_call.1} parent=11 // pred_check
          %p256 = pneg %p86
        $region18: #{tpu_custom_call.1} parent=11 // pred_check_branch
          %258 = sbr.rel (%p256) target = $region20
        $region19: #{tpu_custom_call.1} parent=11 // pred_region
          _
        $region20: #{tpu_custom_call.1} parent=11 // pred_fallthru
          _
        // Predicated region
        $region21: #{tpu_custom_call.1} parent=11 // pred_check
          %p259 = pneg %p107
        $region22: #{tpu_custom_call.1} parent=11 // pred_check_branch
          %261 = sbr.rel (%p259) target = $region24
        $region23: #{tpu_custom_call.1} parent=11 // pred_region
          _
        $region24: #{tpu_custom_call.1} parent=11 // pred_fallthru
          _
        // Predicated region
        $region25: #{tpu_custom_call.1} parent=11 // pred_check
          %p262 = pneg %p128
        $region26: #{tpu_custom_call.1} parent=11 // pred_check_branch
          %264 = sbr.rel (%p262) target = $region28
        $region27: #{tpu_custom_call.1} parent=11 // pred_region
          _
        $region28: #{tpu_custom_call.1} parent=11 // pred_fallthru
          _
        // Predicated region
        $region29: #{tpu_custom_call.1} parent=11 // pred_check
          %p265 = pneg %p149
        $region30: #{tpu_custom_call.1} parent=11 // pred_check_branch
          %267 = sbr.rel (%p265) target = $region32
        $region31: #{tpu_custom_call.1} parent=11 // pred_region
          _
        $region32: #{tpu_custom_call.1} parent=11 // pred_fallthru
          _
        // Predicated region
        $region33: #{tpu_custom_call.1} parent=11 // pred_check
          %p268 = pneg %p170
        $region34: #{tpu_custom_call.1} parent=11 // pred_check_branch
          %270 = sbr.rel (%p268) target = $region36
        $region35: #{tpu_custom_call.1} parent=11 // pred_region
          _
        $region36: #{tpu_custom_call.1} parent=11 // pred_fallthru
          _
        // Predicated region
        $region37: #{tpu_custom_call.1} parent=11 // pred_check
          %p271 = pneg %p191
        $region38: #{tpu_custom_call.1} parent=11 // pred_check_branch
          %273 = sbr.rel (%p271) target = $region40
        $region39: #{tpu_custom_call.1} parent=11 // pred_region
          _
        $region40: #{tpu_custom_call.1} parent=11 // pred_fallthru
          _
        // Predicated region
        $region41: #{tpu_custom_call.1} parent=11 // pred_check
          %p274 = pneg %p212
        $region42: #{tpu_custom_call.1} parent=11 // pred_check_branch
          %276 = sbr.rel (%p274) target = $region44
        $region43: #{tpu_custom_call.1} parent=11 // pred_region
          _
        $region44: #{tpu_custom_call.1} parent=11 // pred_fallthru
          _
      $region12: #{tpu_custom_call.1} parent=5 // pred_fallthru
        _
      %p277 = scmp.lt.s32.totalorder %s18, 2
      // Predicated region
      $region45: #{tpu_custom_call.1} parent=5 // pred_check
        %p278 = pneg %p277
      $region46: #{tpu_custom_call.1} parent=5 // pred_check_branch
        %280 = sbr.rel (%p278) target = $region48
      $region47: #{tpu_custom_call.1} parent=5 // pred_region
        // Predicated region
        $region49: #{tpu_custom_call.1} parent=47 // pred_check
          %p281 = pneg %p38
        $region50: #{tpu_custom_call.1} parent=47 // pred_check_branch
          %283 = sbr.rel (%p281) target = $region52
        $region51: #{tpu_custom_call.1} parent=47 // pred_region
          %p284 = scmp.lt.s32.totalorder %s18, 1
          %s285 = scalar_select %p284, %s18, 1
          %s286 = smul.addr %s285, 72
          %s287 = smul.addr %s286, 8
          %s288 = scalar_lea.vmem %s0, %s287
        $region52: #{tpu_custom_call.1} parent=47 // pred_fallthru
          _
      $region48: #{tpu_custom_call.1} parent=5 // pred_fallthru
        _
      %p289 = scmp.le.s32.totalorder 1, %s18
      %p290 = scmp.lt.s32.totalorder %s18, 3
      %p291 = pnand %p289, %p290
      %p292 = pneg %p291
      // Predicated region
      $region53: #{tpu_custom_call.1} parent=5 // pred_check
        _
      $region54: #{tpu_custom_call.1} parent=5 // pred_check_branch
        %294 = sbr.rel (%p291) target = $region56
      $region55: #{tpu_custom_call.1} parent=5 // pred_region
        %s295 = ssub.s32 %s18, 1
        %p296 = scmp.lt.s32.totalorder %s23, 1
        %s297 = scalar_select %p296, %s23, 1
        %s298 = smul.addr %s297, 72
        %s299 = smul.addr %s298, 8
        %s300 = scalar_lea.vmem %s0, %s299
        %p301 = pneg %p44
        %p302 = pneg %p41
        %p303 = pneg %p65
        %p304 = pneg %p62
        %p305 = pneg %p86
        %p306 = pneg %p83
        %p307 = pneg %p107
        %p308 = pneg %p104
        %p309 = pneg %p128
        %p310 = pneg %p125
        %p311 = pneg %p149
        %p312 = pneg %p146
        %p313 = pneg %p170
        %p314 = pneg %p167
        %p315 = pneg %p191
        %p316 = pneg %p188
        %p317 = pneg %p212
        %p318 = pneg %p209
        %p319 = pneg %p238
        %p320 = pneg %p235
        %s321 = sand.u32 %s225, 1
        %s322 = scalar_lea.sflag [#allocation4], %s321
        %s323 = sand.u32 %s225, 1
        %s324 = smul.addr %s323, 64
        %s325 = scalar_lea.vmem [#allocation3], %s324
        %p326 = scmp.lt.s32.totalorder %s23, 1
        %s327 = scalar_select %p326, %s23, 1
        %s328 = smul.addr %s327, 72
        %s329 = smul.addr %s328, 8
        %s330 = scalar_lea.vmem %s0, %s329
        %v332 = vld [vmem:[%s330] sm:$0xff]
        %v333 = vld [vmem:[%s330 + $0x8] sm:$0x1]
        %v334 = vld [vmem:[%s330 + $0x10] sm:$0xff]
        %v335 = vld [vmem:[%s330 + $0x18] sm:$0x1]
        %v336 = vld [vmem:[%s330 + $0x20] sm:$0xff]
        %v337 = vld [vmem:[%s330 + $0x28] sm:$0x1]
        %v338 = vld [vmem:[%s330 + $0x30] sm:$0xff]
        %v339 = vld [vmem:[%s330 + $0x38] sm:$0x1]
        %v340 = vld [vmem:[%s330 + $0x40] sm:$0xff]
        %v341 = vld [vmem:[%s330 + $0x48] sm:$0x1]
        %v342 = vld [vmem:[%s330 + $0x50] sm:$0xff]
        %v343 = vld [vmem:[%s330 + $0x58] sm:$0x1]
        %v344 = vld [vmem:[%s330 + $0x60] sm:$0xff]
        %v345 = vld [vmem:[%s330 + $0x68] sm:$0x1]
        %v346 = vld [vmem:[%s330 + $0x70] sm:$0xff]
        %v347 = vld [vmem:[%s330 + $0x78] sm:$0x1]
        %v348 = vld [vmem:[%s330 + $0x80] sm:$0xff]
        %v349 = vld [vmem:[%s330 + $0x88] sm:$0x1]
        %v350 = vld [vmem:[%s330 + $0x90] sm:$0xff]
        %v351 = vld [vmem:[%s330 + $0x98] sm:$0x1]
        %v352 = vld [vmem:[%s330 + $0xa0] sm:$0xff]
        %v353 = vld [vmem:[%s330 + $0xa8] sm:$0x1]
        %v354 = vld [vmem:[%s330 + $0xb0] sm:$0xff]
        %v355 = vld [vmem:[%s330 + $0xb8] sm:$0x1]
        %v356 = vld [vmem:[%s330 + $0xc0] sm:$0xff]
        %v357 = vld [vmem:[%s330 + $0xc8] sm:$0x1]
        %v358 = vld [vmem:[%s330 + $0xd0] sm:$0xff]
        %v359 = vld [vmem:[%s330 + $0xd8] sm:$0x1]
        %v360 = vld [vmem:[%s330 + $0xe0] sm:$0xff]
        %v361 = vld [vmem:[%s330 + $0xe8] sm:$0x1]
        %v362 = vld [vmem:[%s330 + $0xf0] sm:$0xff]
        %v363 = vld [vmem:[%s330 + $0xf8] sm:$0x1]
        %v364 = vld [vmem:[%s330 + $0x100] sm:$0xff]
        %v365 = vld [vmem:[%s330 + $0x108] sm:$0x1]
        %v366 = vld [vmem:[%s330 + $0x110] sm:$0xff]
        %v367 = vld [vmem:[%s330 + $0x118] sm:$0x1]
        %v368 = vld [vmem:[%s330 + $0x120] sm:$0xff]
        %v369 = vld [vmem:[%s330 + $0x128] sm:$0x1]
        %v370 = vld [vmem:[%s330 + $0x130] sm:$0xff]
        %v371 = vld [vmem:[%s330 + $0x138] sm:$0x1]
        %v372 = vld [vmem:[%s330 + $0x140] sm:$0xff]
        %v373 = vld [vmem:[%s330 + $0x148] sm:$0x1]
        %v374 = vld [vmem:[%s330 + $0x150] sm:$0xff]
        %v375 = vld [vmem:[%s330 + $0x158] sm:$0x1]
        %v376 = vld [vmem:[%s330 + $0x160] sm:$0xff]
        %v377 = vld [vmem:[%s330 + $0x168] sm:$0x1]
        %v378 = vld [vmem:[%s330 + $0x170] sm:$0xff]
        %v379 = vld [vmem:[%s330 + $0x178] sm:$0x1]
        %v380 = vld [vmem:[%s330 + $0x180] sm:$0xff]
        %v381 = vld [vmem:[%s330 + $0x188] sm:$0x1]
        %v382 = vld [vmem:[%s330 + $0x190] sm:$0xff]
        %v383 = vld [vmem:[%s330 + $0x198] sm:$0x1]
        %v384 = vld [vmem:[%s330 + $0x1b0] sm:$0xff]
        %v385 = vld [vmem:[%s330 + $0x1b8] sm:$0x1]
        %v386 = vld [vmem:[%s330 + $0x1c0] sm:$0xff]
        %v387 = vld [vmem:[%s330 + $0x1c8] sm:$0x1]
        %v388 = vld [vmem:[%s330 + $0x1d0] sm:$0xff]
        %v389 = vld [vmem:[%s330 + $0x1d8] sm:$0x1]
        %v390 = vld [vmem:[%s330 + $0x1e0] sm:$0xff]
        %v391 = vld [vmem:[%s330 + $0x1e8] sm:$0x1]
        %v392 = vld [vmem:[%s330 + $0x1f0] sm:$0xff]
        %v393 = vld [vmem:[%s330 + $0x1f8] sm:$0x1]
        %v394 = vld [vmem:[%s330 + $0x200] sm:$0xff]
        %v395 = vld [vmem:[%s330 + $0x208] sm:$0x1]
        %v396 = vld [vmem:[%s330 + $0x210] sm:$0xff]
        %v397 = vld [vmem:[%s330 + $0x218] sm:$0x1]
        %v398 = vld [vmem:[%s330 + $0x220] sm:$0xff]
        %v399 = vld [vmem:[%s330 + $0x228] sm:$0x1]
        %v400 = vld [vmem:[%s2] sm:$0x1]
        %v402 = vlaneseq
        %v403 = vshrl.u32 %v402, 7
        %v404 = vsub.s32 0, %v403
        %v405 = vrot.slane %v400, %v404
        %v407 = vmul.f32 %v332, %v405
        %v408 = vmul.f32 %v333, %v405
        %v409 = vmul.f32 %v334, %v405
        %v410 = vmul.f32 %v335, %v405
        %v411 = vmul.f32 %v336, %v405
        %v412 = vmul.f32 %v337, %v405
        %v413 = vmul.f32 %v338, %v405
        %v414 = vmul.f32 %v339, %v405
        %v415 = vmul.f32 %v340, %v405
        %v416 = vmul.f32 %v341, %v405
        %v417 = vmul.f32 %v342, %v405
        %v418 = vmul.f32 %v343, %v405
        %v419 = vmul.f32 %v344, %v405
        %v420 = vmul.f32 %v345, %v405
        %v421 = vmul.f32 %v346, %v405
        %v422 = vmul.f32 %v347, %v405
        %v423 = vmul.f32 %v348, %v405
        %v424 = vmul.f32 %v349, %v405
        %v425 = vmul.f32 %v350, %v405
        %v426 = vmul.f32 %v351, %v405
        %v427 = vmul.f32 %v352, %v405
        %v428 = vmul.f32 %v353, %v405
        %v429 = vmul.f32 %v354, %v405
        %v430 = vmul.f32 %v355, %v405
        %v431 = vmul.f32 %v356, %v405
        %v432 = vmul.f32 %v357, %v405
        %v433 = vmul.f32 %v358, %v405
        %v434 = vmul.f32 %v359, %v405
        %v435 = vmul.f32 %v360, %v405
        %v436 = vmul.f32 %v361, %v405
        %v437 = vmul.f32 %v362, %v405
        %v438 = vmul.f32 %v363, %v405
        %v439 = vmul.f32 %v364, %v405
        %v440 = vmul.f32 %v365, %v405
        %v441 = vmul.f32 %v366, %v405
        %v442 = vmul.f32 %v367, %v405
        %v443 = vmul.f32 %v368, %v405
        %v444 = vmul.f32 %v369, %v405
        %v445 = vmul.f32 %v370, %v405
        %v446 = vmul.f32 %v371, %v405
        %v447 = vmul.f32 %v372, %v405
        %v448 = vmul.f32 %v373, %v405
        %v449 = vmul.f32 %v374, %v405
        %v450 = vmul.f32 %v375, %v405
        %v451 = vmul.f32 %v376, %v405
        %v452 = vmul.f32 %v377, %v405
        %v453 = vmul.f32 %v378, %v405
        %v454 = vmul.f32 %v379, %v405
        %v455 = vmul.f32 %v380, %v405
        %v456 = vmul.f32 %v381, %v405
        %v457 = vmul.f32 %v382, %v405
        %v458 = vmul.f32 %v383, %v405
        %v459 = vmul.f32 %v384, %v405
        %v460 = vmul.f32 %v385, %v405
        %v461 = vmul.f32 %v386, %v405
        %v462 = vmul.f32 %v387, %v405
        %v463 = vmul.f32 %v388, %v405
        %v464 = vmul.f32 %v389, %v405
        %v465 = vmul.f32 %v390, %v405
        %v466 = vmul.f32 %v391, %v405
        %v467 = vmul.f32 %v392, %v405
        %v468 = vmul.f32 %v393, %v405
        %v469 = vmul.f32 %v394, %v405
        %v470 = vmul.f32 %v395, %v405
        %v471 = vmul.f32 %v396, %v405
        %v472 = vmul.f32 %v397, %v405
        %v473 = vmul.f32 %v398, %v405
        %v474 = vmul.f32 %v399, %v405
        %v475 = vld [vmem:[%s3] sm:$0x1]
        %v477 = vlaneseq
        %v478 = vshrl.u32 %v477, 7
        %v479 = vsub.s32 0, %v478
        %v480 = vrot.slane %v475, %v479
        %v482 = vadd.f32 %v407, %v480
        %v483 = vadd.f32 %v408, %v480
        %v484 = vadd.f32 %v409, %v480
        %v485 = vadd.f32 %v410, %v480
        %v486 = vadd.f32 %v411, %v480
        %v487 = vadd.f32 %v412, %v480
        %v488 = vadd.f32 %v413, %v480
        %v489 = vadd.f32 %v414, %v480
        %v490 = vadd.f32 %v415, %v480
        %v491 = vadd.f32 %v416, %v480
        %v492 = vadd.f32 %v417, %v480
        %v493 = vadd.f32 %v418, %v480
        %v494 = vadd.f32 %v419, %v480
        %v495 = vadd.f32 %v420, %v480
        %v496 = vadd.f32 %v421, %v480
        %v497 = vadd.f32 %v422, %v480
        %v498 = vadd.f32 %v423, %v480
        %v499 = vadd.f32 %v424, %v480
        %v500 = vadd.f32 %v425, %v480
        %v501 = vadd.f32 %v426, %v480
        %v502 = vadd.f32 %v427, %v480
        %v503 = vadd.f32 %v428, %v480
        %v504 = vadd.f32 %v429, %v480
        %v505 = vadd.f32 %v430, %v480
        %v506 = vadd.f32 %v431, %v480
        %v507 = vadd.f32 %v432, %v480
        %v508 = vadd.f32 %v433, %v480
        %v509 = vadd.f32 %v434, %v480
        %v510 = vadd.f32 %v435, %v480
        %v511 = vadd.f32 %v436, %v480
        %v512 = vadd.f32 %v437, %v480
        %v513 = vadd.f32 %v438, %v480
        %v514 = vadd.f32 %v439, %v480
        %v515 = vadd.f32 %v440, %v480
        %v516 = vadd.f32 %v441, %v480
        %v517 = vadd.f32 %v442, %v480
        %v518 = vadd.f32 %v443, %v480
        %v519 = vadd.f32 %v444, %v480
        %v520 = vadd.f32 %v445, %v480
        %v521 = vadd.f32 %v446, %v480
        %v522 = vadd.f32 %v447, %v480
        %v523 = vadd.f32 %v448, %v480
        %v524 = vadd.f32 %v449, %v480
        %v525 = vadd.f32 %v450, %v480
        %v526 = vadd.f32 %v451, %v480
        %v527 = vadd.f32 %v452, %v480
        %v528 = vadd.f32 %v453, %v480
        %v529 = vadd.f32 %v454, %v480
        %v530 = vadd.f32 %v455, %v480
        %v531 = vadd.f32 %v456, %v480
        %v532 = vadd.f32 %v457, %v480
        %v533 = vadd.f32 %v458, %v480
        %v534 = vadd.f32 %v459, %v480
        %v535 = vadd.f32 %v460, %v480
        %v536 = vadd.f32 %v461, %v480
        %v537 = vadd.f32 %v462, %v480
        %v538 = vadd.f32 %v463, %v480
        %v539 = vadd.f32 %v464, %v480
        %v540 = vadd.f32 %v465, %v480
        %v541 = vadd.f32 %v466, %v480
        %v542 = vadd.f32 %v467, %v480
        %v543 = vadd.f32 %v468, %v480
        %v544 = vadd.f32 %v469, %v480
        %v545 = vadd.f32 %v470, %v480
        %v546 = vadd.f32 %v471, %v480
        %v547 = vadd.f32 %v472, %v480
        %v548 = vadd.f32 %v473, %v480
        %v549 = vadd.f32 %v474, %v480
        %v550 = vmax.f32 %v482, 0.0
        %v551 = vmax.f32 %v483, 0.0
        %v552 = vmax.f32 %v484, 0.0
        %v553 = vmax.f32 %v485, 0.0
        %v554 = vmax.f32 %v486, 0.0
        %v555 = vmax.f32 %v487, 0.0
        %v556 = vmax.f32 %v488, 0.0
        %v557 = vmax.f32 %v489, 0.0
        %v558 = vmax.f32 %v490, 0.0
        %v559 = vmax.f32 %v491, 0.0
        %v560 = vmax.f32 %v492, 0.0
        %v561 = vmax.f32 %v493, 0.0
        %v562 = vmax.f32 %v494, 0.0
        %v563 = vmax.f32 %v495, 0.0
        %v564 = vmax.f32 %v496, 0.0
        %v565 = vmax.f32 %v497, 0.0
        %v566 = vmax.f32 %v498, 0.0
        %v567 = vmax.f32 %v499, 0.0
        %v568 = vmax.f32 %v500, 0.0
        %v569 = vmax.f32 %v501, 0.0
        %v570 = vmax.f32 %v502, 0.0
        %v571 = vmax.f32 %v503, 0.0
        %v572 = vmax.f32 %v504, 0.0
        %v573 = vmax.f32 %v505, 0.0
        %v574 = vmax.f32 %v506, 0.0
        %v575 = vmax.f32 %v507, 0.0
        %v576 = vmax.f32 %v508, 0.0
        %v577 = vmax.f32 %v509, 0.0
        %v578 = vmax.f32 %v510, 0.0
        %v579 = vmax.f32 %v511, 0.0
        %v580 = vmax.f32 %v512, 0.0
        %v581 = vmax.f32 %v513, 0.0
        %v582 = vmax.f32 %v514, 0.0
        %v583 = vmax.f32 %v515, 0.0
        %v584 = vmax.f32 %v516, 0.0
        %v585 = vmax.f32 %v517, 0.0
        %v586 = vmax.f32 %v518, 0.0
        %v587 = vmax.f32 %v519, 0.0
        %v588 = vmax.f32 %v520, 0.0
        %v589 = vmax.f32 %v521, 0.0
        %v590 = vmax.f32 %v522, 0.0
        %v591 = vmax.f32 %v523, 0.0
        %v592 = vmax.f32 %v524, 0.0
        %v593 = vmax.f32 %v525, 0.0
        %v594 = vmax.f32 %v526, 0.0
        %v595 = vmax.f32 %v527, 0.0
        %v596 = vmax.f32 %v528, 0.0
        %v597 = vmax.f32 %v529, 0.0
        %v598 = vmax.f32 %v530, 0.0
        %v599 = vmax.f32 %v531, 0.0
        %v600 = vmax.f32 %v532, 0.0
        %v601 = vmax.f32 %v533, 0.0
        %v602 = vmax.f32 %v534, 0.0
        %v603 = vmax.f32 %v535, 0.0
        %v604 = vmax.f32 %v536, 0.0
        %v605 = vmax.f32 %v537, 0.0
        %v606 = vmax.f32 %v538, 0.0
        %v607 = vmax.f32 %v539, 0.0
        %v608 = vmax.f32 %v540, 0.0
        %v609 = vmax.f32 %v541, 0.0
        %v610 = vmax.f32 %v542, 0.0
        %v611 = vmax.f32 %v543, 0.0
        %v612 = vmax.f32 %v544, 0.0
        %v613 = vmax.f32 %v545, 0.0
        %v614 = vmax.f32 %v546, 0.0
        %v615 = vmax.f32 %v547, 0.0
        %v616 = vmax.f32 %v548, 0.0
        %v617 = vmax.f32 %v549, 0.0
        %v618 = vld [vmem:[%s1] sm:$0xff]
        %v619 = vld [vmem:[%s1 + $0x8] sm:$0x1]
        %v620 = vld [vmem:[%s1 + $0x10] sm:$0xff]
        %v621 = vld [vmem:[%s1 + $0x18] sm:$0x1]
        %v622 = vld [vmem:[%s1 + $0x20] sm:$0xff]
        %v623 = vld [vmem:[%s1 + $0x28] sm:$0x1]
        %v624 = vld [vmem:[%s1 + $0x30] sm:$0xff]
        %v625 = vld [vmem:[%s1 + $0x38] sm:$0x1]
        %v626 = vld [vmem:[%s1 + $0x40] sm:$0xff]
        %v627 = vld [vmem:[%s1 + $0x48] sm:$0x1]
        %v628 = vld [vmem:[%s1 + $0x50] sm:$0xff]
        %v629 = vld [vmem:[%s1 + $0x58] sm:$0x1]
        %v630 = vld [vmem:[%s1 + $0x60] sm:$0xff]
        %v631 = vld [vmem:[%s1 + $0x68] sm:$0x1]
        %v632 = vld [vmem:[%s1 + $0x70] sm:$0xff]
        %v633 = vld [vmem:[%s1 + $0x78] sm:$0x1]
        %v634 = vld [vmem:[%s1 + $0x80] sm:$0xff]
        %v635 = vld [vmem:[%s1 + $0x88] sm:$0x1]
        %v636 = vld [vmem:[%s1 + $0x90] sm:$0xff]
        %v637 = vld [vmem:[%s1 + $0x98] sm:$0x1]
        %v638 = vld [vmem:[%s1 + $0xa0] sm:$0xff]
        %v639 = vld [vmem:[%s1 + $0xa8] sm:$0x1]
        %v640 = vld [vmem:[%s1 + $0xb0] sm:$0xff]
        %v641 = vld [vmem:[%s1 + $0xb8] sm:$0x1]
        %v642 = vld [vmem:[%s1 + $0xc0] sm:$0xff]
        %v643 = vld [vmem:[%s1 + $0xc8] sm:$0x1]
        %v644 = vld [vmem:[%s1 + $0xd0] sm:$0xff]
        %v645 = vld [vmem:[%s1 + $0xd8] sm:$0x1]
        %v646 = vld [vmem:[%s1 + $0xe0] sm:$0xff]
        %v647 = vld [vmem:[%s1 + $0xe8] sm:$0x1]
        %v648 = vld [vmem:[%s1 + $0xf0] sm:$0xff]
        %v649 = vld [vmem:[%s1 + $0xf8] sm:$0x1]
        %v650 = vld [vmem:[%s1 + $0x100] sm:$0xff]
        %v651 = vld [vmem:[%s1 + $0x108] sm:$0x1]
        %v652 = vld [vmem:[%s1 + $0x110] sm:$0xff]
        %v653 = vld [vmem:[%s1 + $0x118] sm:$0x1]
        %v654 = vld [vmem:[%s1 + $0x120] sm:$0xff]
        %v655 = vld [vmem:[%s1 + $0x128] sm:$0x1]
        %v656 = vld [vmem:[%s1 + $0x130] sm:$0xff]
        %v657 = vld [vmem:[%s1 + $0x138] sm:$0x1]
        %v658 = vld [vmem:[%s1 + $0x140] sm:$0xff]
        %v659 = vld [vmem:[%s1 + $0x148] sm:$0x1]
        %v660 = vld [vmem:[%s1 + $0x150] sm:$0xff]
        %v661 = vld [vmem:[%s1 + $0x158] sm:$0x1]
        %v662 = vld [vmem:[%s1 + $0x160] sm:$0xff]
        %v663 = vld [vmem:[%s1 + $0x168] sm:$0x1]
        %v664 = vld [vmem:[%s1 + $0x170] sm:$0xff]
        %v665 = vld [vmem:[%s1 + $0x178] sm:$0x1]
        %v666 = vld [vmem:[%s1 + $0x180] sm:$0xff]
        %v667 = vld [vmem:[%s1 + $0x188] sm:$0x1]
        %v668 = vld [vmem:[%s1 + $0x190] sm:$0xff]
        %v669 = vld [vmem:[%s1 + $0x198] sm:$0x1]
        %v670 = vld [vmem:[%s1 + $0x1b0] sm:$0xff]
        %v671 = vld [vmem:[%s1 + $0x1b8] sm:$0x1]
        %v672 = vld [vmem:[%s1 + $0x1c0] sm:$0xff]
        %v673 = vld [vmem:[%s1 + $0x1c8] sm:$0x1]
        %v674 = vld [vmem:[%s1 + $0x1d0] sm:$0xff]
        %v675 = vld [vmem:[%s1 + $0x1d8] sm:$0x1]
        %v676 = vld [vmem:[%s1 + $0x1e0] sm:$0xff]
        %v677 = vld [vmem:[%s1 + $0x1e8] sm:$0x1]
        %v678 = vld [vmem:[%s1 + $0x1f0] sm:$0xff]
        %v679 = vld [vmem:[%s1 + $0x1f8] sm:$0x1]
        %v680 = vld [vmem:[%s1 + $0x200] sm:$0xff]
        %v681 = vld [vmem:[%s1 + $0x208] sm:$0x1]
        %v682 = vld [vmem:[%s1 + $0x210] sm:$0xff]
        %v683 = vld [vmem:[%s1 + $0x218] sm:$0x1]
        %v684 = vld [vmem:[%s1 + $0x220] sm:$0xff]
        %v685 = vld [vmem:[%s1 + $0x228] sm:$0x1]
        %687 = vset.pattern.permute.xlu0 0
        %688 = vperm.xlu0 %687, %v618
        %v689 = vpop.permute.xlu0 %688
        %692 = vset.pattern.permute.xlu0 0
        %693 = vperm.xlu0 %692, %v619
        %v694 = vpop.permute.xlu0 %693
        %697 = vset.pattern.permute.xlu0 0
        %698 = vperm.xlu0 %697, %v620
        %v699 = vpop.permute.xlu0 %698
        %702 = vset.pattern.permute.xlu0 0
        %703 = vperm.xlu0 %702, %v621
        %v704 = vpop.permute.xlu0 %703
        %707 = vset.pattern.permute.xlu0 0
        %708 = vperm.xlu0 %707, %v622
        %v709 = vpop.permute.xlu0 %708
        %712 = vset.pattern.permute.xlu0 0
        %713 = vperm.xlu0 %712, %v623
        %v714 = vpop.permute.xlu0 %713
        %717 = vset.pattern.permute.xlu0 0
        %718 = vperm.xlu0 %717, %v624
        %v719 = vpop.permute.xlu0 %718
        %722 = vset.pattern.permute.xlu0 0
        %723 = vperm.xlu0 %722, %v625
        %v724 = vpop.permute.xlu0 %723
        %727 = vset.pattern.permute.xlu0 0
        %728 = vperm.xlu0 %727, %v626
        %v729 = vpop.permute.xlu0 %728
        %732 = vset.pattern.permute.xlu0 0
        %733 = vperm.xlu0 %732, %v627
        %v734 = vpop.permute.xlu0 %733
        %737 = vset.pattern.permute.xlu0 0
        %738 = vperm.xlu0 %737, %v628
        %v739 = vpop.permute.xlu0 %738
        %742 = vset.pattern.permute.xlu0 0
        %743 = vperm.xlu0 %742, %v629
        %v744 = vpop.permute.xlu0 %743
        %747 = vset.pattern.permute.xlu0 0
        %748 = vperm.xlu0 %747, %v630
        %v749 = vpop.permute.xlu0 %748
        %752 = vset.pattern.permute.xlu0 0
        %753 = vperm.xlu0 %752, %v631
        %v754 = vpop.permute.xlu0 %753
        %757 = vset.pattern.permute.xlu0 0
        %758 = vperm.xlu0 %757, %v632
        %v759 = vpop.permute.xlu0 %758
        %762 = vset.pattern.permute.xlu0 0
        %763 = vperm.xlu0 %762, %v633
        %v764 = vpop.permute.xlu0 %763
        %767 = vset.pattern.permute.xlu0 0
        %768 = vperm.xlu0 %767, %v634
        %v769 = vpop.permute.xlu0 %768
        %772 = vset.pattern.permute.xlu0 0
        %773 = vperm.xlu0 %772, %v635
        %v774 = vpop.permute.xlu0 %773
        %777 = vset.pattern.permute.xlu0 0
        %778 = vperm.xlu0 %777, %v636
        %v779 = vpop.permute.xlu0 %778
        %782 = vset.pattern.permute.xlu0 0
        %783 = vperm.xlu0 %782, %v637
        %v784 = vpop.permute.xlu0 %783
        %787 = vset.pattern.permute.xlu0 0
        %788 = vperm.xlu0 %787, %v638
        %v789 = vpop.permute.xlu0 %788
        %792 = vset.pattern.permute.xlu0 0
        %793 = vperm.xlu0 %792, %v639
        %v794 = vpop.permute.xlu0 %793
        %797 = vset.pattern.permute.xlu0 0
        %798 = vperm.xlu0 %797, %v640
        %v799 = vpop.permute.xlu0 %798
        %802 = vset.pattern.permute.xlu0 0
        %803 = vperm.xlu0 %802, %v641
        %v804 = vpop.permute.xlu0 %803
        %807 = vset.pattern.permute.xlu0 0
        %808 = vperm.xlu0 %807, %v642
        %v809 = vpop.permute.xlu0 %808
        %812 = vset.pattern.permute.xlu0 0
        %813 = vperm.xlu0 %812, %v643
        %v814 = vpop.permute.xlu0 %813
        %817 = vset.pattern.permute.xlu0 0
        %818 = vperm.xlu0 %817, %v644
        %v819 = vpop.permute.xlu0 %818
        %822 = vset.pattern.permute.xlu0 0
        %823 = vperm.xlu0 %822, %v645
        %v824 = vpop.permute.xlu0 %823
        %827 = vset.pattern.permute.xlu0 0
        %828 = vperm.xlu0 %827, %v646
        %v829 = vpop.permute.xlu0 %828
        %832 = vset.pattern.permute.xlu0 0
        %833 = vperm.xlu0 %832, %v647
        %v834 = vpop.permute.xlu0 %833
        %837 = vset.pattern.permute.xlu0 0
        %838 = vperm.xlu0 %837, %v648
        %v839 = vpop.permute.xlu0 %838
        %842 = vset.pattern.permute.xlu0 0
        %843 = vperm.xlu0 %842, %v649
        %v844 = vpop.permute.xlu0 %843
        %847 = vset.pattern.permute.xlu0 0
        %848 = vperm.xlu0 %847, %v650
        %v849 = vpop.permute.xlu0 %848
        %852 = vset.pattern.permute.xlu0 0
        %853 = vperm.xlu0 %852, %v651
        %v854 = vpop.permute.xlu0 %853
        %857 = vset.pattern.permute.xlu0 0
        %858 = vperm.xlu0 %857, %v652
        %v859 = vpop.permute.xlu0 %858
        %862 = vset.pattern.permute.xlu0 0
        %863 = vperm.xlu0 %862, %v653
        %v864 = vpop.permute.xlu0 %863
        %867 = vset.pattern.permute.xlu0 0
        %868 = vperm.xlu0 %867, %v654
        %v869 = vpop.permute.xlu0 %868
        %872 = vset.pattern.permute.xlu0 0
        %873 = vperm.xlu0 %872, %v655
        %v874 = vpop.permute.xlu0 %873
        %877 = vset.pattern.permute.xlu0 0
        %878 = vperm.xlu0 %877, %v656
        %v879 = vpop.permute.xlu0 %878
        %882 = vset.pattern.permute.xlu0 0
        %883 = vperm.xlu0 %882, %v657
        %v884 = vpop.permute.xlu0 %883
        %887 = vset.pattern.permute.xlu0 0
        %888 = vperm.xlu0 %887, %v658
        %v889 = vpop.permute.xlu0 %888
        %892 = vset.pattern.permute.xlu0 0
        %893 = vperm.xlu0 %892, %v659
        %v894 = vpop.permute.xlu0 %893
        %897 = vset.pattern.permute.xlu0 0
        %898 = vperm.xlu0 %897, %v660
        %v899 = vpop.permute.xlu0 %898
        %902 = vset.pattern.permute.xlu0 0
        %903 = vperm.xlu0 %902, %v661
        %v904 = vpop.permute.xlu0 %903
        %907 = vset.pattern.permute.xlu0 0
        %908 = vperm.xlu0 %907, %v662
        %v909 = vpop.permute.xlu0 %908
        %912 = vset.pattern.permute.xlu0 0
        %913 = vperm.xlu0 %912, %v663
        %v914 = vpop.permute.xlu0 %913
        %917 = vset.pattern.permute.xlu0 0
        %918 = vperm.xlu0 %917, %v664
        %v919 = vpop.permute.xlu0 %918
        %922 = vset.pattern.permute.xlu0 0
        %923 = vperm.xlu0 %922, %v665
        %v924 = vpop.permute.xlu0 %923
        %927 = vset.pattern.permute.xlu0 0
        %928 = vperm.xlu0 %927, %v666
        %v929 = vpop.permute.xlu0 %928
        %932 = vset.pattern.permute.xlu0 0
        %933 = vperm.xlu0 %932, %v667
        %v934 = vpop.permute.xlu0 %933
        %937 = vset.pattern.permute.xlu0 0
        %938 = vperm.xlu0 %937, %v668
        %v939 = vpop.permute.xlu0 %938
        %942 = vset.pattern.permute.xlu0 0
        %943 = vperm.xlu0 %942, %v669
        %v944 = vpop.permute.xlu0 %943
        %947 = vset.pattern.permute.xlu0 0
        %948 = vperm.xlu0 %947, %v670
        %v949 = vpop.permute.xlu0 %948
        %952 = vset.pattern.permute.xlu0 0
        %953 = vperm.xlu0 %952, %v671
        %v954 = vpop.permute.xlu0 %953
        %957 = vset.pattern.permute.xlu0 0
        %958 = vperm.xlu0 %957, %v672
        %v959 = vpop.permute.xlu0 %958
        %962 = vset.pattern.permute.xlu0 0
        %963 = vperm.xlu0 %962, %v673
        %v964 = vpop.permute.xlu0 %963
        %967 = vset.pattern.permute.xlu0 0
        %968 = vperm.xlu0 %967, %v674
        %v969 = vpop.permute.xlu0 %968
        %972 = vset.pattern.permute.xlu0 0
        %973 = vperm.xlu0 %972, %v675
        %v974 = vpop.permute.xlu0 %973
        %977 = vset.pattern.permute.xlu0 0
        %978 = vperm.xlu0 %977, %v676
        %v979 = vpop.permute.xlu0 %978
        %982 = vset.pattern.permute.xlu0 0
        %983 = vperm.xlu0 %982, %v677
        %v984 = vpop.permute.xlu0 %983
        %987 = vset.pattern.permute.xlu0 0
        %988 = vperm.xlu0 %987, %v678
        %v989 = vpop.permute.xlu0 %988
        %992 = vset.pattern.permute.xlu0 0
        %993 = vperm.xlu0 %992, %v679
        %v994 = vpop.permute.xlu0 %993
        %997 = vset.pattern.permute.xlu0 0
        %998 = vperm.xlu0 %997, %v680
        %v999 = vpop.permute.xlu0 %998
        %1002 = vset.pattern.permute.xlu0 0
        %1003 = vperm.xlu0 %1002, %v681
        %v1004 = vpop.permute.xlu0 %1003
        %1007 = vset.pattern.permute.xlu0 0
        %1008 = vperm.xlu0 %1007, %v682
        %v1009 = vpop.permute.xlu0 %1008
        %1012 = vset.pattern.permute.xlu0 0
        %1013 = vperm.xlu0 %1012, %v683
        %v1014 = vpop.permute.xlu0 %1013
        %1017 = vset.pattern.permute.xlu0 0
        %1018 = vperm.xlu0 %1017, %v684
        %v1019 = vpop.permute.xlu0 %1018
        %1022 = vset.pattern.permute.xlu0 0
        %1023 = vperm.xlu0 %1022, %v685
        %v1024 = vpop.permute.xlu0 %1023
        %v1026 = vmul.f32 %v550, %v689
        %v1027 = vmul.f32 %v551, %v694
        %v1028 = vmul.f32 %v552, %v699
        %v1029 = vmul.f32 %v553, %v704
        %v1030 = vmul.f32 %v554, %v709
        %v1031 = vmul.f32 %v555, %v714
        %v1032 = vmul.f32 %v556, %v719
        %v1033 = vmul.f32 %v557, %v724
        %v1034 = vmul.f32 %v558, %v729
        %v1035 = vmul.f32 %v559, %v734
        %v1036 = vmul.f32 %v560, %v739
        %v1037 = vmul.f32 %v561, %v744
        %v1038 = vmul.f32 %v562, %v749
        %v1039 = vmul.f32 %v563, %v754
        %v1040 = vmul.f32 %v564, %v759
        %v1041 = vmul.f32 %v565, %v764
        %v1042 = vmul.f32 %v566, %v769
        %v1043 = vmul.f32 %v567, %v774
        %v1044 = vmul.f32 %v568, %v779
        %v1045 = vmul.f32 %v569, %v784
        %v1046 = vmul.f32 %v570, %v789
        %v1047 = vmul.f32 %v571, %v794
        %v1048 = vmul.f32 %v572, %v799
        %v1049 = vmul.f32 %v573, %v804
        %v1050 = vmul.f32 %v574, %v809
        %v1051 = vmul.f32 %v575, %v814
        %v1052 = vmul.f32 %v576, %v819
        %v1053 = vmul.f32 %v577, %v824
        %v1054 = vmul.f32 %v578, %v829
        %v1055 = vmul.f32 %v579, %v834
        %v1056 = vmul.f32 %v580, %v839
        %v1057 = vmul.f32 %v581, %v844
        %v1058 = vmul.f32 %v582, %v849
        %v1059 = vmul.f32 %v583, %v854
        %v1060 = vmul.f32 %v584, %v859
        %v1061 = vmul.f32 %v585, %v864
        %v1062 = vmul.f32 %v586, %v869
        %v1063 = vmul.f32 %v587, %v874
        %v1064 = vmul.f32 %v588, %v879
        %v1065 = vmul.f32 %v589, %v884
        %v1066 = vmul.f32 %v590, %v889
        %v1067 = vmul.f32 %v591, %v894
        %v1068 = vmul.f32 %v592, %v899
        %v1069 = vmul.f32 %v593, %v904
        %v1070 = vmul.f32 %v594, %v909
        %v1071 = vmul.f32 %v595, %v914
        %v1072 = vmul.f32 %v596, %v919
        %v1073 = vmul.f32 %v597, %v924
        %v1074 = vmul.f32 %v598, %v929
        %v1075 = vmul.f32 %v599, %v934
        %v1076 = vmul.f32 %v600, %v939
        %v1077 = vmul.f32 %v601, %v944
        %v1078 = vmul.f32 %v602, %v949
        %v1079 = vmul.f32 %v603, %v954
        %v1080 = vmul.f32 %v604, %v959
        %v1081 = vmul.f32 %v605, %v964
        %v1082 = vmul.f32 %v606, %v969
        %v1083 = vmul.f32 %v607, %v974
        %v1084 = vmul.f32 %v608, %v979
        %v1085 = vmul.f32 %v609, %v984
        %v1086 = vmul.f32 %v610, %v989
        %v1087 = vmul.f32 %v611, %v994
        %v1088 = vmul.f32 %v612, %v999
        %v1089 = vmul.f32 %v613, %v1004
        %v1090 = vmul.f32 %v614, %v1009
        %v1091 = vmul.f32 %v615, %v1014
        %v1092 = vmul.f32 %v616, %v1019
        %v1093 = vmul.f32 %v617, %v1024
        %v1094 = vpack.c.bf16 %v1027, %v1026
        %v1095 = vpack.c.bf16 %v1029, %v1028
        %v1096 = vpack.c.bf16 %v1031, %v1030
        %v1097 = vpack.c.bf16 %v1033, %v1032
        %v1098 = vpack.c.bf16 %v1035, %v1034
        %v1099 = vpack.c.bf16 %v1037, %v1036
        %v1100 = vpack.c.bf16 %v1039, %v1038
        %v1101 = vpack.c.bf16 %v1041, %v1040
        %v1102 = vpack.c.bf16 %v1043, %v1042
        %v1103 = vpack.c.bf16 %v1045, %v1044
        %v1104 = vpack.c.bf16 %v1047, %v1046
        %v1105 = vpack.c.bf16 %v1049, %v1048
        %v1106 = vpack.c.bf16 %v1051, %v1050
        %v1107 = vpack.c.bf16 %v1053, %v1052
        %v1108 = vpack.c.bf16 %v1055, %v1054
        %v1109 = vpack.c.bf16 %v1057, %v1056
        %v1110 = vpack.c.bf16 %v1059, %v1058
        %v1111 = vpack.c.bf16 %v1061, %v1060
        %v1112 = vpack.c.bf16 %v1063, %v1062
        %v1113 = vpack.c.bf16 %v1065, %v1064
        %v1114 = vpack.c.bf16 %v1067, %v1066
        %v1115 = vpack.c.bf16 %v1069, %v1068
        %v1116 = vpack.c.bf16 %v1071, %v1070
        %v1117 = vpack.c.bf16 %v1073, %v1072
        %v1118 = vpack.c.bf16 %v1075, %v1074
        %v1119 = vpack.c.bf16 %v1077, %v1076
        %v1120 = vpack.c.bf16 %v1079, %v1078
        %v1121 = vpack.c.bf16 %v1081, %v1080
        %v1122 = vpack.c.bf16 %v1083, %v1082
        %v1123 = vpack.c.bf16 %v1085, %v1084
        %v1124 = vpack.c.bf16 %v1087, %v1086
        %v1125 = vpack.c.bf16 %v1089, %v1088
        %v1126 = vpack.c.bf16 %v1091, %v1090
        %v1127 = vpack.c.bf16 %v1093, %v1092
        %v1136 = vunpack.c.l.b16 %v1094
        %v1137 = vunpack.c.h.b16 %v1094
        %v1138 = vunpack.c.l.b16 %v1095
        %v1139 = vunpack.c.h.b16 %v1095
        %v1140 = vunpack.c.l.b16 %v1096
        %v1141 = vunpack.c.h.b16 %v1096
        %v1142 = vunpack.c.l.b16 %v1097
        %v1143 = vunpack.c.h.b16 %v1097
        %v1144 = vunpack.c.l.b16 %v1098
        %v1145 = vunpack.c.h.b16 %v1098
        %v1146 = vunpack.c.l.b16 %v1099
        %v1147 = vunpack.c.h.b16 %v1099
        %v1148 = vunpack.c.l.b16 %v1100
        %v1149 = vunpack.c.h.b16 %v1100
        %v1150 = vunpack.c.l.b16 %v1101
        %v1151 = vunpack.c.h.b16 %v1101
        %v1152 = vpack.c.b16 %v1136, %v1136
        %v1153 = vpack.c.b16 %v1137, %v1137
        %v1154 = vpack.c.b16 %v1138, %v1138
        %v1155 = vpack.c.b16 %v1139, %v1139
        %v1156 = vpack.c.b16 %v1140, %v1140
        %v1157 = vpack.c.b16 %v1141, %v1141
        %v1158 = vpack.c.b16 %v1142, %v1142
        %v1159 = vpack.c.b16 %v1143, %v1143
        %v1160 = vpack.c.b16 %v1144, %v1144
        %v1161 = vpack.c.b16 %v1145, %v1145
        %v1162 = vpack.c.b16 %v1146, %v1146
        %v1163 = vpack.c.b16 %v1147, %v1147
        %v1164 = vpack.c.b16 %v1148, %v1148
        %v1165 = vpack.c.b16 %v1149, %v1149
        %v1166 = vpack.c.b16 %v1150, %v1150
        %v1167 = vpack.c.b16 %v1151, %v1151
        %vm1168 = vsmask.f32 3328
        %vm1169 = vsmask.f32 7440
        %vm1170 = vmor %vm1168, %vm1169
        %v1172 = vshrl.u32 %v1152, 16
        %v1174 = vrot.slane %v1172, 4
        %v1175 = vshll.u32 %v1152, 16
        %v1177 = vrot.slane %v1175, 5
        %v1178 = vor.u32 %v1174, %v1177
        %v1179 = vrot.slane %v1178, 4
        %v1181 = vshll.u32 %v1153, 16
        %v1183 = vrot.slane %v1181, 5
        %v1184 = vsel %vm1170, %v1179, %v1183
        %v1186 = vshrl.u32 %v1154, 16
        %v1188 = vrot.slane %v1186, 4
        %v1189 = vshll.u32 %v1154, 16
        %v1191 = vrot.slane %v1189, 5
        %v1192 = vor.u32 %v1188, %v1191
        %v1193 = vrot.slane %v1192, 4
        %v1195 = vshll.u32 %v1155, 16
        %v1197 = vrot.slane %v1195, 5
        %v1198 = vsel %vm1170, %v1193, %v1197
        %v1200 = vshrl.u32 %v1156, 16
        %v1202 = vrot.slane %v1200, 4
        %v1203 = vshll.u32 %v1156, 16
        %v1205 = vrot.slane %v1203, 5
        %v1206 = vor.u32 %v1202, %v1205
        %v1207 = vrot.slane %v1206, 4
        %v1209 = vshll.u32 %v1157, 16
        %v1211 = vrot.slane %v1209, 5
        %v1212 = vsel %vm1170, %v1207, %v1211
        %v1214 = vshrl.u32 %v1158, 16
        %v1216 = vrot.slane %v1214, 4
        %v1217 = vshll.u32 %v1158, 16
        %v1219 = vrot.slane %v1217, 5
        %v1220 = vor.u32 %v1216, %v1219
        %v1221 = vrot.slane %v1220, 4
        %v1223 = vshll.u32 %v1159, 16
        %v1225 = vrot.slane %v1223, 5
        %v1226 = vsel %vm1170, %v1221, %v1225
        %v1228 = vshrl.u32 %v1160, 16
        %v1230 = vrot.slane %v1228, 4
        %v1231 = vshll.u32 %v1160, 16
        %v1233 = vrot.slane %v1231, 5
        %v1234 = vor.u32 %v1230, %v1233
        %v1235 = vrot.slane %v1234, 4
        %v1237 = vshll.u32 %v1161, 16
        %v1239 = vrot.slane %v1237, 5
        %v1240 = vsel %vm1170, %v1235, %v1239
        %v1242 = vshrl.u32 %v1162, 16
        %v1244 = vrot.slane %v1242, 4
        %v1245 = vshll.u32 %v1162, 16
        %v1247 = vrot.slane %v1245, 5
        %v1248 = vor.u32 %v1244, %v1247
        %v1249 = vrot.slane %v1248, 4
        %v1251 = vshll.u32 %v1163, 16
        %v1253 = vrot.slane %v1251, 5
        %v1254 = vsel %vm1170, %v1249, %v1253
        %v1256 = vshrl.u32 %v1164, 16
        %v1258 = vrot.slane %v1256, 4
        %v1259 = vshll.u32 %v1164, 16
        %v1261 = vrot.slane %v1259, 5
        %v1262 = vor.u32 %v1258, %v1261
        %v1263 = vrot.slane %v1262, 4
        %v1265 = vshll.u32 %v1165, 16
        %v1267 = vrot.slane %v1265, 5
        %v1268 = vsel %vm1170, %v1263, %v1267
        %v1270 = vshrl.u32 %v1166, 16
        %v1272 = vrot.slane %v1270, 4
        %v1273 = vshll.u32 %v1166, 16
        %v1275 = vrot.slane %v1273, 5
        %v1276 = vor.u32 %v1272, %v1275
        %v1277 = vrot.slane %v1276, 4
        %v1279 = vshll.u32 %v1167, 16
        %v1281 = vrot.slane %v1279, 5
        %v1282 = vsel %vm1170, %v1277, %v1281
        %v1291 = vunpack.c.l.b16 %v1112
        %v1292 = vunpack.c.h.b16 %v1112
        %v1293 = vunpack.c.l.b16 %v1113
        %v1294 = vunpack.c.h.b16 %v1113
        %v1295 = vunpack.c.l.b16 %v1114
        %v1296 = vunpack.c.h.b16 %v1114
        %v1297 = vunpack.c.l.b16 %v1115
        %v1298 = vunpack.c.h.b16 %v1115
        %v1299 = vunpack.c.l.b16 %v1116
        %v1300 = vunpack.c.h.b16 %v1116
        %v1301 = vunpack.c.l.b16 %v1117
        %v1302 = vunpack.c.h.b16 %v1117
        %v1303 = vunpack.c.l.b16 %v1118
        %v1304 = vunpack.c.h.b16 %v1118
        %v1305 = vunpack.c.l.b16 %v1119
        %v1306 = vunpack.c.h.b16 %v1119
        %v1307 = vpack.c.b16 %v1291, %v1291
        %v1308 = vpack.c.b16 %v1292, %v1292
        %v1309 = vpack.c.b16 %v1293, %v1293
        %v1310 = vpack.c.b16 %v1294, %v1294
        %v1311 = vpack.c.b16 %v1295, %v1295
        %v1312 = vpack.c.b16 %v1296, %v1296
        %v1313 = vpack.c.b16 %v1297, %v1297
        %v1314 = vpack.c.b16 %v1298, %v1298
        %v1315 = vpack.c.b16 %v1299, %v1299
        %v1316 = vpack.c.b16 %v1300, %v1300
        %v1317 = vpack.c.b16 %v1301, %v1301
        %v1318 = vpack.c.b16 %v1302, %v1302
        %v1319 = vpack.c.b16 %v1303, %v1303
        %v1320 = vpack.c.b16 %v1304, %v1304
        %v1321 = vpack.c.b16 %v1305, %v1305
        %v1322 = vpack.c.b16 %v1306, %v1306
        %v1324 = vshrl.u32 %v1307, 16
        %v1326 = vrot.slane %v1324, 4
        %v1327 = vshll.u32 %v1307, 16
        %v1329 = vrot.slane %v1327, 5
        %v1330 = vor.u32 %v1326, %v1329
        %v1331 = vrot.slane %v1330, 4
        %v1333 = vshll.u32 %v1308, 16
        %v1335 = vrot.slane %v1333, 5
        %v1336 = vsel %vm1170, %v1331, %v1335
        %v1338 = vshrl.u32 %v1309, 16
        %v1340 = vrot.slane %v1338, 4
        %v1341 = vshll.u32 %v1309, 16
        %v1343 = vrot.slane %v1341, 5
        %v1344 = vor.u32 %v1340, %v1343
        %v1345 = vrot.slane %v1344, 4
        %v1347 = vshll.u32 %v1310, 16
        %v1349 = vrot.slane %v1347, 5
        %v1350 = vsel %vm1170, %v1345, %v1349
        %v1352 = vshrl.u32 %v1311, 16
        %v1354 = vrot.slane %v1352, 4
        %v1355 = vshll.u32 %v1311, 16
        %v1357 = vrot.slane %v1355, 5
        %v1358 = vor.u32 %v1354, %v1357
        %v1359 = vrot.slane %v1358, 4
        %v1361 = vshll.u32 %v1312, 16
        %v1363 = vrot.slane %v1361, 5
        %v1364 = vsel %vm1170, %v1359, %v1363
        %v1366 = vshrl.u32 %v1313, 16
        %v1368 = vrot.slane %v1366, 4
        %v1369 = vshll.u32 %v1313, 16
        %v1371 = vrot.slane %v1369, 5
        %v1372 = vor.u32 %v1368, %v1371
        %v1373 = vrot.slane %v1372, 4
        %v1375 = vshll.u32 %v1314, 16
        %v1377 = vrot.slane %v1375, 5
        %v1378 = vsel %vm1170, %v1373, %v1377
        %v1380 = vshrl.u32 %v1315, 16
        %v1382 = vrot.slane %v1380, 4
        %v1383 = vshll.u32 %v1315, 16
        %v1385 = vrot.slane %v1383, 5
        %v1386 = vor.u32 %v1382, %v1385
        %v1387 = vrot.slane %v1386, 4
        %v1389 = vshll.u32 %v1316, 16
        %v1391 = vrot.slane %v1389, 5
        %v1392 = vsel %vm1170, %v1387, %v1391
        %v1394 = vshrl.u32 %v1317, 16
        %v1396 = vrot.slane %v1394, 4
        %v1397 = vshll.u32 %v1317, 16
        %v1399 = vrot.slane %v1397, 5
        %v1400 = vor.u32 %v1396, %v1399
        %v1401 = vrot.slane %v1400, 4
        %v1403 = vshll.u32 %v1318, 16
        %v1405 = vrot.slane %v1403, 5
        %v1406 = vsel %vm1170, %v1401, %v1405
        %v1408 = vshrl.u32 %v1319, 16
        %v1410 = vrot.slane %v1408, 4
        %v1411 = vshll.u32 %v1319, 16
        %v1413 = vrot.slane %v1411, 5
        %v1414 = vor.u32 %v1410, %v1413
        %v1415 = vrot.slane %v1414, 4
        %v1417 = vshll.u32 %v1320, 16
        %v1419 = vrot.slane %v1417, 5
        %v1420 = vsel %vm1170, %v1415, %v1419
        %v1422 = vshrl.u32 %v1321, 16
        %v1424 = vrot.slane %v1422, 4
        %v1425 = vshll.u32 %v1321, 16
        %v1427 = vrot.slane %v1425, 5
        %v1428 = vor.u32 %v1424, %v1427
        %v1429 = vrot.slane %v1428, 4
        %v1431 = vshll.u32 %v1322, 16
        %v1433 = vrot.slane %v1431, 5
        %v1434 = vsel %vm1170, %v1429, %v1433
        %v1436 = vunpack.c.l.b16 %v1102
        %v1437 = vunpack.c.h.b16 %v1102
        %v1438 = vpack.c.b16 %v1436, %v1436
        %v1439 = vpack.c.b16 %v1437, %v1437
        %v1441 = vshrl.u32 %v1438, 16
        %v1443 = vrot.slane %v1441, 4
        %v1444 = vshll.u32 %v1438, 16
        %v1446 = vrot.slane %v1444, 5
        %v1447 = vor.u32 %v1443, %v1446
        %v1448 = vrot.slane %v1447, 4
        %v1450 = vshll.u32 %v1439, 16
        %v1452 = vrot.slane %v1450, 5
        %v1453 = vsel %vm1170, %v1448, %v1452
        %v1454 = vpack.c.b16 %v1138, %v1136
        %v1455 = vpack.c.b16 %v1142, %v1140
        %v1456 = vpack.c.b16 %v1146, %v1144
        %v1457 = vpack.c.b16 %v1150, %v1148
        %v1470 = vunpack.c.l.b16 %v1103
        %v1471 = vunpack.c.l.b16 %v1104
        %v1472 = vunpack.c.l.b16 %v1105
        %v1473 = vunpack.c.l.b16 %v1106
        %v1474 = vunpack.c.l.b16 %v1107
        %v1475 = vunpack.c.l.b16 %v1108
        %v1476 = vunpack.c.l.b16 %v1109
        %v1477 = vunpack.c.l.b16 %v1110
        %v1478 = vpack.c.b16 %v1471, %v1470
        %v1479 = vpack.c.b16 %v1473, %v1472
        %v1480 = vpack.c.b16 %v1475, %v1474
        %v1481 = vpack.c.b16 %v1477, %v1476
        %v1486 = vunpack.c.l.b16 %v1184
        %v1487 = vunpack.c.l.b16 %v1198
        %v1488 = vunpack.c.l.b16 %v1212
        %v1489 = vunpack.c.l.b16 %v1226
        %v1490 = vunpack.c.l.b16 %v1240
        %v1491 = vunpack.c.l.b16 %v1254
        %v1492 = vunpack.c.l.b16 %v1268
        %v1493 = vunpack.c.l.b16 %v1282
        %v1494 = vpack.c.b16 %v1487, %v1486
        %v1495 = vpack.c.b16 %v1489, %v1488
        %v1496 = vpack.c.b16 %v1491, %v1490
        %v1497 = vpack.c.b16 %v1493, %v1492
        %v1502 = vpack.c.b16 %v1293, %v1291
        %v1503 = vpack.c.b16 %v1297, %v1295
        %v1504 = vpack.c.b16 %v1301, %v1299
        %v1505 = vpack.c.b16 %v1305, %v1303
        %v1518 = vunpack.c.l.b16 %v1120
        %v1519 = vunpack.c.l.b16 %v1121
        %v1520 = vunpack.c.l.b16 %v1122
        %v1521 = vunpack.c.l.b16 %v1123
        %v1522 = vunpack.c.l.b16 %v1124
        %v1523 = vunpack.c.l.b16 %v1125
        %v1524 = vunpack.c.l.b16 %v1126
        %v1525 = vunpack.c.l.b16 %v1127
        %v1526 = vpack.c.b16 %v1519, %v1518
        %v1527 = vpack.c.b16 %v1521, %v1520
        %v1528 = vpack.c.b16 %v1523, %v1522
        %v1529 = vpack.c.b16 %v1525, %v1524
        %v1534 = vunpack.c.l.b16 %v1336
        %v1535 = vunpack.c.l.b16 %v1350
        %v1536 = vunpack.c.l.b16 %v1364
        %v1537 = vunpack.c.l.b16 %v1378
        %v1538 = vunpack.c.l.b16 %v1392
        %v1539 = vunpack.c.l.b16 %v1406
        %v1540 = vunpack.c.l.b16 %v1420
        %v1541 = vunpack.c.l.b16 %v1434
        %v1542 = vpack.c.b16 %v1535, %v1534
        %v1543 = vpack.c.b16 %v1537, %v1536
        %v1544 = vpack.c.b16 %v1539, %v1538
        %v1545 = vpack.c.b16 %v1541, %v1540
        %v1550 = vpack.c.b16 %v1140, %v1138
        %v1551 = vpack.c.b16 %v1144, %v1142
        %v1552 = vpack.c.b16 %v1148, %v1146
        %v1553 = vpack.c.b16 %v1436, %v1150
        %v1559 = vunpack.c.l.b16 %v1111
        %v1560 = vpack.c.b16 %v1472, %v1471
        %v1561 = vpack.c.b16 %v1474, %v1473
        %v1562 = vpack.c.b16 %v1476, %v1475
        %v1563 = vpack.c.b16 %v1559, %v1477
        %v1568 = vunpack.c.l.b16 %v1453
        %v1569 = vpack.c.b16 %v1488, %v1487
        %v1570 = vpack.c.b16 %v1490, %v1489
        %v1571 = vpack.c.b16 %v1492, %v1491
        %v1572 = vpack.c.b16 %v1568, %v1493
        %v1577 = vld [vmem:[%s4] sm:$0xf]
        %v1578 = vld [vmem:[%s4 + $0x4] sm:$0xf]
        %v1579 = vld [vmem:[%s4 + $0x8] sm:$0xf]
        %v1580 = vld [vmem:[%s4 + $0xc] sm:$0xf]
        %v1581 = vld [vmem:[%s4 + $0x10] sm:$0xf]
        %v1582 = vld [vmem:[%s4 + $0x14] sm:$0xf]
        %v1583 = vld [vmem:[%s4 + $0x18] sm:$0xf]
        %v1584 = vld [vmem:[%s4 + $0x1c] sm:$0xf]
        %v1585 = vld [vmem:[%s4 + $0x20] sm:$0xf]
        %v1586 = vld [vmem:[%s4 + $0x24] sm:$0xf]
        %v1587 = vld [vmem:[%s4 + $0x28] sm:$0xf]
        %v1588 = vld [vmem:[%s4 + $0x2c] sm:$0xf]
        %v1589 = vld [vmem:[%s4 + $0x30] sm:$0xf]
        %v1590 = vld [vmem:[%s4 + $0x34] sm:$0xf]
        %v1591 = vld [vmem:[%s4 + $0x38] sm:$0xf]
        %v1592 = vld [vmem:[%s4 + $0x3c] sm:$0xf]
        %v1593 = vld [vmem:[%s4 + $0x40] sm:$0xf]
        %v1594 = vld [vmem:[%s4 + $0x44] sm:$0xf]
        %v1595 = vld [vmem:[%s4 + $0x48] sm:$0xf]
        %v1596 = vld [vmem:[%s4 + $0x4c] sm:$0xf]
        %v1597 = vld [vmem:[%s4 + $0x50] sm:$0xf]
        %v1598 = vld [vmem:[%s4 + $0x54] sm:$0xf]
        %v1599 = vld [vmem:[%s4 + $0x58] sm:$0xf]
        %v1600 = vld [vmem:[%s4 + $0x5c] sm:$0xf]
        %v1601 = vld [vmem:[%s4 + $0x60] sm:$0xf]
        %v1602 = vld [vmem:[%s4 + $0x64] sm:$0xf]
        %v1603 = vld [vmem:[%s4 + $0x68] sm:$0xf]
        %v1604 = vld [vmem:[%s4 + $0x6c] sm:$0xf]
        %v1605 = vld [vmem:[%s4 + $0x70] sm:$0xf]
        %v1606 = vld [vmem:[%s4 + $0x74] sm:$0xf]
        %v1607 = vld [vmem:[%s4 + $0x78] sm:$0xf]
        %v1608 = vld [vmem:[%s4 + $0x7c] sm:$0xf]
        %v1609 = vld [vmem:[%s4 + $0x80] sm:$0xf]
        %v1610 = vld [vmem:[%s4 + $0x84] sm:$0xf]
        %v1611 = vld [vmem:[%s4 + $0x88] sm:$0xf]
        %v1612 = vld [vmem:[%s4 + $0x8c] sm:$0xf]
        %v1613 = vld [vmem:[%s4 + $0x90] sm:$0xf]
        %v1614 = vld [vmem:[%s4 + $0x94] sm:$0xf]
        %v1615 = vld [vmem:[%s4 + $0x98] sm:$0xf]
        %v1616 = vld [vmem:[%s4 + $0x9c] sm:$0xf]
        %v1617 = vld [vmem:[%s4 + $0xa0] sm:$0xf]
        %v1618 = vld [vmem:[%s4 + $0xa4] sm:$0xf]
        %v1619 = vld [vmem:[%s4 + $0xa8] sm:$0xf]
        %v1620 = vld [vmem:[%s4 + $0xac] sm:$0xf]
        %v1621 = vld [vmem:[%s4 + $0xb0] sm:$0xf]
        %v1622 = vld [vmem:[%s4 + $0xb4] sm:$0xf]
        %v1623 = vld [vmem:[%s4 + $0xb8] sm:$0xf]
        %v1624 = vld [vmem:[%s4 + $0xbc] sm:$0xf]
        %v1625 = vld [vmem:[%s4 + $0xc0] sm:$0xf]
        %v1626 = vld [vmem:[%s4 + $0xc4] sm:$0xf]
        %v1627 = vld [vmem:[%s4 + $0xc8] sm:$0xf]
        %v1628 = vld [vmem:[%s4 + $0xcc] sm:$0xf]
        %v1629 = vld [vmem:[%s4 + $0xd0] sm:$0xf]
        %v1630 = vld [vmem:[%s4 + $0xd4] sm:$0xf]
        %v1631 = vld [vmem:[%s4 + $0xd8] sm:$0xf]
        %v1632 = vld [vmem:[%s4 + $0xdc] sm:$0xf]
        %v1633 = vld [vmem:[%s4 + $0xe0] sm:$0xf]
        %v1634 = vld [vmem:[%s4 + $0xe4] sm:$0xf]
        %v1635 = vld [vmem:[%s4 + $0xe8] sm:$0xf]
        %v1636 = vld [vmem:[%s4 + $0xec] sm:$0xf]
        %v1637 = vld [vmem:[%s4 + $0xf0] sm:$0xf]
        %v1638 = vld [vmem:[%s4 + $0xf4] sm:$0xf]
        %v1639 = vld [vmem:[%s4 + $0xf8] sm:$0xf]
        %v1640 = vld [vmem:[%s4 + $0xfc] sm:$0xf]
        %v1641 = vld [vmem:[%s4 + $0x100] sm:$0xf]
        %v1642 = vld [vmem:[%s4 + $0x104] sm:$0xf]
        %v1643 = vld [vmem:[%s4 + $0x108] sm:$0xf]
        %v1644 = vld [vmem:[%s4 + $0x10c] sm:$0xf]
        %v1645 = vld [vmem:[%s4 + $0x110] sm:$0xf]
        %v1646 = vld [vmem:[%s4 + $0x114] sm:$0xf]
        %v1647 = vld [vmem:[%s4 + $0x118] sm:$0xf]
        %v1648 = vld [vmem:[%s4 + $0x11c] sm:$0xf]
        %v1649 = vld [vmem:[%s4 + $0x120] sm:$0xf]
        %v1650 = vld [vmem:[%s4 + $0x124] sm:$0xf]
        %v1651 = vld [vmem:[%s4 + $0x128] sm:$0xf]
        %v1652 = vld [vmem:[%s4 + $0x12c] sm:$0xf]
        %v1653 = vld [vmem:[%s4 + $0x130] sm:$0xf]
        %v1654 = vld [vmem:[%s4 + $0x134] sm:$0xf]
        %v1655 = vld [vmem:[%s4 + $0x138] sm:$0xf]
        %v1656 = vld [vmem:[%s4 + $0x13c] sm:$0xf]
        %v1657 = vld [vmem:[%s4 + $0x140] sm:$0xf]
        %v1658 = vld [vmem:[%s4 + $0x144] sm:$0xf]
        %v1659 = vld [vmem:[%s4 + $0x148] sm:$0xf]
        %v1660 = vld [vmem:[%s4 + $0x14c] sm:$0xf]
        %v1661 = vld [vmem:[%s4 + $0x150] sm:$0xf]
        %v1662 = vld [vmem:[%s4 + $0x154] sm:$0xf]
        %v1663 = vld [vmem:[%s4 + $0x158] sm:$0xf]
        %v1664 = vld [vmem:[%s4 + $0x15c] sm:$0xf]
        %v1665 = vld [vmem:[%s4 + $0x160] sm:$0xf]
        %v1666 = vld [vmem:[%s4 + $0x164] sm:$0xf]
        %v1667 = vld [vmem:[%s4 + $0x168] sm:$0xf]
        %v1668 = vld [vmem:[%s4 + $0x16c] sm:$0xf]
        %v1669 = vld [vmem:[%s4 + $0x170] sm:$0xf]
        %v1670 = vld [vmem:[%s4 + $0x174] sm:$0xf]
        %v1671 = vld [vmem:[%s4 + $0x178] sm:$0xf]
        %v1672 = vld [vmem:[%s4 + $0x17c] sm:$0xf]
        %v1673 = vld [vmem:[%s4 + $0x180] sm:$0xf]
        %v1674 = vld [vmem:[%s4 + $0x184] sm:$0xf]
        %v1675 = vld [vmem:[%s4 + $0x188] sm:$0xf]
        %v1676 = vld [vmem:[%s4 + $0x18c] sm:$0xf]
        %v1677 = vld [vmem:[%s4 + $0x190] sm:$0xf]
        %v1678 = vld [vmem:[%s4 + $0x194] sm:$0xf]
        %v1679 = vld [vmem:[%s4 + $0x198] sm:$0xf]
        %v1680 = vld [vmem:[%s4 + $0x19c] sm:$0xf]
        %v1681 = vld [vmem:[%s4 + $0x1a0] sm:$0xf]
        %v1682 = vld [vmem:[%s4 + $0x1a4] sm:$0xf]
        %v1683 = vld [vmem:[%s4 + $0x1a8] sm:$0xf]
        %v1684 = vld [vmem:[%s4 + $0x1ac] sm:$0xf]
        %v1685 = vld [vmem:[%s4 + $0x1b0] sm:$0xf]
        %v1686 = vld [vmem:[%s4 + $0x1b4] sm:$0xf]
        %v1687 = vld [vmem:[%s4 + $0x1b8] sm:$0xf]
        %v1688 = vld [vmem:[%s4 + $0x1bc] sm:$0xf]
        %v1689 = vld [vmem:[%s4 + $0x1c0] sm:$0xf]
        %v1690 = vld [vmem:[%s4 + $0x1c4] sm:$0xf]
        %v1691 = vld [vmem:[%s4 + $0x1c8] sm:$0xf]
        %v1692 = vld [vmem:[%s4 + $0x1cc] sm:$0xf]
        %v1693 = vld [vmem:[%s4 + $0x1d0] sm:$0xf]
        %v1694 = vld [vmem:[%s4 + $0x1d4] sm:$0xf]
        %v1695 = vld [vmem:[%s4 + $0x1d8] sm:$0xf]
        %v1696 = vld [vmem:[%s4 + $0x1dc] sm:$0xf]
        %v1697 = vld [vmem:[%s4 + $0x1e0] sm:$0xf]
        %v1698 = vld [vmem:[%s4 + $0x1e4] sm:$0xf]
        %v1699 = vld [vmem:[%s4 + $0x1e8] sm:$0xf]
        %v1700 = vld [vmem:[%s4 + $0x1ec] sm:$0xf]
        %v1701 = vld [vmem:[%s4 + $0x1f0] sm:$0xf]
        %v1702 = vld [vmem:[%s4 + $0x1f4] sm:$0xf]
        %v1703 = vld [vmem:[%s4 + $0x1f8] sm:$0xf]
        %v1704 = vld [vmem:[%s4 + $0x1fc] sm:$0xf]
        %v1705 = vld [vmem:[%s4 + $0x200] sm:$0xf]
        %v1706 = vld [vmem:[%s4 + $0x204] sm:$0xf]
        %v1707 = vld [vmem:[%s4 + $0x208] sm:$0xf]
        %v1708 = vld [vmem:[%s4 + $0x20c] sm:$0xf]
        %v1709 = vld [vmem:[%s4 + $0x210] sm:$0xf]
        %v1710 = vld [vmem:[%s4 + $0x214] sm:$0xf]
        %v1711 = vld [vmem:[%s4 + $0x218] sm:$0xf]
        %v1712 = vld [vmem:[%s4 + $0x21c] sm:$0xf]
        %v1713 = vld [vmem:[%s4 + $0x220] sm:$0xf]
        %v1714 = vld [vmem:[%s4 + $0x224] sm:$0xf]
        %v1715 = vld [vmem:[%s4 + $0x228] sm:$0xf]
        %v1716 = vld [vmem:[%s4 + $0x22c] sm:$0xf]
        %v1717 = vld [vmem:[%s4 + $0x230] sm:$0xf]
        %v1718 = vld [vmem:[%s4 + $0x234] sm:$0xf]
        %v1719 = vld [vmem:[%s4 + $0x238] sm:$0xf]
        %v1720 = vld [vmem:[%s4 + $0x23c] sm:$0xf]
        %v1865 = vunpack.c.l.b16 %v1577
        %v1866 = vunpack.c.l.b16 %v1578
        %v1867 = vunpack.c.l.b16 %v1579
        %v1868 = vunpack.c.l.b16 %v1580
        %v1869 = vunpack.c.l.b16 %v1581
        %v1870 = vunpack.c.l.b16 %v1582
        %v1871 = vunpack.c.l.b16 %v1583
        %v1872 = vunpack.c.l.b16 %v1584
        %v1873 = vunpack.c.l.b16 %v1585
        %v1874 = vunpack.c.l.b16 %v1586
        %v1875 = vunpack.c.l.b16 %v1587
        %v1876 = vunpack.c.l.b16 %v1588
        %v1877 = vunpack.c.l.b16 %v1589
        %v1878 = vunpack.c.l.b16 %v1590
        %v1879 = vunpack.c.l.b16 %v1591
        %v1880 = vunpack.c.l.b16 %v1592
        %v1881 = vunpack.c.l.b16 %v1593
        %v1882 = vunpack.c.l.b16 %v1594
        %v1883 = vunpack.c.l.b16 %v1595
        %v1884 = vunpack.c.l.b16 %v1596
        %v1885 = vunpack.c.l.b16 %v1597
        %v1886 = vunpack.c.l.b16 %v1598
        %v1887 = vunpack.c.l.b16 %v1599
        %v1888 = vunpack.c.l.b16 %v1600
        %v1889 = vunpack.c.l.b16 %v1601
        %v1890 = vunpack.c.l.b16 %v1602
        %v1891 = vunpack.c.l.b16 %v1603
        %v1892 = vunpack.c.l.b16 %v1604
        %v1893 = vunpack.c.l.b16 %v1605
        %v1894 = vunpack.c.l.b16 %v1606
        %v1895 = vunpack.c.l.b16 %v1607
        %v1896 = vunpack.c.l.b16 %v1608
        %v1897 = vunpack.c.l.b16 %v1609
        %v1898 = vunpack.c.l.b16 %v1610
        %v1899 = vunpack.c.l.b16 %v1611
        %v1900 = vunpack.c.l.b16 %v1612
        %v1901 = vunpack.c.l.b16 %v1613
        %v1902 = vunpack.c.l.b16 %v1614
        %v1903 = vunpack.c.l.b16 %v1615
        %v1904 = vunpack.c.l.b16 %v1616
        %v1905 = vunpack.c.l.b16 %v1617
        %v1906 = vunpack.c.l.b16 %v1618
        %v1907 = vunpack.c.l.b16 %v1619
        %v1908 = vunpack.c.l.b16 %v1620
        %v1909 = vunpack.c.l.b16 %v1621
        %v1910 = vunpack.c.l.b16 %v1622
        %v1911 = vunpack.c.l.b16 %v1623
        %v1912 = vunpack.c.l.b16 %v1624
        %v1913 = vunpack.c.l.b16 %v1625
        %v1914 = vunpack.c.l.b16 %v1626
        %v1915 = vunpack.c.l.b16 %v1627
        %v1916 = vunpack.c.l.b16 %v1628
        %v1917 = vunpack.c.l.b16 %v1629
        %v1918 = vunpack.c.l.b16 %v1630
        %v1919 = vunpack.c.l.b16 %v1631
        %v1920 = vunpack.c.l.b16 %v1632
        %v1921 = vunpack.c.l.b16 %v1633
        %v1922 = vunpack.c.l.b16 %v1634
        %v1923 = vunpack.c.l.b16 %v1635
        %v1924 = vunpack.c.l.b16 %v1636
        %v1925 = vunpack.c.l.b16 %v1637
        %v1926 = vunpack.c.l.b16 %v1638
        %v1927 = vunpack.c.l.b16 %v1639
        %v1928 = vunpack.c.l.b16 %v1640
        %v1929 = vunpack.c.l.b16 %v1641
        %v1930 = vunpack.c.l.b16 %v1642
        %v1931 = vunpack.c.l.b16 %v1643
        %v1932 = vunpack.c.l.b16 %v1644
        %v1933 = vunpack.c.l.b16 %v1645
        %v1934 = vunpack.c.l.b16 %v1646
        %v1935 = vunpack.c.l.b16 %v1647
        %v1936 = vunpack.c.l.b16 %v1648
        %v1937 = vunpack.c.l.b16 %v1649
        %v1938 = vunpack.c.l.b16 %v1650
        %v1939 = vunpack.c.l.b16 %v1651
        %v1940 = vunpack.c.l.b16 %v1652
        %v1941 = vunpack.c.l.b16 %v1653
        %v1942 = vunpack.c.l.b16 %v1654
        %v1943 = vunpack.c.l.b16 %v1655
        %v1944 = vunpack.c.l.b16 %v1656
        %v1945 = vunpack.c.l.b16 %v1657
        %v1946 = vunpack.c.l.b16 %v1658
        %v1947 = vunpack.c.l.b16 %v1659
        %v1948 = vunpack.c.l.b16 %v1660
        %v1949 = vunpack.c.l.b16 %v1661
        %v1950 = vunpack.c.l.b16 %v1662
        %v1951 = vunpack.c.l.b16 %v1663
        %v1952 = vunpack.c.l.b16 %v1664
        %v1953 = vunpack.c.l.b16 %v1665
        %v1954 = vunpack.c.l.b16 %v1666
        %v1955 = vunpack.c.l.b16 %v1667
        %v1956 = vunpack.c.l.b16 %v1668
        %v1957 = vunpack.c.l.b16 %v1669
        %v1958 = vunpack.c.l.b16 %v1670
        %v1959 = vunpack.c.l.b16 %v1671
        %v1960 = vunpack.c.l.b16 %v1672
        %v1961 = vunpack.c.l.b16 %v1673
        %v1962 = vunpack.c.l.b16 %v1674
        %v1963 = vunpack.c.l.b16 %v1675
        %v1964 = vunpack.c.l.b16 %v1676
        %v1965 = vunpack.c.l.b16 %v1677
        %v1966 = vunpack.c.l.b16 %v1678
        %v1967 = vunpack.c.l.b16 %v1679
        %v1968 = vunpack.c.l.b16 %v1680
        %v1969 = vunpack.c.l.b16 %v1681
        %v1970 = vunpack.c.l.b16 %v1682
        %v1971 = vunpack.c.l.b16 %v1683
        %v1972 = vunpack.c.l.b16 %v1684
        %v1973 = vunpack.c.l.b16 %v1685
        %v1974 = vunpack.c.l.b16 %v1686
        %v1975 = vunpack.c.l.b16 %v1687
        %v1976 = vunpack.c.l.b16 %v1688
        %v1977 = vunpack.c.l.b16 %v1689
        %v1978 = vunpack.c.l.b16 %v1690
        %v1979 = vunpack.c.l.b16 %v1691
        %v1980 = vunpack.c.l.b16 %v1692
        %v1981 = vunpack.c.l.b16 %v1693
        %v1982 = vunpack.c.l.b16 %v1694
        %v1983 = vunpack.c.l.b16 %v1695
        %v1984 = vunpack.c.l.b16 %v1696
        %v1985 = vunpack.c.l.b16 %v1697
        %v1986 = vunpack.c.l.b16 %v1698
        %v1987 = vunpack.c.l.b16 %v1699
        %v1988 = vunpack.c.l.b16 %v1700
        %v1989 = vunpack.c.l.b16 %v1701
        %v1990 = vunpack.c.l.b16 %v1702
        %v1991 = vunpack.c.l.b16 %v1703
        %v1992 = vunpack.c.l.b16 %v1704
        %v1993 = vunpack.c.l.b16 %v1705
        %v1994 = vunpack.c.l.b16 %v1706
        %v1995 = vunpack.c.l.b16 %v1707
        %v1996 = vunpack.c.l.b16 %v1708
        %v1997 = vunpack.c.l.b16 %v1709
        %v1998 = vunpack.c.l.b16 %v1710
        %v1999 = vunpack.c.l.b16 %v1711
        %v2000 = vunpack.c.l.b16 %v1712
        %v2001 = vunpack.c.l.b16 %v1713
        %v2002 = vunpack.c.l.b16 %v1714
        %v2003 = vunpack.c.l.b16 %v1715
        %v2004 = vunpack.c.l.b16 %v1716
        %v2005 = vunpack.c.l.b16 %v1717
        %v2006 = vunpack.c.l.b16 %v1718
        %v2007 = vunpack.c.l.b16 %v1719
        %v2008 = vunpack.c.l.b16 %v1720
        %v2009 = vpack.c.b16 %v1866, %v1865
        %v2010 = vpack.c.b16 %v1868, %v1867
        %v2011 = vpack.c.b16 %v1870, %v1869
        %v2012 = vpack.c.b16 %v1872, %v1871
        %v2013 = vpack.c.b16 %v1874, %v1873
        %v2014 = vpack.c.b16 %v1876, %v1875
        %v2015 = vpack.c.b16 %v1878, %v1877
        %v2016 = vpack.c.b16 %v1880, %v1879
        %v2017 = vpack.c.b16 %v1882, %v1881
        %v2018 = vpack.c.b16 %v1884, %v1883
        %v2019 = vpack.c.b16 %v1886, %v1885
        %v2020 = vpack.c.b16 %v1888, %v1887
        %v2021 = vpack.c.b16 %v1890, %v1889
        %v2022 = vpack.c.b16 %v1892, %v1891
        %v2023 = vpack.c.b16 %v1894, %v1893
        %v2024 = vpack.c.b16 %v1896, %v1895
        %v2025 = vpack.c.b16 %v1898, %v1897
        %v2026 = vpack.c.b16 %v1900, %v1899
        %v2027 = vpack.c.b16 %v1902, %v1901
        %v2028 = vpack.c.b16 %v1904, %v1903
        %v2029 = vpack.c.b16 %v1906, %v1905
        %v2030 = vpack.c.b16 %v1908, %v1907
        %v2031 = vpack.c.b16 %v1910, %v1909
        %v2032 = vpack.c.b16 %v1912, %v1911
        %v2033 = vpack.c.b16 %v1914, %v1913
        %v2034 = vpack.c.b16 %v1916, %v1915
        %v2035 = vpack.c.b16 %v1918, %v1917
        %v2036 = vpack.c.b16 %v1920, %v1919
        %v2037 = vpack.c.b16 %v1922, %v1921
        %v2038 = vpack.c.b16 %v1924, %v1923
        %v2039 = vpack.c.b16 %v1926, %v1925
        %v2040 = vpack.c.b16 %v1928, %v1927
        %v2041 = vpack.c.b16 %v1930, %v1929
        %v2042 = vpack.c.b16 %v1932, %v1931
        %v2043 = vpack.c.b16 %v1934, %v1933
        %v2044 = vpack.c.b16 %v1936, %v1935
        %v2045 = vpack.c.b16 %v1938, %v1937
        %v2046 = vpack.c.b16 %v1940, %v1939
        %v2047 = vpack.c.b16 %v1942, %v1941
        %v2048 = vpack.c.b16 %v1944, %v1943
        %v2049 = vpack.c.b16 %v1946, %v1945
        %v2050 = vpack.c.b16 %v1948, %v1947
        %v2051 = vpack.c.b16 %v1950, %v1949
        %v2052 = vpack.c.b16 %v1952, %v1951
        %v2053 = vpack.c.b16 %v1954, %v1953
        %v2054 = vpack.c.b16 %v1956, %v1955
        %v2055 = vpack.c.b16 %v1958, %v1957
        %v2056 = vpack.c.b16 %v1960, %v1959
        %v2057 = vpack.c.b16 %v1962, %v1961
        %v2058 = vpack.c.b16 %v1964, %v1963
        %v2059 = vpack.c.b16 %v1966, %v1965
        %v2060 = vpack.c.b16 %v1968, %v1967
        %v2061 = vpack.c.b16 %v1970, %v1969
        %v2062 = vpack.c.b16 %v1972, %v1971
        %v2063 = vpack.c.b16 %v1974, %v1973
        %v2064 = vpack.c.b16 %v1976, %v1975
        %v2065 = vpack.c.b16 %v1978, %v1977
        %v2066 = vpack.c.b16 %v1980, %v1979
        %v2067 = vpack.c.b16 %v1982, %v1981
        %v2068 = vpack.c.b16 %v1984, %v1983
        %v2069 = vpack.c.b16 %v1986, %v1985
        %v2070 = vpack.c.b16 %v1988, %v1987
        %v2071 = vpack.c.b16 %v1990, %v1989
        %v2072 = vpack.c.b16 %v1992, %v1991
        %v2073 = vpack.c.b16 %v1994, %v1993
        %v2074 = vpack.c.b16 %v1996, %v1995
        %v2075 = vpack.c.b16 %v1998, %v1997
        %v2076 = vpack.c.b16 %v2000, %v1999
        %v2077 = vpack.c.b16 %v2002, %v2001
        %v2078 = vpack.c.b16 %v2004, %v2003
        %v2079 = vpack.c.b16 %v2006, %v2005
        %v2080 = vpack.c.b16 %v2008, %v2007
        %2153 = vmatprep.subr.bf16.mxu0 0
        %2154 = vmatpush1.bf16.msra.mxu0 %v2009
        %2155 = vmatprep.subr.bf16.mxu0 0
        %2156 = vmatpush1.bf16.msra.mxu0 %v2010
        %2157 = vmatprep.subr.bf16.mxu0 0
        %2158 = vmatpush1.bf16.msra.mxu0 %v2011
        %2159 = vmatprep.subr.bf16.mxu0 0
        %2160 = vmatpush1.bf16.msra.mxu0 %v2012
        %2161 = vmatprep.subr.bf16.mxu0 0
        %2162 = vmatpush1.bf16.msra.mxu0 %v2013
        %2163 = vmatprep.subr.bf16.mxu0 0
        %2164 = vmatpush1.bf16.msra.mxu0 %v2014
        %2165 = vmatprep.subr.bf16.mxu0 0
        %2166 = vmatpush1.bf16.msra.mxu0 %v2015
        %2167 = vmatprep.subr.bf16.mxu0 0
        %2168 = vmatpush1.bf16.msra.mxu0 %v2016
        %2169 = vmatprep.subr.bf16.mxu0 0
        %2170 = vmatpush1.bf16.msra.mxu0 %v2017
        %2171 = vmatprep.subr.bf16.mxu0 0
        %2172 = vmatpush1.bf16.msra.mxu0 %v2018
        %2173 = vmatprep.subr.bf16.mxu0 0
        %2174 = vmatpush1.bf16.msra.mxu0 %v2019
        %2175 = vmatprep.subr.bf16.mxu0 0
        %2176 = vmatpush1.bf16.msra.mxu0 %v2020
        %2177 = vmatprep.subr.bf16.mxu0 0
        %2178 = vmatpush1.bf16.msra.mxu0 %v2021
        %2179 = vmatprep.subr.bf16.mxu0 0
        %2180 = vmatpush1.bf16.msra.mxu0 %v2022
        %2181 = vmatprep.subr.bf16.mxu0 0
        %2182 = vmatpush1.bf16.msra.mxu0 %v2023
        %2183 = vmatprep.subr.bf16.mxu0 0
        %2184 = vmatpush1.bf16.msra.mxu0 %v2024
        %2185 = vmatprep.mubr.bf16.mxu0 %v1478
        %2186 = vmatmul.mubr.bf16.gmra.mrb[0].mxu0 %v1454
        %v2187 = vpop.f32.mrb[0].mxu0
        %v2188 = vadd.f32 0.0, %v2187
        %v2189 = vpop.f32.mrb[0].mxu0
        %v2190 = vpop.f32.mrb[0].mxu0
        %v2191 = vadd.f32 0.0, %v2190
        %v2192 = vpop.f32.mrb[0].mxu0
        %2193 = vmatprep.mubr.bf16.mxu0 %v1479
        %2194 = vmatmul.mubr.bf16.gmra.mrb[0].mxu0 %v1455
        %v2195 = vpop.f32.mrb[0].mxu0
        %v2196 = vadd.f32 0.0, %v2195
        %v2197 = vpop.f32.mrb[0].mxu0
        %v2198 = vpop.f32.mrb[0].mxu0
        %v2199 = vadd.f32 0.0, %v2198
        %v2200 = vpop.f32.mrb[0].mxu0
        %2201 = vmatprep.mubr.bf16.mxu0 %v1480
        %2202 = vmatmul.mubr.bf16.gmra.mrb[0].mxu0 %v1456
        %v2203 = vpop.f32.mrb[0].mxu0
        %v2204 = vadd.f32 0.0, %v2203
        %v2205 = vpop.f32.mrb[0].mxu0
        %v2206 = vpop.f32.mrb[0].mxu0
        %v2207 = vadd.f32 0.0, %v2206
        %v2208 = vpop.f32.mrb[0].mxu0
        %2209 = vmatprep.mubr.bf16.mxu0 %v1481
        %2210 = vmatmul.mubr.bf16.gmra.mrb[0].mxu0 %v1457
        %v2211 = vpop.f32.mrb[0].mxu0
        %v2212 = vadd.f32 0.0, %v2211
        %v2213 = vpop.f32.mrb[0].mxu0
        %v2214 = vpop.f32.mrb[0].mxu0
        %v2215 = vadd.f32 0.0, %v2214
        %v2216 = vpop.f32.mrb[0].mxu0
        %2217 = vdwg.mxu0
        %2218 = vmatprep.subr.bf16.mxu0 0
        %2219 = vmatpush1.bf16.msra.mxu0 %v2025
        %2220 = vmatprep.subr.bf16.mxu0 0
        %2221 = vmatpush1.bf16.msra.mxu0 %v2026
        %2222 = vmatprep.subr.bf16.mxu0 0
        %2223 = vmatpush1.bf16.msra.mxu0 %v2027
        %2224 = vmatprep.subr.bf16.mxu0 0
        %2225 = vmatpush1.bf16.msra.mxu0 %v2028
        %2226 = vmatprep.subr.bf16.mxu0 0
        %2227 = vmatpush1.bf16.msra.mxu0 %v2029
        %2228 = vmatprep.subr.bf16.mxu0 0
        %2229 = vmatpush1.bf16.msra.mxu0 %v2030
        %2230 = vmatprep.subr.bf16.mxu0 0
        %2231 = vmatpush1.bf16.msra.mxu0 %v2031
        %2232 = vmatprep.subr.bf16.mxu0 0
        %2233 = vmatpush1.bf16.msra.mxu0 %v2032
        %2234 = vmatprep.subr.bf16.mxu0 0
        %2235 = vmatpush1.bf16.msra.mxu0 %v2033
        %2236 = vmatprep.subr.bf16.mxu0 0
        %2237 = vmatpush1.bf16.msra.mxu0 %v2034
        %2238 = vmatprep.subr.bf16.mxu0 0
        %2239 = vmatpush1.bf16.msra.mxu0 %v2035
        %2240 = vmatprep.subr.bf16.mxu0 0
        %2241 = vmatpush1.bf16.msra.mxu0 %v2036
        %2242 = vmatprep.subr.bf16.mxu0 0
        %2243 = vmatpush1.bf16.msra.mxu0 %v2037
        %2244 = vmatprep.subr.bf16.mxu0 0
        %2245 = vmatpush1.bf16.msra.mxu0 %v2038
        %2246 = vmatprep.subr.bf16.mxu0 0
        %2247 = vmatpush1.bf16.msra.mxu0 %v2039
        %2248 = vmatprep.subr.bf16.mxu0 0
        %2249 = vmatpush1.bf16.msra.mxu0 %v2040
        %2250 = vmatprep.mubr.bf16.mxu0 %v1502
        %2251 = vmatmul.mubr.bf16.gmra.mrb[0].mxu0 %v1494
        %v2252 = vpop.f32.mrb[0].mxu0
        %v2253 = vadd.f32 %v2188, %v2252
        %v2254 = vpop.f32.mrb[0].mxu0
        %v2255 = vpop.f32.mrb[0].mxu0
        %v2256 = vadd.f32 %v2191, %v2255
        %v2257 = vpop.f32.mrb[0].mxu0
        %2258 = vmatprep.mubr.bf16.mxu0 %v1503
        %2259 = vmatmul.mubr.bf16.gmra.mrb[0].mxu0 %v1495
        %v2260 = vpop.f32.mrb[0].mxu0
        %v2261 = vadd.f32 %v2196, %v2260
        %v2262 = vpop.f32.mrb[0].mxu0
        %v2263 = vpop.f32.mrb[0].mxu0
        %v2264 = vadd.f32 %v2199, %v2263
        %v2265 = vpop.f32.mrb[0].mxu0
        %2266 = vmatprep.mubr.bf16.mxu0 %v1504
        %2267 = vmatmul.mubr.bf16.gmra.mrb[0].mxu0 %v1496
        %v2268 = vpop.f32.mrb[0].mxu0
        %v2269 = vadd.f32 %v2204, %v2268
        %v2270 = vpop.f32.mrb[0].mxu0
        %v2271 = vpop.f32.mrb[0].mxu0
        %v2272 = vadd.f32 %v2207, %v2271
        %v2273 = vpop.f32.mrb[0].mxu0
        %2274 = vmatprep.mubr.bf16.mxu0 %v1505
        %2275 = vmatmul.mubr.bf16.gmra.mrb[0].mxu0 %v1497
        %v2276 = vpop.f32.mrb[0].mxu0
        %v2277 = vadd.f32 %v2212, %v2276
        %v2278 = vpop.f32.mrb[0].mxu0
        %v2279 = vpop.f32.mrb[0].mxu0
        %v2280 = vadd.f32 %v2215, %v2279
        %v2281 = vpop.f32.mrb[0].mxu0
        %2282 = vdwg.mxu0
        %2283 = vmatprep.subr.bf16.mxu0 0
        %2284 = vmatpush1.bf16.msra.mxu0 %v2041
        %2285 = vmatprep.subr.bf16.mxu0 0
        %2286 = vmatpush1.bf16.msra.mxu0 %v2042
        %2287 = vmatprep.subr.bf16.mxu0 0
        %2288 = vmatpush1.bf16.msra.mxu0 %v2043
        %2289 = vmatprep.subr.bf16.mxu0 0
        %2290 = vmatpush1.bf16.msra.mxu0 %v2044
        %2291 = vmatprep.subr.bf16.mxu0 0
        %2292 = vmatpush1.bf16.msra.mxu0 %v2045
        %2293 = vmatprep.subr.bf16.mxu0 0
        %2294 = vmatpush1.bf16.msra.mxu0 %v2046
        %2295 = vmatprep.subr.bf16.mxu0 0
        %2296 = vmatpush1.bf16.msra.mxu0 %v2047
        %2297 = vmatprep.subr.bf16.mxu0 0
        %2298 = vmatpush1.bf16.msra.mxu0 %v2048
        %2299 = vmatprep.subr.bf16.mxu0 0
        %2300 = vmatpush1.bf16.msra.mxu0 %v2049
        %2301 = vmatprep.subr.bf16.mxu0 0
        %2302 = vmatpush1.bf16.msra.mxu0 %v2050
        %2303 = vmatprep.subr.bf16.mxu0 0
        %2304 = vmatpush1.bf16.msra.mxu0 %v2051
        %2305 = vmatprep.subr.bf16.mxu0 0
        %2306 = vmatpush1.bf16.msra.mxu0 %v2052
        %2307 = vmatprep.subr.bf16.mxu0 0
        %2308 = vmatpush1.bf16.msra.mxu0 %v2053
        %2309 = vmatprep.subr.bf16.mxu0 0
        %2310 = vmatpush1.bf16.msra.mxu0 %v2054
        %2311 = vmatprep.subr.bf16.mxu0 0
        %2312 = vmatpush1.bf16.msra.mxu0 %v2055
        %2313 = vmatprep.subr.bf16.mxu0 0
        %2314 = vmatpush1.bf16.msra.mxu0 %v2056
        %2315 = vmatprep.mubr.bf16.mxu0 %v1542
        %2316 = vmatmul.mubr.bf16.gmra.mrb[0].mxu0 %v1526
        %v2317 = vpop.f32.mrb[0].mxu0
        %v2318 = vadd.f32 %v2253, %v2317
        %v2319 = vpop.f32.mrb[0].mxu0
        %v2320 = vpop.f32.mrb[0].mxu0
        %v2321 = vadd.f32 %v2256, %v2320
        %v2322 = vpop.f32.mrb[0].mxu0
        %2323 = vmatprep.mubr.bf16.mxu0 %v1543
        %2324 = vmatmul.mubr.bf16.gmra.mrb[0].mxu0 %v1527
        %v2325 = vpop.f32.mrb[0].mxu0
        %v2326 = vadd.f32 %v2261, %v2325
        %v2327 = vpop.f32.mrb[0].mxu0
        %v2328 = vpop.f32.mrb[0].mxu0
        %v2329 = vadd.f32 %v2264, %v2328
        %v2330 = vpop.f32.mrb[0].mxu0
        %2331 = vmatprep.mubr.bf16.mxu0 %v1544
        %2332 = vmatmul.mubr.bf16.gmra.mrb[0].mxu0 %v1528
        %v2333 = vpop.f32.mrb[0].mxu0
        %v2334 = vadd.f32 %v2269, %v2333
        %v2335 = vpop.f32.mrb[0].mxu0
        %v2336 = vpop.f32.mrb[0].mxu0
        %v2337 = vadd.f32 %v2272, %v2336
        %v2338 = vpop.f32.mrb[0].mxu0
        %2339 = vmatprep.mubr.bf16.mxu0 %v1545
        %2340 = vmatmul.mubr.bf16.gmra.mrb[0].mxu0 %v1529
        %v2341 = vpop.f32.mrb[0].mxu0
        %v2342 = vadd.f32 %v2277, %v2341
        %v2343 = vpop.f32.mrb[0].mxu0
        %v2344 = vpop.f32.mrb[0].mxu0
        %v2345 = vadd.f32 %v2280, %v2344
        %v2346 = vpop.f32.mrb[0].mxu0
        %2347 = vdwg.mxu0
        %2348 = vmatprep.subr.bf16.mxu0 0
        %2349 = vmatpush1.bf16.msra.mxu0 %v2057
        %2350 = vmatprep.subr.bf16.mxu0 0
        %2351 = vmatpush1.bf16.msra.mxu0 %v2058
        %2352 = vmatprep.subr.bf16.mxu0 0
        %2353 = vmatpush1.bf16.msra.mxu0 %v2059
        %2354 = vmatprep.subr.bf16.mxu0 0
        %2355 = vmatpush1.bf16.msra.mxu0 %v2060
        %2356 = vmatprep.subr.bf16.mxu0 0
        %2357 = vmatpush1.bf16.msra.mxu0 %v2061
        %2358 = vmatprep.subr.bf16.mxu0 0
        %2359 = vmatpush1.bf16.msra.mxu0 %v2062
        %2360 = vmatprep.subr.bf16.mxu0 0
        %2361 = vmatpush1.bf16.msra.mxu0 %v2063
        %2362 = vmatprep.subr.bf16.mxu0 0
        %2363 = vmatpush1.bf16.msra.mxu0 %v2064
        %2364 = vmatprep.subr.bf16.mxu0 0
        %2365 = vmatpush1.bf16.msra.mxu0 %v2065
        %2366 = vmatprep.subr.bf16.mxu0 0
        %2367 = vmatpush1.bf16.msra.mxu0 %v2066
        %2368 = vmatprep.subr.bf16.mxu0 0
        %2369 = vmatpush1.bf16.msra.mxu0 %v2067
        %2370 = vmatprep.subr.bf16.mxu0 0
        %2371 = vmatpush1.bf16.msra.mxu0 %v2068
        %2372 = vmatprep.subr.bf16.mxu0 0
        %2373 = vmatpush1.bf16.msra.mxu0 %v2069
        %2374 = vmatprep.subr.bf16.mxu0 0
        %2375 = vmatpush1.bf16.msra.mxu0 %v2070
        %2376 = vmatprep.subr.bf16.mxu0 0
        %2377 = vmatpush1.bf16.msra.mxu0 %v2071
        %2378 = vmatprep.subr.bf16.mxu0 0
        %2379 = vmatpush1.bf16.msra.mxu0 %v2072
        %2380 = vmatprep.mubr.bf16.mxu0 %v1560
        %2381 = vmatmul.mubr.bf16.gmra.mrb[0].mxu0 %v1550
        %v2382 = vpop.f32.mrb[0].mxu0
        %v2383 = vadd.f32 %v2318, %v2382
        %v2384 = vpop.f32.mrb[0].mxu0
        %v2385 = vpop.f32.mrb[0].mxu0
        %v2386 = vadd.f32 %v2321, %v2385
        %v2387 = vpop.f32.mrb[0].mxu0
        %2388 = vmatprep.mubr.bf16.mxu0 %v1561
        %2389 = vmatmul.mubr.bf16.gmra.mrb[0].mxu0 %v1551
        %v2390 = vpop.f32.mrb[0].mxu0
        %v2391 = vadd.f32 %v2326, %v2390
        %v2392 = vpop.f32.mrb[0].mxu0
        %v2393 = vpop.f32.mrb[0].mxu0
        %v2394 = vadd.f32 %v2329, %v2393
        %v2395 = vpop.f32.mrb[0].mxu0
        %2396 = vmatprep.mubr.bf16.mxu0 %v1562
        %2397 = vmatmul.mubr.bf16.gmra.mrb[0].mxu0 %v1552
        %v2398 = vpop.f32.mrb[0].mxu0
        %v2399 = vadd.f32 %v2334, %v2398
        %v2400 = vpop.f32.mrb[0].mxu0
        %v2401 = vpop.f32.mrb[0].mxu0
        %v2402 = vadd.f32 %v2337, %v2401
        %v2403 = vpop.f32.mrb[0].mxu0
        %2404 = vmatprep.mubr.bf16.mxu0 %v1563
        %2405 = vmatmul.mubr.bf16.gmra.mrb[0].mxu0 %v1553
        %v2406 = vpop.f32.mrb[0].mxu0
        %v2407 = vadd.f32 %v2342, %v2406
        %v2408 = vpop.f32.mrb[0].mxu0
        %v2409 = vpop.f32.mrb[0].mxu0
        %v2410 = vadd.f32 %v2345, %v2409
        %v2411 = vpop.f32.mrb[0].mxu0
        %2412 = vdwg.mxu0
        %2413 = vmatprep.subr.bf16.mxu0 0
        %2414 = vmatpush1.bf16.msra.mxu0 %v2073
        %2415 = vmatprep.subr.bf16.mxu0 0
        %2416 = vmatpush1.bf16.msra.mxu0 %v2074
        %2417 = vmatprep.subr.bf16.mxu0 0
        %2418 = vmatpush1.bf16.msra.mxu0 %v2075
        %2419 = vmatprep.subr.bf16.mxu0 0
        %2420 = vmatpush1.bf16.msra.mxu0 %v2076
        %2421 = vmatprep.subr.bf16.mxu0 0
        %2422 = vmatpush1.bf16.msra.mxu0 %v2077
        %2423 = vmatprep.subr.bf16.mxu0 0
        %2424 = vmatpush1.bf16.msra.mxu0 %v2078
        %2425 = vmatprep.subr.bf16.mxu0 0
        %2426 = vmatpush1.bf16.msra.mxu0 %v2079
        %2427 = vmatprep.subr.bf16.mxu0 0
        %2428 = vmatpush1.bf16.msra.mxu0 %v2080
        %2429 = vmatprep.subr.bf16.mxu0 0
        %2430 = vmatpush1.bf16.msra.mxu0 0
        %2431 = vmatprep.subr.bf16.mxu0 0
        %2432 = vmatpush1.bf16.msra.mxu0 0
        %2433 = vmatprep.subr.bf16.mxu0 0
        %2434 = vmatpush1.bf16.msra.mxu0 0
        %2435 = vmatprep.subr.bf16.mxu0 0
        %2436 = vmatpush1.bf16.msra.mxu0 0
        %2437 = vmatprep.subr.bf16.mxu0 0
        %2438 = vmatpush1.bf16.msra.mxu0 0
        %2439 = vmatprep.subr.bf16.mxu0 0
        %2440 = vmatpush1.bf16.msra.mxu0 0
        %2441 = vmatprep.subr.bf16.mxu0 0
        %2442 = vmatpush1.bf16.msra.mxu0 0
        %2443 = vmatprep.subr.bf16.mxu0 0
        %2444 = vmatpush1.bf16.msra.mxu0 0
        %2445 = vmatprep.mubr.bf16.mxu0 0
        %2446 = vmatmul.mubr.bf16.gmra.mrb[0].mxu0 %v1569
        %v2447 = vpop.f32.mrb[0].mxu0
        %v2448 = vadd.f32 %v2383, %v2447
        %v2449 = vpop.f32.mrb[0].mxu0
        %v2450 = vpop.f32.mrb[0].mxu0
        %v2451 = vadd.f32 %v2386, %v2450
        %v2452 = vpop.f32.mrb[0].mxu0
        %2453 = vmatprep.mubr.bf16.mxu0 0
        %2454 = vmatmul.mubr.bf16.gmra.mrb[0].mxu0 %v1570
        %v2455 = vpop.f32.mrb[0].mxu0
        %v2456 = vadd.f32 %v2391, %v2455
        %v2457 = vpop.f32.mrb[0].mxu0
        %v2458 = vpop.f32.mrb[0].mxu0
        %v2459 = vadd.f32 %v2394, %v2458
        %v2460 = vpop.f32.mrb[0].mxu0
        %2461 = vmatprep.mubr.bf16.mxu0 0
        %2462 = vmatmul.mubr.bf16.gmra.mrb[0].mxu0 %v1571
        %v2463 = vpop.f32.mrb[0].mxu0
        %v2464 = vadd.f32 %v2399, %v2463
        %v2465 = vpop.f32.mrb[0].mxu0
        %v2466 = vpop.f32.mrb[0].mxu0
        %v2467 = vadd.f32 %v2402, %v2466
        %v2468 = vpop.f32.mrb[0].mxu0
        %2469 = vmatprep.mubr.bf16.mxu0 0
        %2470 = vmatmul.mubr.bf16.gmra.mrb[0].mxu0 %v1572
        %v2471 = vpop.f32.mrb[0].mxu0
        %v2472 = vadd.f32 %v2407, %v2471
        %v2473 = vpop.f32.mrb[0].mxu0
        %v2474 = vpop.f32.mrb[0].mxu0
        %v2475 = vadd.f32 %v2410, %v2474
        %v2476 = vpop.f32.mrb[0].mxu0
        %2477 = vdwg.mxu0
        %v2478 = vld [vmem:[%s5] sm:$0x1]
        %v2480 = vlaneseq
        %v2481 = vshrl.u32 %v2480, 7
        %v2482 = vsub.s32 0, %v2481
        %v2483 = vrot.slane %v2478, %v2482
        %v2485 = vmul.f32 %v2448, %v2483
        %v2486 = vmul.f32 %v2451, %v2483
        %v2487 = vmul.f32 %v2456, %v2483
        %v2488 = vmul.f32 %v2459, %v2483
        %v2489 = vmul.f32 %v2464, %v2483
        %v2490 = vmul.f32 %v2467, %v2483
        %v2491 = vmul.f32 %v2472, %v2483
        %v2492 = vmul.f32 %v2475, %v2483
        %v2493 = vld [vmem:[%s6] sm:$0x1]
        %v2495 = vlaneseq
        %v2496 = vshrl.u32 %v2495, 7
        %v2497 = vsub.s32 0, %v2496
        %v2498 = vrot.slane %v2493, %v2497
        %v2500 = vadd.f32 %v2485, %v2498
        %v2501 = vadd.f32 %v2486, %v2498
        %v2502 = vadd.f32 %v2487, %v2498
        %v2503 = vadd.f32 %v2488, %v2498
        %v2504 = vadd.f32 %v2489, %v2498
        %v2505 = vadd.f32 %v2490, %v2498
        %v2506 = vadd.f32 %v2491, %v2498
        %v2507 = vadd.f32 %v2492, %v2498
        %v2508 = vmax.f32 %v2500, 0.0
        %v2509 = vmax.f32 %v2501, 0.0
        %v2510 = vmax.f32 %v2502, 0.0
        %v2511 = vmax.f32 %v2503, 0.0
        %v2512 = vmax.f32 %v2504, 0.0
        %v2513 = vmax.f32 %v2505, 0.0
        %v2514 = vmax.f32 %v2506, 0.0
        %v2515 = vmax.f32 %v2507, 0.0
        %2516 = vst [vmem:[#allocation2] sm:$0xf] 0
        %2517 = vst [vmem:[#allocation2 + $0x4] sm:$0x1] 0
        %s2518 = scalar_lea.vmem [#allocation2], 72
        %2519 = vst [vmem:[%s2518] sm:$0xf] 0
        %2520 = vst [vmem:[%s2518 + $0x4] sm:$0x1] 0
        %vm2521 = vcmask 1040384
        %vm2522 = vsmask.f32 256
        %vm2523 = vmand %vm2521, %vm2522
        %v2524 = vld [vmem:[#allocation2] sm:$0x1]
        %v2525 = vsel %vm2523, 0, %v2524
        %2526 = vst [vmem:[#allocation2] sm:$0x1] %v2525
        %v2527 = vld [vmem:[#allocation2 + $0x8] sm:$0x1]
        %v2528 = vsel %vm2523, 0, %v2527
        %2529 = vst [vmem:[#allocation2 + $0x8] sm:$0x1] %v2528
        %v2530 = vld [vmem:[#allocation2 + $0x10] sm:$0x1]
        %v2531 = vsel %vm2523, 0, %v2530
        %2532 = vst [vmem:[#allocation2 + $0x10] sm:$0x1] %v2531
        %v2533 = vld [vmem:[#allocation2 + $0x18] sm:$0x1]
        %v2534 = vsel %vm2523, 0, %v2533
        %2535 = vst [vmem:[#allocation2 + $0x18] sm:$0x1] %v2534
        %v2536 = vld [vmem:[#allocation2 + $0x20] sm:$0x1]
        %v2537 = vsel %vm2523, 0, %v2536
        %2538 = vst [vmem:[#allocation2 + $0x20] sm:$0x1] %v2537
        %v2539 = vld [vmem:[#allocation2 + $0x28] sm:$0x1]
        %v2540 = vsel %vm2523, 0, %v2539
        %2541 = vst [vmem:[#allocation2 + $0x28] sm:$0x1] %v2540
        %v2542 = vld [vmem:[#allocation2 + $0x30] sm:$0x1]
        %v2543 = vsel %vm2523, 0, %v2542
        %2544 = vst [vmem:[#allocation2 + $0x30] sm:$0x1] %v2543
        %v2545 = vld [vmem:[#allocation2 + $0x38] sm:$0x1]
        %v2546 = vsel %vm2523, 0, %v2545
        %2547 = vst [vmem:[#allocation2 + $0x38] sm:$0x1] %v2546
        %v2548 = vld [vmem:[#allocation2 + $0x40] sm:$0x1]
        %v2549 = vsel %vm2523, 0, %v2548
        %2550 = vst [vmem:[#allocation2 + $0x40] sm:$0x1] %v2549
        %v2551 = vld [vmem:[#allocation2 + $0x48] sm:$0x1]
        %v2552 = vsel %vm2523, 0, %v2551
        %2553 = vst [vmem:[#allocation2 + $0x48] sm:$0x1] %v2552
        %vm2554 = vsmask.f32 7938
        %vm2555 = vmand %vm2521, %vm2554
        %v2556 = vld [vmem:[#allocation2 + $0x4] sm:$0x1]
        %v2557 = vsel %vm2555, 0, %v2556
        %2558 = vst [vmem:[#allocation2 + $0x4] sm:$0x1] %v2557
        %v2559 = vld [vmem:[#allocation2 + $0xc] sm:$0x1]
        %v2560 = vsel %vm2555, 0, %v2559
        %2561 = vst [vmem:[#allocation2 + $0xc] sm:$0x1] %v2560
        %v2562 = vld [vmem:[#allocation2 + $0x14] sm:$0x1]
        %v2563 = vsel %vm2555, 0, %v2562
        %2564 = vst [vmem:[#allocation2 + $0x14] sm:$0x1] %v2563
        %v2565 = vld [vmem:[#allocation2 + $0x1c] sm:$0x1]
        %v2566 = vsel %vm2555, 0, %v2565
        %2567 = vst [vmem:[#allocation2 + $0x1c] sm:$0x1] %v2566
        %v2568 = vld [vmem:[#allocation2 + $0x24] sm:$0x1]
        %v2569 = vsel %vm2555, 0, %v2568
        %2570 = vst [vmem:[#allocation2 + $0x24] sm:$0x1] %v2569
        %v2571 = vld [vmem:[#allocation2 + $0x2c] sm:$0x1]
        %v2572 = vsel %vm2555, 0, %v2571
        %2573 = vst [vmem:[#allocation2 + $0x2c] sm:$0x1] %v2572
        %v2574 = vld [vmem:[#allocation2 + $0x34] sm:$0x1]
        %v2575 = vsel %vm2555, 0, %v2574
        %2576 = vst [vmem:[#allocation2 + $0x34] sm:$0x1] %v2575
        %v2577 = vld [vmem:[#allocation2 + $0x3c] sm:$0x1]
        %v2578 = vsel %vm2555, 0, %v2577
        %2579 = vst [vmem:[#allocation2 + $0x3c] sm:$0x1] %v2578
        %v2580 = vld [vmem:[#allocation2 + $0x44] sm:$0x1]
        %v2581 = vsel %vm2555, 0, %v2580
        %2582 = vst [vmem:[#allocation2 + $0x44] sm:$0x1] %v2581
        %v2583 = vld [vmem:[#allocation2 + $0x4c] sm:$0x1]
        %v2584 = vsel %vm2555, 0, %v2583
        %2585 = vst [vmem:[#allocation2 + $0x4c] sm:$0x1] %v2584
        %v2586 = vpack.c.bf16 %v2508, %v2508
        %v2587 = vpack.c.bf16 %v2509, %v2509
        %v2588 = vpack.c.bf16 %v2510, %v2510
        %v2589 = vpack.c.bf16 %v2511, %v2511
        %v2590 = vpack.c.bf16 %v2512, %v2512
        %v2591 = vpack.c.bf16 %v2513, %v2513
        %v2592 = vpack.c.bf16 %v2514, %v2514
        %v2593 = vpack.c.bf16 %v2515, %v2515
        %v2602 = vunpack.c.l.b16 %v2586
        %v2603 = vunpack.c.l.b16 %v2587
        %v2604 = vunpack.c.l.b16 %v2588
        %v2605 = vunpack.c.l.b16 %v2589
        %v2606 = vunpack.c.l.b16 %v2590
        %v2607 = vunpack.c.l.b16 %v2591
        %v2608 = vunpack.c.l.b16 %v2592
        %v2609 = vunpack.c.l.b16 %v2593
        %v2610 = vpack.c.b16 %v2602, %v2602
        %v2611 = vpack.c.b16 %v2603, %v2603
        %v2612 = vpack.c.b16 %v2604, %v2604
        %v2613 = vpack.c.b16 %v2605, %v2605
        %v2614 = vpack.c.b16 %v2606, %v2606
        %v2615 = vpack.c.b16 %v2607, %v2607
        %v2616 = vpack.c.b16 %v2608, %v2608
        %v2617 = vpack.c.b16 %v2609, %v2609
        %v2619 = vshrl.u32 %v2610, 16
        %v2621 = vrot.slane %v2619, 7
        %v2622 = vshll.u32 %v2610, 16
        %v2624 = vor.u32 %v2621, %v2622
        %v2625 = vrot.slane %v2621, 4
        %v2627 = vshrl.u32 %v2611, 16
        %v2629 = vrot.slane %v2627, 7
        %v2630 = vshll.u32 %v2611, 16
        %v2632 = vor.u32 %v2629, %v2630
        %v2633 = vrot.slane %v2629, 4
        %v2635 = vshrl.u32 %v2612, 16
        %v2637 = vrot.slane %v2635, 7
        %v2638 = vshll.u32 %v2612, 16
        %v2640 = vor.u32 %v2637, %v2638
        %v2641 = vrot.slane %v2637, 4
        %v2643 = vshrl.u32 %v2613, 16
        %v2645 = vrot.slane %v2643, 7
        %v2646 = vshll.u32 %v2613, 16
        %v2648 = vor.u32 %v2645, %v2646
        %v2649 = vrot.slane %v2645, 4
        %v2651 = vshrl.u32 %v2614, 16
        %v2653 = vrot.slane %v2651, 7
        %v2654 = vshll.u32 %v2614, 16
        %v2656 = vor.u32 %v2653, %v2654
        %v2657 = vrot.slane %v2653, 4
        %v2659 = vshrl.u32 %v2615, 16
        %v2661 = vrot.slane %v2659, 7
        %v2662 = vshll.u32 %v2615, 16
        %v2664 = vor.u32 %v2661, %v2662
        %v2665 = vrot.slane %v2661, 4
        %v2667 = vshrl.u32 %v2616, 16
        %v2669 = vrot.slane %v2667, 7
        %v2670 = vshll.u32 %v2616, 16
        %v2672 = vor.u32 %v2669, %v2670
        %v2673 = vrot.slane %v2669, 4
        %v2675 = vshrl.u32 %v2617, 16
        %v2677 = vrot.slane %v2675, 7
        %v2678 = vshll.u32 %v2617, 16
        %v2680 = vor.u32 %v2677, %v2678
        %v2681 = vrot.slane %v2677, 4
        %s2698 = scalar_lea.vmem [#allocation2], 8
        %vm2699 = vcmask 1043456
        %vm2700 = vmand %vm2699, %vm2554
        %v2701 = vld [vmem:[%s2698] sm:$0xf]
        %v2702 = vsel %vm2700, %v2624, %v2701
        %2703 = vst [vmem:[%s2698] sm:$0xf] %v2702
        %v2704 = vld [vmem:[%s2698 + $0x4] sm:$0x1]
        %v2705 = vsel %vm2523, %v2625, %v2704
        %2706 = vst [vmem:[%s2698 + $0x4] sm:$0x1] %v2705
        %v2707 = vld [vmem:[%s2698 + $0x8] sm:$0xf]
        %v2708 = vsel %vm2700, %v2632, %v2707
        %2709 = vst [vmem:[%s2698 + $0x8] sm:$0xf] %v2708
        %v2710 = vld [vmem:[%s2698 + $0xc] sm:$0x1]
        %v2711 = vsel %vm2523, %v2633, %v2710
        %2712 = vst [vmem:[%s2698 + $0xc] sm:$0x1] %v2711
        %v2713 = vld [vmem:[%s2698 + $0x10] sm:$0xf]
        %v2714 = vsel %vm2700, %v2640, %v2713
        %2715 = vst [vmem:[%s2698 + $0x10] sm:$0xf] %v2714
        %v2716 = vld [vmem:[%s2698 + $0x14] sm:$0x1]
        %v2717 = vsel %vm2523, %v2641, %v2716
        %2718 = vst [vmem:[%s2698 + $0x14] sm:$0x1] %v2717
        %v2719 = vld [vmem:[%s2698 + $0x18] sm:$0xf]
        %v2720 = vsel %vm2700, %v2648, %v2719
        %2721 = vst [vmem:[%s2698 + $0x18] sm:$0xf] %v2720
        %v2722 = vld [vmem:[%s2698 + $0x1c] sm:$0x1]
        %v2723 = vsel %vm2523, %v2649, %v2722
        %2724 = vst [vmem:[%s2698 + $0x1c] sm:$0x1] %v2723
        %v2725 = vld [vmem:[%s2698 + $0x20] sm:$0xf]
        %v2726 = vsel %vm2700, %v2656, %v2725
        %2727 = vst [vmem:[%s2698 + $0x20] sm:$0xf] %v2726
        %v2728 = vld [vmem:[%s2698 + $0x24] sm:$0x1]
        %v2729 = vsel %vm2523, %v2657, %v2728
        %2730 = vst [vmem:[%s2698 + $0x24] sm:$0x1] %v2729
        %v2731 = vld [vmem:[%s2698 + $0x28] sm:$0xf]
        %v2732 = vsel %vm2700, %v2664, %v2731
        %2733 = vst [vmem:[%s2698 + $0x28] sm:$0xf] %v2732
        %v2734 = vld [vmem:[%s2698 + $0x2c] sm:$0x1]
        %v2735 = vsel %vm2523, %v2665, %v2734
        %2736 = vst [vmem:[%s2698 + $0x2c] sm:$0x1] %v2735
        %v2737 = vld [vmem:[%s2698 + $0x30] sm:$0xf]
        %v2738 = vsel %vm2700, %v2672, %v2737
        %2739 = vst [vmem:[%s2698 + $0x30] sm:$0xf] %v2738
        %v2740 = vld [vmem:[%s2698 + $0x34] sm:$0x1]
        %v2741 = vsel %vm2523, %v2673, %v2740
        %2742 = vst [vmem:[%s2698 + $0x34] sm:$0x1] %v2741
        %v2743 = vld [vmem:[%s2698 + $0x38] sm:$0xf]
        %v2744 = vsel %vm2700, %v2680, %v2743
        %2745 = vst [vmem:[%s2698 + $0x38] sm:$0xf] %v2744
        %v2746 = vld [vmem:[%s2698 + $0x3c] sm:$0x1]
        %v2747 = vsel %vm2523, %v2681, %v2746
        %2748 = vst [vmem:[%s2698 + $0x3c] sm:$0x1] %v2747
        %v2749 = vld [vmem:[#allocation2] sm:$0xf]
        %v2750 = vld [vmem:[#allocation2 + $0x4] sm:$0x1]
        %v2751 = vld [vmem:[#allocation2 + $0x8] sm:$0xf]
        %v2752 = vld [vmem:[#allocation2 + $0xc] sm:$0x1]
        %v2753 = vld [vmem:[#allocation2 + $0x10] sm:$0xf]
        %v2754 = vld [vmem:[#allocation2 + $0x14] sm:$0x1]
        %v2755 = vld [vmem:[#allocation2 + $0x18] sm:$0xf]
        %v2756 = vld [vmem:[#allocation2 + $0x1c] sm:$0x1]
        %v2757 = vld [vmem:[#allocation2 + $0x20] sm:$0xf]
        %v2758 = vld [vmem:[#allocation2 + $0x24] sm:$0x1]
        %v2759 = vld [vmem:[#allocation2 + $0x28] sm:$0xf]
        %v2760 = vld [vmem:[#allocation2 + $0x2c] sm:$0x1]
        %v2761 = vld [vmem:[#allocation2 + $0x30] sm:$0xf]
        %v2762 = vld [vmem:[#allocation2 + $0x34] sm:$0x1]
        %v2763 = vld [vmem:[#allocation2 + $0x38] sm:$0xf]
        %v2764 = vld [vmem:[#allocation2 + $0x3c] sm:$0x1]
        %v2765 = vld [vmem:[#allocation2 + $0x40] sm:$0xf]
        %v2766 = vld [vmem:[#allocation2 + $0x44] sm:$0x1]
        %v2767 = vld [vmem:[#allocation2 + $0x48] sm:$0xf]
        %v2768 = vld [vmem:[#allocation2 + $0x4c] sm:$0x1]
        %v2770 = vshrl.u32 %v2749, 16
        %v2772 = vrot.slane %v2770, 4
        %v2773 = vshll.u32 %v2749, 16
        %v2775 = vrot.slane %v2773, 5
        %v2776 = vor.u32 %v2772, %v2775
        %v2777 = vrot.slane %v2776, 4
        %v2779 = vshll.u32 %v2750, 16
        %v2781 = vrot.slane %v2779, 5
        %v2782 = vsel %vm1170, %v2777, %v2781
        %v2784 = vshrl.u32 %v2751, 16
        %v2786 = vrot.slane %v2784, 4
        %v2787 = vshll.u32 %v2751, 16
        %v2789 = vrot.slane %v2787, 5
        %v2790 = vor.u32 %v2786, %v2789
        %v2791 = vrot.slane %v2790, 4
        %v2793 = vshll.u32 %v2752, 16
        %v2795 = vrot.slane %v2793, 5
        %v2796 = vsel %vm1170, %v2791, %v2795
        %v2798 = vshrl.u32 %v2753, 16
        %v2800 = vrot.slane %v2798, 4
        %v2801 = vshll.u32 %v2753, 16
        %v2803 = vrot.slane %v2801, 5
        %v2804 = vor.u32 %v2800, %v2803
        %v2805 = vrot.slane %v2804, 4
        %v2807 = vshll.u32 %v2754, 16
        %v2809 = vrot.slane %v2807, 5
        %v2810 = vsel %vm1170, %v2805, %v2809
        %v2812 = vshrl.u32 %v2755, 16
        %v2814 = vrot.slane %v2812, 4
        %v2815 = vshll.u32 %v2755, 16
        %v2817 = vrot.slane %v2815, 5
        %v2818 = vor.u32 %v2814, %v2817
        %v2819 = vrot.slane %v2818, 4
        %v2821 = vshll.u32 %v2756, 16
        %v2823 = vrot.slane %v2821, 5
        %v2824 = vsel %vm1170, %v2819, %v2823
        %v2826 = vshrl.u32 %v2757, 16
        %v2828 = vrot.slane %v2826, 4
        %v2829 = vshll.u32 %v2757, 16
        %v2831 = vrot.slane %v2829, 5
        %v2832 = vor.u32 %v2828, %v2831
        %v2833 = vrot.slane %v2832, 4
        %v2835 = vshll.u32 %v2758, 16
        %v2837 = vrot.slane %v2835, 5
        %v2838 = vsel %vm1170, %v2833, %v2837
        %v2840 = vshrl.u32 %v2759, 16
        %v2842 = vrot.slane %v2840, 4
        %v2843 = vshll.u32 %v2759, 16
        %v2845 = vrot.slane %v2843, 5
        %v2846 = vor.u32 %v2842, %v2845
        %v2847 = vrot.slane %v2846, 4
        %v2849 = vshll.u32 %v2760, 16
        %v2851 = vrot.slane %v2849, 5
        %v2852 = vsel %vm1170, %v2847, %v2851
        %v2854 = vshrl.u32 %v2761, 16
        %v2856 = vrot.slane %v2854, 4
        %v2857 = vshll.u32 %v2761, 16
        %v2859 = vrot.slane %v2857, 5
        %v2860 = vor.u32 %v2856, %v2859
        %v2861 = vrot.slane %v2860, 4
        %v2863 = vshll.u32 %v2762, 16
        %v2865 = vrot.slane %v2863, 5
        %v2866 = vsel %vm1170, %v2861, %v2865
        %v2868 = vshrl.u32 %v2763, 16
        %v2870 = vrot.slane %v2868, 4
        %v2871 = vshll.u32 %v2763, 16
        %v2873 = vrot.slane %v2871, 5
        %v2874 = vor.u32 %v2870, %v2873
        %v2875 = vrot.slane %v2874, 4
        %v2877 = vshll.u32 %v2764, 16
        %v2879 = vrot.slane %v2877, 5
        %v2880 = vsel %vm1170, %v2875, %v2879
        %vm2897 = vcmask 1042432
        %vm2898 = vcmask 1046532
        %vm2899 = vmor %vm2897, %vm2898
        %v2900 = vrot.slane %v2749, 5
        %v2901 = vrot.slane %v2900, 4
        %v2902 = vrot.slane %v2750, 5
        %v2903 = vsel %vm2899, %v2901, %v2902
        %v2904 = vrot.slane %v2751, 5
        %v2905 = vrot.slane %v2904, 4
        %v2906 = vrot.slane %v2752, 5
        %v2907 = vsel %vm2899, %v2905, %v2906
        %v2908 = vrot.slane %v2753, 5
        %v2909 = vrot.slane %v2908, 4
        %v2910 = vrot.slane %v2754, 5
        %v2911 = vsel %vm2899, %v2909, %v2910
        %v2912 = vrot.slane %v2755, 5
        %v2913 = vrot.slane %v2912, 4
        %v2914 = vrot.slane %v2756, 5
        %v2915 = vsel %vm2899, %v2913, %v2914
        %v2916 = vrot.slane %v2757, 5
        %v2917 = vrot.slane %v2916, 4
        %v2918 = vrot.slane %v2758, 5
        %v2919 = vsel %vm2899, %v2917, %v2918
        %v2920 = vrot.slane %v2759, 5
        %v2921 = vrot.slane %v2920, 4
        %v2922 = vrot.slane %v2760, 5
        %v2923 = vsel %vm2899, %v2921, %v2922
        %v2924 = vrot.slane %v2761, 5
        %v2925 = vrot.slane %v2924, 4
        %v2926 = vrot.slane %v2762, 5
        %v2927 = vsel %vm2899, %v2925, %v2926
        %v2928 = vrot.slane %v2763, 5
        %v2929 = vrot.slane %v2928, 4
        %v2930 = vrot.slane %v2764, 5
        %v2931 = vsel %vm2899, %v2929, %v2930
        %v2933 = vshrl.u32 %v2765, 16
        %v2935 = vrot.slane %v2933, 4
        %v2936 = vshll.u32 %v2765, 16
        %v2938 = vrot.slane %v2936, 5
        %v2939 = vor.u32 %v2935, %v2938
        %v2940 = vrot.slane %v2939, 4
        %v2942 = vshll.u32 %v2766, 16
        %v2944 = vrot.slane %v2942, 5
        %v2945 = vsel %vm1170, %v2940, %v2944
        %v2948 = vrot.slane %v2765, 5
        %v2949 = vrot.slane %v2948, 4
        %v2950 = vrot.slane %v2766, 5
        %v2951 = vsel %vm2899, %v2949, %v2950
        %v2953 = vshrl.u32 %v2767, 16
        %v2955 = vrot.slane %v2953, 4
        %v2956 = vshll.u32 %v2767, 16
        %v2958 = vrot.slane %v2956, 5
        %v2959 = vor.u32 %v2955, %v2958
        %v2960 = vrot.slane %v2959, 4
        %v2962 = vshll.u32 %v2768, 16
        %v2964 = vrot.slane %v2962, 5
        %v2965 = vsel %vm1170, %v2960, %v2964
        %v2968 = vrot.slane %v2767, 5
        %v2969 = vrot.slane %v2968, 4
        %v2970 = vrot.slane %v2768, 5
        %v2971 = vsel %vm2899, %v2969, %v2970
        %v2972 = vunpack.c.l.b16 %v2749
        %v2973 = vunpack.c.l.b16 %v2751
        %v2974 = vunpack.c.l.b16 %v2753
        %v2975 = vunpack.c.l.b16 %v2755
        %v2976 = vunpack.c.l.b16 %v2757
        %v2977 = vunpack.c.l.b16 %v2759
        %v2978 = vunpack.c.l.b16 %v2761
        %v2979 = vunpack.c.l.b16 %v2763
        %v2980 = vpack.c.b16 %v2973, %v2972
        %v2981 = vpack.c.b16 %v2975, %v2974
        %v2982 = vpack.c.b16 %v2977, %v2976
        %v2983 = vpack.c.b16 %v2979, %v2978
        %v2988 = vunpack.c.l.b16 %v2782
        %v2989 = vunpack.c.l.b16 %v2796
        %v2990 = vunpack.c.l.b16 %v2810
        %v2991 = vunpack.c.l.b16 %v2824
        %v2992 = vunpack.c.l.b16 %v2838
        %v2993 = vunpack.c.l.b16 %v2852
        %v2994 = vunpack.c.l.b16 %v2866
        %v2995 = vunpack.c.l.b16 %v2880
        %v2996 = vpack.c.b16 %v2989, %v2988
        %v2997 = vpack.c.b16 %v2991, %v2990
        %v2998 = vpack.c.b16 %v2993, %v2992
        %v2999 = vpack.c.b16 %v2995, %v2994
        %v3004 = vunpack.c.l.b16 %v2903
        %v3005 = vunpack.c.l.b16 %v2907
        %v3006 = vunpack.c.l.b16 %v2911
        %v3007 = vunpack.c.l.b16 %v2915
        %v3008 = vunpack.c.l.b16 %v2919
        %v3009 = vunpack.c.l.b16 %v2923
        %v3010 = vunpack.c.l.b16 %v2927
        %v3011 = vunpack.c.l.b16 %v2931
        %v3012 = vpack.c.b16 %v3005, %v3004
        %v3013 = vpack.c.b16 %v3007, %v3006
        %v3014 = vpack.c.b16 %v3009, %v3008
        %v3015 = vpack.c.b16 %v3011, %v3010
        %v3020 = vunpack.c.l.b16 %v2765
        %v3021 = vpack.c.b16 %v2974, %v2973
        %v3022 = vpack.c.b16 %v2976, %v2975
        %v3023 = vpack.c.b16 %v2978, %v2977
        %v3024 = vpack.c.b16 %v3020, %v2979
        %v3029 = vunpack.c.l.b16 %v2945
        %v3030 = vpack.c.b16 %v2990, %v2989
        %v3031 = vpack.c.b16 %v2992, %v2991
        %v3032 = vpack.c.b16 %v2994, %v2993
        %v3033 = vpack.c.b16 %v3029, %v2995
        %v3038 = vunpack.c.l.b16 %v2951
        %v3039 = vpack.c.b16 %v3006, %v3005
        %v3040 = vpack.c.b16 %v3008, %v3007
        %v3041 = vpack.c.b16 %v3010, %v3009
        %v3042 = vpack.c.b16 %v3038, %v3011
        %v3047 = vunpack.c.l.b16 %v2767
        %v3048 = vpack.c.b16 %v3047, %v3020
        %v3050 = vunpack.c.l.b16 %v2965
        %v3051 = vpack.c.b16 %v3050, %v3029
        %v3053 = vunpack.c.l.b16 %v2971
        %v3054 = vpack.c.b16 %v3053, %v3038
        %v3056 = vld [vmem:[%s7] sm:$0xf]
        %v3057 = vld [vmem:[%s7 + $0x4] sm:$0xf]
        %v3058 = vld [vmem:[%s7 + $0x8] sm:$0xf]
        %v3059 = vld [vmem:[%s7 + $0xc] sm:$0xf]
        %v3060 = vld [vmem:[%s7 + $0x10] sm:$0xf]
        %v3061 = vld [vmem:[%s7 + $0x14] sm:$0xf]
        %v3062 = vld [vmem:[%s7 + $0x18] sm:$0xf]
        %v3063 = vld [vmem:[%s7 + $0x1c] sm:$0xf]
        %v3064 = vld [vmem:[%s7 + $0x20] sm:$0xf]
        %v3065 = vld [vmem:[%s7 + $0x24] sm:$0xf]
        %v3066 = vld [vmem:[%s7 + $0x28] sm:$0xf]
        %v3067 = vld [vmem:[%s7 + $0x2c] sm:$0xf]
        %v3068 = vld [vmem:[%s7 + $0x30] sm:$0xf]
        %v3069 = vld [vmem:[%s7 + $0x34] sm:$0xf]
        %v3070 = vld [vmem:[%s7 + $0x38] sm:$0xf]
        %v3071 = vld [vmem:[%s7 + $0x3c] sm:$0xf]
        %v3072 = vld [vmem:[%s7 + $0x40] sm:$0xf]
        %v3073 = vld [vmem:[%s7 + $0x44] sm:$0xf]
        %v3074 = vld [vmem:[%s7 + $0x48] sm:$0xf]
        %v3075 = vld [vmem:[%s7 + $0x4c] sm:$0xf]
        %v3076 = vld [vmem:[%s7 + $0x50] sm:$0xf]
        %v3077 = vld [vmem:[%s7 + $0x54] sm:$0xf]
        %v3078 = vld [vmem:[%s7 + $0x58] sm:$0xf]
        %v3079 = vld [vmem:[%s7 + $0x5c] sm:$0xf]
        %v3080 = vld [vmem:[%s7 + $0x60] sm:$0xf]
        %v3081 = vld [vmem:[%s7 + $0x64] sm:$0xf]
        %v3082 = vld [vmem:[%s7 + $0x68] sm:$0xf]
        %v3083 = vld [vmem:[%s7 + $0x6c] sm:$0xf]
        %v3084 = vld [vmem:[%s7 + $0x70] sm:$0xf]
        %v3085 = vld [vmem:[%s7 + $0x74] sm:$0xf]
        %v3086 = vld [vmem:[%s7 + $0x78] sm:$0xf]
        %v3087 = vld [vmem:[%s7 + $0x7c] sm:$0xf]
        %v3088 = vld [vmem:[%s7 + $0x80] sm:$0xf]
        %v3089 = vld [vmem:[%s7 + $0x84] sm:$0xf]
        %v3090 = vld [vmem:[%s7 + $0x88] sm:$0xf]
        %v3091 = vld [vmem:[%s7 + $0x8c] sm:$0xf]
        %v3092 = vld [vmem:[%s7 + $0x90] sm:$0xf]
        %v3093 = vld [vmem:[%s7 + $0x94] sm:$0xf]
        %v3094 = vld [vmem:[%s7 + $0x98] sm:$0xf]
        %v3095 = vld [vmem:[%s7 + $0x9c] sm:$0xf]
        %v3096 = vld [vmem:[%s7 + $0xa0] sm:$0xf]
        %v3097 = vld [vmem:[%s7 + $0xa4] sm:$0xf]
        %v3098 = vld [vmem:[%s7 + $0xa8] sm:$0xf]
        %v3099 = vld [vmem:[%s7 + $0xac] sm:$0xf]
        %v3100 = vld [vmem:[%s7 + $0xb0] sm:$0xf]
        %v3101 = vld [vmem:[%s7 + $0xb4] sm:$0xf]
        %v3102 = vld [vmem:[%s7 + $0xb8] sm:$0xf]
        %v3103 = vld [vmem:[%s7 + $0xbc] sm:$0xf]
        %v3104 = vld [vmem:[%s7 + $0xc0] sm:$0xf]
        %v3105 = vld [vmem:[%s7 + $0xc4] sm:$0xf]
        %v3106 = vld [vmem:[%s7 + $0xc8] sm:$0xf]
        %v3107 = vld [vmem:[%s7 + $0xcc] sm:$0xf]
        %v3108 = vld [vmem:[%s7 + $0xd0] sm:$0xf]
        %v3109 = vld [vmem:[%s7 + $0xd4] sm:$0xf]
        %v3110 = vld [vmem:[%s7 + $0xd8] sm:$0xf]
        %v3111 = vld [vmem:[%s7 + $0xdc] sm:$0xf]
        %v3112 = vld [vmem:[%s7 + $0xe0] sm:$0xf]
        %v3113 = vld [vmem:[%s7 + $0xe4] sm:$0xf]
        %v3114 = vld [vmem:[%s7 + $0xe8] sm:$0xf]
        %v3115 = vld [vmem:[%s7 + $0xec] sm:$0xf]
        %v3116 = vld [vmem:[%s7 + $0xf0] sm:$0xf]
        %v3117 = vld [vmem:[%s7 + $0xf4] sm:$0xf]
        %v3118 = vld [vmem:[%s7 + $0xf8] sm:$0xf]
        %v3119 = vld [vmem:[%s7 + $0xfc] sm:$0xf]
        %v3120 = vld [vmem:[%s7 + $0x100] sm:$0xf]
        %v3121 = vld [vmem:[%s7 + $0x104] sm:$0xf]
        %v3122 = vld [vmem:[%s7 + $0x108] sm:$0xf]
        %v3123 = vld [vmem:[%s7 + $0x10c] sm:$0xf]
        %v3124 = vld [vmem:[%s7 + $0x110] sm:$0xf]
        %v3125 = vld [vmem:[%s7 + $0x114] sm:$0xf]
        %v3126 = vld [vmem:[%s7 + $0x118] sm:$0xf]
        %v3127 = vld [vmem:[%s7 + $0x11c] sm:$0xf]
        %v3128 = vld [vmem:[%s7 + $0x120] sm:$0xf]
        %v3129 = vld [vmem:[%s7 + $0x124] sm:$0xf]
        %v3130 = vld [vmem:[%s7 + $0x128] sm:$0xf]
        %v3131 = vld [vmem:[%s7 + $0x12c] sm:$0xf]
        %v3132 = vld [vmem:[%s7 + $0x130] sm:$0xf]
        %v3133 = vld [vmem:[%s7 + $0x134] sm:$0xf]
        %v3134 = vld [vmem:[%s7 + $0x138] sm:$0xf]
        %v3135 = vld [vmem:[%s7 + $0x13c] sm:$0xf]
        %v3136 = vld [vmem:[%s7 + $0x140] sm:$0xf]
        %v3137 = vld [vmem:[%s7 + $0x144] sm:$0xf]
        %v3138 = vld [vmem:[%s7 + $0x148] sm:$0xf]
        %v3139 = vld [vmem:[%s7 + $0x14c] sm:$0xf]
        %v3140 = vld [vmem:[%s7 + $0x150] sm:$0xf]
        %v3141 = vld [vmem:[%s7 + $0x154] sm:$0xf]
        %v3142 = vld [vmem:[%s7 + $0x158] sm:$0xf]
        %v3143 = vld [vmem:[%s7 + $0x15c] sm:$0xf]
        %v3144 = vld [vmem:[%s7 + $0x160] sm:$0xf]
        %v3145 = vld [vmem:[%s7 + $0x164] sm:$0xf]
        %v3146 = vld [vmem:[%s7 + $0x168] sm:$0xf]
        %v3147 = vld [vmem:[%s7 + $0x16c] sm:$0xf]
        %v3148 = vld [vmem:[%s7 + $0x170] sm:$0xf]
        %v3149 = vld [vmem:[%s7 + $0x174] sm:$0xf]
        %v3150 = vld [vmem:[%s7 + $0x178] sm:$0xf]
        %v3151 = vld [vmem:[%s7 + $0x17c] sm:$0xf]
        %v3152 = vld [vmem:[%s7 + $0x180] sm:$0xf]
        %v3153 = vld [vmem:[%s7 + $0x184] sm:$0xf]
        %v3154 = vld [vmem:[%s7 + $0x188] sm:$0xf]
        %v3155 = vld [vmem:[%s7 + $0x18c] sm:$0xf]
        %v3156 = vld [vmem:[%s7 + $0x190] sm:$0xf]
        %v3157 = vld [vmem:[%s7 + $0x194] sm:$0xf]
        %v3158 = vld [vmem:[%s7 + $0x198] sm:$0xf]
        %v3159 = vld [vmem:[%s7 + $0x19c] sm:$0xf]
        %v3160 = vld [vmem:[%s7 + $0x1a0] sm:$0xf]
        %v3161 = vld [vmem:[%s7 + $0x1a4] sm:$0xf]
        %v3162 = vld [vmem:[%s7 + $0x1a8] sm:$0xf]
        %v3163 = vld [vmem:[%s7 + $0x1ac] sm:$0xf]
        %v3164 = vld [vmem:[%s7 + $0x1b0] sm:$0xf]
        %v3165 = vld [vmem:[%s7 + $0x1b4] sm:$0xf]
        %v3166 = vld [vmem:[%s7 + $0x1b8] sm:$0xf]
        %v3167 = vld [vmem:[%s7 + $0x1bc] sm:$0xf]
        %v3168 = vld [vmem:[%s7 + $0x1c0] sm:$0xf]
        %v3169 = vld [vmem:[%s7 + $0x1c4] sm:$0xf]
        %v3170 = vld [vmem:[%s7 + $0x1c8] sm:$0xf]
        %v3171 = vld [vmem:[%s7 + $0x1cc] sm:$0xf]
        %v3172 = vld [vmem:[%s7 + $0x1d0] sm:$0xf]
        %v3173 = vld [vmem:[%s7 + $0x1d4] sm:$0xf]
        %v3174 = vld [vmem:[%s7 + $0x1d8] sm:$0xf]
        %v3175 = vld [vmem:[%s7 + $0x1dc] sm:$0xf]
        %v3176 = vld [vmem:[%s7 + $0x1e0] sm:$0xf]
        %v3177 = vld [vmem:[%s7 + $0x1e4] sm:$0xf]
        %v3178 = vld [vmem:[%s7 + $0x1e8] sm:$0xf]
        %v3179 = vld [vmem:[%s7 + $0x1ec] sm:$0xf]
        %v3180 = vld [vmem:[%s7 + $0x1f0] sm:$0xf]
        %v3181 = vld [vmem:[%s7 + $0x1f4] sm:$0xf]
        %v3182 = vld [vmem:[%s7 + $0x1f8] sm:$0xf]
        %v3183 = vld [vmem:[%s7 + $0x1fc] sm:$0xf]
        %v3184 = vld [vmem:[%s7 + $0x200] sm:$0xf]
        %v3185 = vld [vmem:[%s7 + $0x204] sm:$0xf]
        %v3186 = vld [vmem:[%s7 + $0x208] sm:$0xf]
        %v3187 = vld [vmem:[%s7 + $0x20c] sm:$0xf]
        %v3188 = vld [vmem:[%s7 + $0x210] sm:$0xf]
        %v3189 = vld [vmem:[%s7 + $0x214] sm:$0xf]
        %v3190 = vld [vmem:[%s7 + $0x218] sm:$0xf]
        %v3191 = vld [vmem:[%s7 + $0x21c] sm:$0xf]
        %v3192 = vld [vmem:[%s7 + $0x220] sm:$0xf]
        %v3193 = vld [vmem:[%s7 + $0x224] sm:$0xf]
        %v3194 = vld [vmem:[%s7 + $0x228] sm:$0xf]
        %v3195 = vld [vmem:[%s7 + $0x22c] sm:$0xf]
        %v3196 = vld [vmem:[%s7 + $0x230] sm:$0xf]
        %v3197 = vld [vmem:[%s7 + $0x234] sm:$0xf]
        %v3198 = vld [vmem:[%s7 + $0x238] sm:$0xf]
        %v3199 = vld [vmem:[%s7 + $0x23c] sm:$0xf]
        %v3200 = vld [vmem:[%s8] sm:$0xf]
        %v3201 = vld [vmem:[%s8 + $0x4] sm:$0xf]
        %v3202 = vld [vmem:[%s8 + $0x8] sm:$0xf]
        %v3203 = vld [vmem:[%s8 + $0xc] sm:$0xf]
        %v3204 = vld [vmem:[%s8 + $0x10] sm:$0xf]
        %v3205 = vld [vmem:[%s8 + $0x14] sm:$0xf]
        %v3206 = vld [vmem:[%s8 + $0x18] sm:$0xf]
        %v3207 = vld [vmem:[%s8 + $0x1c] sm:$0xf]
        %v3208 = vld [vmem:[%s8 + $0x20] sm:$0xf]
        %v3209 = vld [vmem:[%s8 + $0x24] sm:$0xf]
        %v3210 = vld [vmem:[%s8 + $0x28] sm:$0xf]
        %v3211 = vld [vmem:[%s8 + $0x2c] sm:$0xf]
        %v3212 = vld [vmem:[%s8 + $0x30] sm:$0xf]
        %v3213 = vld [vmem:[%s8 + $0x34] sm:$0xf]
        %v3214 = vld [vmem:[%s8 + $0x38] sm:$0xf]
        %v3215 = vld [vmem:[%s8 + $0x3c] sm:$0xf]
        %v3232 = vunpack.c.l.b16 %v3200
        %v3233 = vunpack.c.l.b16 %v3201
        %v3234 = vunpack.c.l.b16 %v3202
        %v3235 = vunpack.c.l.b16 %v3203
        %v3236 = vunpack.c.l.b16 %v3204
        %v3237 = vunpack.c.l.b16 %v3205
        %v3238 = vunpack.c.l.b16 %v3206
        %v3239 = vunpack.c.l.b16 %v3207
        %v3240 = vunpack.c.l.b16 %v3208
        %v3241 = vunpack.c.l.b16 %v3209
        %v3242 = vunpack.c.l.b16 %v3210
        %v3243 = vunpack.c.l.b16 %v3211
        %v3244 = vunpack.c.l.b16 %v3212
        %v3245 = vunpack.c.l.b16 %v3213
        %v3246 = vunpack.c.l.b16 %v3214
        %v3247 = vunpack.c.l.b16 %v3215
        %v3248 = vpack.c.b16 %v3233, %v3232
        %v3249 = vpack.c.b16 %v3235, %v3234
        %v3250 = vpack.c.b16 %v3237, %v3236
        %v3251 = vpack.c.b16 %v3239, %v3238
        %v3252 = vpack.c.b16 %v3241, %v3240
        %v3253 = vpack.c.b16 %v3243, %v3242
        %v3254 = vpack.c.b16 %v3245, %v3244
        %v3255 = vpack.c.b16 %v3247, %v3246
        %3264 = vmatprep.subr.bf16.mxu0 0
        %3265 = vmatpush1.bf16.msra.mxu0 %v3248
        %3266 = vmatprep.subr.bf16.mxu0 0
        %3267 = vmatpush1.bf16.msra.mxu0 %v3249
        %3268 = vmatprep.subr.bf16.mxu0 0
        %3269 = vmatpush1.bf16.msra.mxu0 %v3250
        %3270 = vmatprep.subr.bf16.mxu0 0
        %3271 = vmatpush1.bf16.msra.mxu0 %v3251
        %3272 = vmatprep.subr.bf16.mxu0 0
        %3273 = vmatpush1.bf16.msra.mxu0 %v3252
        %3274 = vmatprep.subr.bf16.mxu0 0
        %3275 = vmatpush1.bf16.msra.mxu0 %v3253
        %3276 = vmatprep.subr.bf16.mxu0 0
        %3277 = vmatpush1.bf16.msra.mxu0 %v3254
        %3278 = vmatprep.subr.bf16.mxu0 0
        %3279 = vmatpush1.bf16.msra.mxu0 %v3255
        %3280 = vmatprep.subr.bf16.mxu0 0
        %3281 = vmatpush1.bf16.msra.mxu0 0
        %3282 = vmatprep.subr.bf16.mxu0 0
        %3283 = vmatpush1.bf16.msra.mxu0 0
        %3284 = vmatprep.subr.bf16.mxu0 0
        %3285 = vmatpush1.bf16.msra.mxu0 0
        %3286 = vmatprep.subr.bf16.mxu0 0
        %3287 = vmatpush1.bf16.msra.mxu0 0
        %3288 = vmatprep.subr.bf16.mxu0 0
        %3289 = vmatpush1.bf16.msra.mxu0 0
        %3290 = vmatprep.subr.bf16.mxu0 0
        %3291 = vmatpush1.bf16.msra.mxu0 0
        %3292 = vmatprep.subr.bf16.mxu0 0
        %3293 = vmatpush1.bf16.msra.mxu0 0
        %3294 = vmatprep.subr.bf16.mxu0 0
        %3295 = vmatpush1.bf16.msra.mxu0 0
        %3296 = vmatprep.mubr.bf16.mxu0 0
        %3297 = vmatmul.mubr.bf16.gmra.mrb[0].mxu0 %v1526
        %v3298 = vpop.f32.mrb[0].mxu0
        %v3299 = vadd.f32 0.0, %v3298
        %v3300 = vpop.f32.mrb[0].mxu0
        %v3301 = vpop.f32.mrb[0].mxu0
        %v3302 = vadd.f32 0.0, %v3301
        %v3303 = vpop.f32.mrb[0].mxu0
        %3304 = vmatprep.mubr.bf16.mxu0 0
        %3305 = vmatmul.mubr.bf16.gmra.mrb[0].mxu0 %v1527
        %v3306 = vpop.f32.mrb[0].mxu0
        %v3307 = vadd.f32 0.0, %v3306
        %v3308 = vpop.f32.mrb[0].mxu0
        %v3309 = vpop.f32.mrb[0].mxu0
        %v3310 = vadd.f32 0.0, %v3309
        %v3311 = vpop.f32.mrb[0].mxu0
        %3312 = vmatprep.mubr.bf16.mxu0 0
        %3313 = vmatmul.mubr.bf16.gmra.mrb[0].mxu0 %v1528
        %v3314 = vpop.f32.mrb[0].mxu0
        %v3315 = vadd.f32 0.0, %v3314
        %v3316 = vpop.f32.mrb[0].mxu0
        %v3317 = vpop.f32.mrb[0].mxu0
        %v3318 = vadd.f32 0.0, %v3317
        %v3319 = vpop.f32.mrb[0].mxu0
        %3320 = vmatprep.mubr.bf16.mxu0 0
        %3321 = vmatmul.mubr.bf16.gmra.mrb[0].mxu0 %v1529
        %v3322 = vpop.f32.mrb[0].mxu0
        %v3323 = vadd.f32 0.0, %v3322
        %v3324 = vpop.f32.mrb[0].mxu0
        %v3325 = vpop.f32.mrb[0].mxu0
        %v3326 = vadd.f32 0.0, %v3325
        %v3327 = vpop.f32.mrb[0].mxu0
        %3328 = vdwg.mxu0
        %v3473 = vunpack.c.l.b16 %v3056
        %v3474 = vunpack.c.l.b16 %v3057
        %v3475 = vunpack.c.l.b16 %v3058
        %v3476 = vunpack.c.l.b16 %v3059
        %v3477 = vunpack.c.l.b16 %v3060
        %v3478 = vunpack.c.l.b16 %v3061
        %v3479 = vunpack.c.l.b16 %v3062
        %v3480 = vunpack.c.l.b16 %v3063
        %v3481 = vunpack.c.l.b16 %v3064
        %v3482 = vunpack.c.l.b16 %v3065
        %v3483 = vunpack.c.l.b16 %v3066
        %v3484 = vunpack.c.l.b16 %v3067
        %v3485 = vunpack.c.l.b16 %v3068
        %v3486 = vunpack.c.l.b16 %v3069
        %v3487 = vunpack.c.l.b16 %v3070
        %v3488 = vunpack.c.l.b16 %v3071
        %v3489 = vunpack.c.l.b16 %v3072
        %v3490 = vunpack.c.l.b16 %v3073
        %v3491 = vunpack.c.l.b16 %v3074
        %v3492 = vunpack.c.l.b16 %v3075
        %v3493 = vunpack.c.l.b16 %v3076
        %v3494 = vunpack.c.l.b16 %v3077
        %v3495 = vunpack.c.l.b16 %v3078
        %v3496 = vunpack.c.l.b16 %v3079
        %v3497 = vunpack.c.l.b16 %v3080
        %v3498 = vunpack.c.l.b16 %v3081
        %v3499 = vunpack.c.l.b16 %v3082
        %v3500 = vunpack.c.l.b16 %v3083
        %v3501 = vunpack.c.l.b16 %v3084
        %v3502 = vunpack.c.l.b16 %v3085
        %v3503 = vunpack.c.l.b16 %v3086
        %v3504 = vunpack.c.l.b16 %v3087
        %v3505 = vunpack.c.l.b16 %v3088
        %v3506 = vunpack.c.l.b16 %v3089
        %v3507 = vunpack.c.l.b16 %v3090
        %v3508 = vunpack.c.l.b16 %v3091
        %v3509 = vunpack.c.l.b16 %v3092
        %v3510 = vunpack.c.l.b16 %v3093
        %v3511 = vunpack.c.l.b16 %v3094
        %v3512 = vunpack.c.l.b16 %v3095
        %v3513 = vunpack.c.l.b16 %v3096
        %v3514 = vunpack.c.l.b16 %v3097
        %v3515 = vunpack.c.l.b16 %v3098
        %v3516 = vunpack.c.l.b16 %v3099
        %v3517 = vunpack.c.l.b16 %v3100
        %v3518 = vunpack.c.l.b16 %v3101
        %v3519 = vunpack.c.l.b16 %v3102
        %v3520 = vunpack.c.l.b16 %v3103
        %v3521 = vunpack.c.l.b16 %v3104
        %v3522 = vunpack.c.l.b16 %v3105
        %v3523 = vunpack.c.l.b16 %v3106
        %v3524 = vunpack.c.l.b16 %v3107
        %v3525 = vunpack.c.l.b16 %v3108
        %v3526 = vunpack.c.l.b16 %v3109
        %v3527 = vunpack.c.l.b16 %v3110
        %v3528 = vunpack.c.l.b16 %v3111
        %v3529 = vunpack.c.l.b16 %v3112
        %v3530 = vunpack.c.l.b16 %v3113
        %v3531 = vunpack.c.l.b16 %v3114
        %v3532 = vunpack.c.l.b16 %v3115
        %v3533 = vunpack.c.l.b16 %v3116
        %v3534 = vunpack.c.l.b16 %v3117
        %v3535 = vunpack.c.l.b16 %v3118
        %v3536 = vunpack.c.l.b16 %v3119
        %v3537 = vunpack.c.l.b16 %v3120
        %v3538 = vunpack.c.l.b16 %v3121
        %v3539 = vunpack.c.l.b16 %v3122
        %v3540 = vunpack.c.l.b16 %v3123
        %v3541 = vunpack.c.l.b16 %v3124
        %v3542 = vunpack.c.l.b16 %v3125
        %v3543 = vunpack.c.l.b16 %v3126
        %v3544 = vunpack.c.l.b16 %v3127
        %v3545 = vunpack.c.l.b16 %v3128
        %v3546 = vunpack.c.l.b16 %v3129
        %v3547 = vunpack.c.l.b16 %v3130
        %v3548 = vunpack.c.l.b16 %v3131
        %v3549 = vunpack.c.l.b16 %v3132
        %v3550 = vunpack.c.l.b16 %v3133
        %v3551 = vunpack.c.l.b16 %v3134
        %v3552 = vunpack.c.l.b16 %v3135
        %v3553 = vunpack.c.l.b16 %v3136
        %v3554 = vunpack.c.l.b16 %v3137
        %v3555 = vunpack.c.l.b16 %v3138
        %v3556 = vunpack.c.l.b16 %v3139
        %v3557 = vunpack.c.l.b16 %v3140
        %v3558 = vunpack.c.l.b16 %v3141
        %v3559 = vunpack.c.l.b16 %v3142
        %v3560 = vunpack.c.l.b16 %v3143
        %v3561 = vunpack.c.l.b16 %v3144
        %v3562 = vunpack.c.l.b16 %v3145
        %v3563 = vunpack.c.l.b16 %v3146
        %v3564 = vunpack.c.l.b16 %v3147
        %v3565 = vunpack.c.l.b16 %v3148
        %v3566 = vunpack.c.l.b16 %v3149
        %v3567 = vunpack.c.l.b16 %v3150
        %v3568 = vunpack.c.l.b16 %v3151
        %v3569 = vunpack.c.l.b16 %v3152
        %v3570 = vunpack.c.l.b16 %v3153
        %v3571 = vunpack.c.l.b16 %v3154
        %v3572 = vunpack.c.l.b16 %v3155
        %v3573 = vunpack.c.l.b16 %v3156
        %v3574 = vunpack.c.l.b16 %v3157
        %v3575 = vunpack.c.l.b16 %v3158
        %v3576 = vunpack.c.l.b16 %v3159
        %v3577 = vunpack.c.l.b16 %v3160
        %v3578 = vunpack.c.l.b16 %v3161
        %v3579 = vunpack.c.l.b16 %v3162
        %v3580 = vunpack.c.l.b16 %v3163
        %v3581 = vunpack.c.l.b16 %v3164
        %v3582 = vunpack.c.l.b16 %v3165
        %v3583 = vunpack.c.l.b16 %v3166
        %v3584 = vunpack.c.l.b16 %v3167
        %v3585 = vunpack.c.l.b16 %v3168
        %v3586 = vunpack.c.l.b16 %v3169
        %v3587 = vunpack.c.l.b16 %v3170
        %v3588 = vunpack.c.l.b16 %v3171
        %v3589 = vunpack.c.l.b16 %v3172
        %v3590 = vunpack.c.l.b16 %v3173
        %v3591 = vunpack.c.l.b16 %v3174
        %v3592 = vunpack.c.l.b16 %v3175
        %v3593 = vunpack.c.l.b16 %v3176
        %v3594 = vunpack.c.l.b16 %v3177
        %v3595 = vunpack.c.l.b16 %v3178
        %v3596 = vunpack.c.l.b16 %v3179
        %v3597 = vunpack.c.l.b16 %v3180
        %v3598 = vunpack.c.l.b16 %v3181
        %v3599 = vunpack.c.l.b16 %v3182
        %v3600 = vunpack.c.l.b16 %v3183
        %v3601 = vunpack.c.l.b16 %v3184
        %v3602 = vunpack.c.l.b16 %v3185
        %v3603 = vunpack.c.l.b16 %v3186
        %v3604 = vunpack.c.l.b16 %v3187
        %v3605 = vunpack.c.l.b16 %v3188
        %v3606 = vunpack.c.l.b16 %v3189
        %v3607 = vunpack.c.l.b16 %v3190
        %v3608 = vunpack.c.l.b16 %v3191
        %v3609 = vunpack.c.l.b16 %v3192
        %v3610 = vunpack.c.l.b16 %v3193
        %v3611 = vunpack.c.l.b16 %v3194
        %v3612 = vunpack.c.l.b16 %v3195
        %v3613 = vunpack.c.l.b16 %v3196
        %v3614 = vunpack.c.l.b16 %v3197
        %v3615 = vunpack.c.l.b16 %v3198
        %v3616 = vunpack.c.l.b16 %v3199
        %v3617 = vpack.c.b16 %v3474, %v3473
        %v3618 = vpack.c.b16 %v3476, %v3475
        %v3619 = vpack.c.b16 %v3478, %v3477
        %v3620 = vpack.c.b16 %v3480, %v3479
        %v3621 = vpack.c.b16 %v3482, %v3481
        %v3622 = vpack.c.b16 %v3484, %v3483
        %v3623 = vpack.c.b16 %v3486, %v3485
        %v3624 = vpack.c.b16 %v3488, %v3487
        %v3625 = vpack.c.b16 %v3490, %v3489
        %v3626 = vpack.c.b16 %v3492, %v3491
        %v3627 = vpack.c.b16 %v3494, %v3493
        %v3628 = vpack.c.b16 %v3496, %v3495
        %v3629 = vpack.c.b16 %v3498, %v3497
        %v3630 = vpack.c.b16 %v3500, %v3499
        %v3631 = vpack.c.b16 %v3502, %v3501
        %v3632 = vpack.c.b16 %v3504, %v3503
        %v3633 = vpack.c.b16 %v3506, %v3505
        %v3634 = vpack.c.b16 %v3508, %v3507
        %v3635 = vpack.c.b16 %v3510, %v3509
        %v3636 = vpack.c.b16 %v3512, %v3511
        %v3637 = vpack.c.b16 %v3514, %v3513
        %v3638 = vpack.c.b16 %v3516, %v3515
        %v3639 = vpack.c.b16 %v3518, %v3517
        %v3640 = vpack.c.b16 %v3520, %v3519
        %v3641 = vpack.c.b16 %v3522, %v3521
        %v3642 = vpack.c.b16 %v3524, %v3523
        %v3643 = vpack.c.b16 %v3526, %v3525
        %v3644 = vpack.c.b16 %v3528, %v3527
        %v3645 = vpack.c.b16 %v3530, %v3529
        %v3646 = vpack.c.b16 %v3532, %v3531
        %v3647 = vpack.c.b16 %v3534, %v3533
        %v3648 = vpack.c.b16 %v3536, %v3535
        %v3649 = vpack.c.b16 %v3538, %v3537
        %v3650 = vpack.c.b16 %v3540, %v3539
        %v3651 = vpack.c.b16 %v3542, %v3541
        %v3652 = vpack.c.b16 %v3544, %v3543
        %v3653 = vpack.c.b16 %v3546, %v3545
        %v3654 = vpack.c.b16 %v3548, %v3547
        %v3655 = vpack.c.b16 %v3550, %v3549
        %v3656 = vpack.c.b16 %v3552, %v3551
        %v3657 = vpack.c.b16 %v3554, %v3553
        %v3658 = vpack.c.b16 %v3556, %v3555
        %v3659 = vpack.c.b16 %v3558, %v3557
        %v3660 = vpack.c.b16 %v3560, %v3559
        %v3661 = vpack.c.b16 %v3562, %v3561
        %v3662 = vpack.c.b16 %v3564, %v3563
        %v3663 = vpack.c.b16 %v3566, %v3565
        %v3664 = vpack.c.b16 %v3568, %v3567
        %v3665 = vpack.c.b16 %v3570, %v3569
        %v3666 = vpack.c.b16 %v3572, %v3571
        %v3667 = vpack.c.b16 %v3574, %v3573
        %v3668 = vpack.c.b16 %v3576, %v3575
        %v3669 = vpack.c.b16 %v3578, %v3577
        %v3670 = vpack.c.b16 %v3580, %v3579
        %v3671 = vpack.c.b16 %v3582, %v3581
        %v3672 = vpack.c.b16 %v3584, %v3583
        %v3673 = vpack.c.b16 %v3586, %v3585
        %v3674 = vpack.c.b16 %v3588, %v3587
        %v3675 = vpack.c.b16 %v3590, %v3589
        %v3676 = vpack.c.b16 %v3592, %v3591
        %v3677 = vpack.c.b16 %v3594, %v3593
        %v3678 = vpack.c.b16 %v3596, %v3595
        %v3679 = vpack.c.b16 %v3598, %v3597
        %v3680 = vpack.c.b16 %v3600, %v3599
        %v3681 = vpack.c.b16 %v3602, %v3601
        %v3682 = vpack.c.b16 %v3604, %v3603
        %v3683 = vpack.c.b16 %v3606, %v3605
        %v3684 = vpack.c.b16 %v3608, %v3607
        %v3685 = vpack.c.b16 %v3610, %v3609
        %v3686 = vpack.c.b16 %v3612, %v3611
        %v3687 = vpack.c.b16 %v3614, %v3613
        %v3688 = vpack.c.b16 %v3616, %v3615
        %3761 = vmatprep.subr.bf16.mxu0 0
        %3762 = vmatpush1.bf16.msra.mxu0 %v3617
        %3763 = vmatprep.subr.bf16.mxu0 0
        %3764 = vmatpush1.bf16.msra.mxu0 %v3618
        %3765 = vmatprep.subr.bf16.mxu0 0
        %3766 = vmatpush1.bf16.msra.mxu0 %v3619
        %3767 = vmatprep.subr.bf16.mxu0 0
        %3768 = vmatpush1.bf16.msra.mxu0 %v3620
        %3769 = vmatprep.subr.bf16.mxu0 0
        %3770 = vmatpush1.bf16.msra.mxu0 %v3621
        %3771 = vmatprep.subr.bf16.mxu0 0
        %3772 = vmatpush1.bf16.msra.mxu0 %v3622
        %3773 = vmatprep.subr.bf16.mxu0 0
        %3774 = vmatpush1.bf16.msra.mxu0 %v3623
        %3775 = vmatprep.subr.bf16.mxu0 0
        %3776 = vmatpush1.bf16.msra.mxu0 %v3624
        %3777 = vmatprep.subr.bf16.mxu0 0
        %3778 = vmatpush1.bf16.msra.mxu0 %v3625
        %3779 = vmatprep.subr.bf16.mxu0 0
        %3780 = vmatpush1.bf16.msra.mxu0 %v3626
        %3781 = vmatprep.subr.bf16.mxu0 0
        %3782 = vmatpush1.bf16.msra.mxu0 %v3627
        %3783 = vmatprep.subr.bf16.mxu0 0
        %3784 = vmatpush1.bf16.msra.mxu0 %v3628
        %3785 = vmatprep.subr.bf16.mxu0 0
        %3786 = vmatpush1.bf16.msra.mxu0 %v3629
        %3787 = vmatprep.subr.bf16.mxu0 0
        %3788 = vmatpush1.bf16.msra.mxu0 %v3630
        %3789 = vmatprep.subr.bf16.mxu0 0
        %3790 = vmatpush1.bf16.msra.mxu0 %v3631
        %3791 = vmatprep.subr.bf16.mxu0 0
        %3792 = vmatpush1.bf16.msra.mxu0 %v3632
        %3793 = vmatprep.mubr.bf16.mxu0 %v2996
        %3794 = vmatmul.mubr.bf16.gmra.mrb[0].mxu0 %v2980
        %v3795 = vpop.f32.mrb[0].mxu0
        %v3796 = vadd.f32 %v3299, %v3795
        %v3797 = vpop.f32.mrb[0].mxu0
        %v3798 = vpop.f32.mrb[0].mxu0
        %v3799 = vadd.f32 %v3302, %v3798
        %v3800 = vpop.f32.mrb[0].mxu0
        %3801 = vmatprep.mubr.bf16.mxu0 %v2997
        %3802 = vmatmul.mubr.bf16.gmra.mrb[0].mxu0 %v2981
        %v3803 = vpop.f32.mrb[0].mxu0
        %v3804 = vadd.f32 %v3307, %v3803
        %v3805 = vpop.f32.mrb[0].mxu0
        %v3806 = vpop.f32.mrb[0].mxu0
        %v3807 = vadd.f32 %v3310, %v3806
        %v3808 = vpop.f32.mrb[0].mxu0
        %3809 = vmatprep.mubr.bf16.mxu0 %v2998
        %3810 = vmatmul.mubr.bf16.gmra.mrb[0].mxu0 %v2982
        %v3811 = vpop.f32.mrb[0].mxu0
        %v3812 = vadd.f32 %v3315, %v3811
        %v3813 = vpop.f32.mrb[0].mxu0
        %v3814 = vpop.f32.mrb[0].mxu0
        %v3815 = vadd.f32 %v3318, %v3814
        %v3816 = vpop.f32.mrb[0].mxu0
        %3817 = vmatprep.mubr.bf16.mxu0 %v2999
        %3818 = vmatmul.mubr.bf16.gmra.mrb[0].mxu0 %v2983
        %v3819 = vpop.f32.mrb[0].mxu0
        %v3820 = vadd.f32 %v3323, %v3819
        %v3821 = vpop.f32.mrb[0].mxu0
        %v3822 = vpop.f32.mrb[0].mxu0
        %v3823 = vadd.f32 %v3326, %v3822
        %v3824 = vpop.f32.mrb[0].mxu0
        %3825 = vdwg.mxu0
        %3826 = vmatprep.subr.bf16.mxu0 0
        %3827 = vmatpush1.bf16.msra.mxu0 %v3633
        %3828 = vmatprep.subr.bf16.mxu0 0
        %3829 = vmatpush1.bf16.msra.mxu0 %v3634
        %3830 = vmatprep.subr.bf16.mxu0 0
        %3831 = vmatpush1.bf16.msra.mxu0 %v3635
        %3832 = vmatprep.subr.bf16.mxu0 0
        %3833 = vmatpush1.bf16.msra.mxu0 %v3636
        %3834 = vmatprep.subr.bf16.mxu0 0
        %3835 = vmatpush1.bf16.msra.mxu0 %v3637
        %3836 = vmatprep.subr.bf16.mxu0 0
        %3837 = vmatpush1.bf16.msra.mxu0 %v3638
        %3838 = vmatprep.subr.bf16.mxu0 0
        %3839 = vmatpush1.bf16.msra.mxu0 %v3639
        %3840 = vmatprep.subr.bf16.mxu0 0
        %3841 = vmatpush1.bf16.msra.mxu0 %v3640
        %3842 = vmatprep.subr.bf16.mxu0 0
        %3843 = vmatpush1.bf16.msra.mxu0 %v3641
        %3844 = vmatprep.subr.bf16.mxu0 0
        %3845 = vmatpush1.bf16.msra.mxu0 %v3642
        %3846 = vmatprep.subr.bf16.mxu0 0
        %3847 = vmatpush1.bf16.msra.mxu0 %v3643
        %3848 = vmatprep.subr.bf16.mxu0 0
        %3849 = vmatpush1.bf16.msra.mxu0 %v3644
        %3850 = vmatprep.subr.bf16.mxu0 0
        %3851 = vmatpush1.bf16.msra.mxu0 %v3645
        %3852 = vmatprep.subr.bf16.mxu0 0
        %3853 = vmatpush1.bf16.msra.mxu0 %v3646
        %3854 = vmatprep.subr.bf16.mxu0 0
        %3855 = vmatpush1.bf16.msra.mxu0 %v3647
        %3856 = vmatprep.subr.bf16.mxu0 0
        %3857 = vmatpush1.bf16.msra.mxu0 %v3648
        %3858 = vmatprep.mubr.bf16.mxu0 %v3021
        %3859 = vmatmul.mubr.bf16.gmra.mrb[0].mxu0 %v3012
        %v3860 = vpop.f32.mrb[0].mxu0
        %v3861 = vadd.f32 %v3796, %v3860
        %v3862 = vpop.f32.mrb[0].mxu0
        %v3863 = vpop.f32.mrb[0].mxu0
        %v3864 = vadd.f32 %v3799, %v3863
        %v3865 = vpop.f32.mrb[0].mxu0
        %3866 = vmatprep.mubr.bf16.mxu0 %v3022
        %3867 = vmatmul.mubr.bf16.gmra.mrb[0].mxu0 %v3013
        %v3868 = vpop.f32.mrb[0].mxu0
        %v3869 = vadd.f32 %v3804, %v3868
        %v3870 = vpop.f32.mrb[0].mxu0
        %v3871 = vpop.f32.mrb[0].mxu0
        %v3872 = vadd.f32 %v3807, %v3871
        %v3873 = vpop.f32.mrb[0].mxu0
        %3874 = vmatprep.mubr.bf16.mxu0 %v3023
        %3875 = vmatmul.mubr.bf16.gmra.mrb[0].mxu0 %v3014
        %v3876 = vpop.f32.mrb[0].mxu0
        %v3877 = vadd.f32 %v3812, %v3876
        %v3878 = vpop.f32.mrb[0].mxu0
        %v3879 = vpop.f32.mrb[0].mxu0
        %v3880 = vadd.f32 %v3815, %v3879
        %v3881 = vpop.f32.mrb[0].mxu0
        %3882 = vmatprep.mubr.bf16.mxu0 %v3024
        %3883 = vmatmul.mubr.bf16.gmra.mrb[0].mxu0 %v3015
        %v3884 = vpop.f32.mrb[0].mxu0
        %v3885 = vadd.f32 %v3820, %v3884
        %v3886 = vpop.f32.mrb[0].mxu0
        %v3887 = vpop.f32.mrb[0].mxu0
        %v3888 = vadd.f32 %v3823, %v3887
        %v3889 = vpop.f32.mrb[0].mxu0
        %3890 = vdwg.mxu0
        %3891 = vmatprep.subr.bf16.mxu0 0
        %3892 = vmatpush1.bf16.msra.mxu0 %v3649
        %3893 = vmatprep.subr.bf16.mxu0 0
        %3894 = vmatpush1.bf16.msra.mxu0 %v3650
        %3895 = vmatprep.subr.bf16.mxu0 0
        %3896 = vmatpush1.bf16.msra.mxu0 %v3651
        %3897 = vmatprep.subr.bf16.mxu0 0
        %3898 = vmatpush1.bf16.msra.mxu0 %v3652
        %3899 = vmatprep.subr.bf16.mxu0 0
        %3900 = vmatpush1.bf16.msra.mxu0 %v3653
        %3901 = vmatprep.subr.bf16.mxu0 0
        %3902 = vmatpush1.bf16.msra.mxu0 %v3654
        %3903 = vmatprep.subr.bf16.mxu0 0
        %3904 = vmatpush1.bf16.msra.mxu0 %v3655
        %3905 = vmatprep.subr.bf16.mxu0 0
        %3906 = vmatpush1.bf16.msra.mxu0 %v3656
        %3907 = vmatprep.subr.bf16.mxu0 0
        %3908 = vmatpush1.bf16.msra.mxu0 %v3657
        %3909 = vmatprep.subr.bf16.mxu0 0
        %3910 = vmatpush1.bf16.msra.mxu0 %v3658
        %3911 = vmatprep.subr.bf16.mxu0 0
        %3912 = vmatpush1.bf16.msra.mxu0 %v3659
        %3913 = vmatprep.subr.bf16.mxu0 0
        %3914 = vmatpush1.bf16.msra.mxu0 %v3660
        %3915 = vmatprep.subr.bf16.mxu0 0
        %3916 = vmatpush1.bf16.msra.mxu0 %v3661
        %3917 = vmatprep.subr.bf16.mxu0 0
        %3918 = vmatpush1.bf16.msra.mxu0 %v3662
        %3919 = vmatprep.subr.bf16.mxu0 0
        %3920 = vmatpush1.bf16.msra.mxu0 %v3663
        %3921 = vmatprep.subr.bf16.mxu0 0
        %3922 = vmatpush1.bf16.msra.mxu0 %v3664
        %3923 = vmatprep.mubr.bf16.mxu0 %v3039
        %3924 = vmatmul.mubr.bf16.gmra.mrb[0].mxu0 %v3030
        %v3925 = vpop.f32.mrb[0].mxu0
        %v3926 = vadd.f32 %v3861, %v3925
        %v3927 = vpop.f32.mrb[0].mxu0
        %v3928 = vpop.f32.mrb[0].mxu0
        %v3929 = vadd.f32 %v3864, %v3928
        %v3930 = vpop.f32.mrb[0].mxu0
        %3931 = vmatprep.mubr.bf16.mxu0 %v3040
        %3932 = vmatmul.mubr.bf16.gmra.mrb[0].mxu0 %v3031
        %v3933 = vpop.f32.mrb[0].mxu0
        %v3934 = vadd.f32 %v3869, %v3933
        %v3935 = vpop.f32.mrb[0].mxu0
        %v3936 = vpop.f32.mrb[0].mxu0
        %v3937 = vadd.f32 %v3872, %v3936
        %v3938 = vpop.f32.mrb[0].mxu0
        %3939 = vmatprep.mubr.bf16.mxu0 %v3041
        %3940 = vmatmul.mubr.bf16.gmra.mrb[0].mxu0 %v3032
        %v3941 = vpop.f32.mrb[0].mxu0
        %v3942 = vadd.f32 %v3877, %v3941
        %v3943 = vpop.f32.mrb[0].mxu0
        %v3944 = vpop.f32.mrb[0].mxu0
        %v3945 = vadd.f32 %v3880, %v3944
        %v3946 = vpop.f32.mrb[0].mxu0
        %3947 = vmatprep.mubr.bf16.mxu0 %v3042
        %3948 = vmatmul.mubr.bf16.gmra.mrb[0].mxu0 %v3033
        %v3949 = vpop.f32.mrb[0].mxu0
        %v3950 = vadd.f32 %v3885, %v3949
        %v3951 = vpop.f32.mrb[0].mxu0
        %v3952 = vpop.f32.mrb[0].mxu0
        %v3953 = vadd.f32 %v3888, %v3952
        %v3954 = vpop.f32.mrb[0].mxu0
        %3955 = vdwg.mxu0
        %3956 = vmatprep.subr.bf16.mxu0 0
        %3957 = vmatpush1.bf16.msra.mxu0 %v3665
        %3958 = vmatprep.subr.bf16.mxu0 0
        %3959 = vmatpush1.bf16.msra.mxu0 %v3666
        %3960 = vmatprep.subr.bf16.mxu0 0
        %3961 = vmatpush1.bf16.msra.mxu0 %v3667
        %3962 = vmatprep.subr.bf16.mxu0 0
        %3963 = vmatpush1.bf16.msra.mxu0 %v3668
        %3964 = vmatprep.subr.bf16.mxu0 0
        %3965 = vmatpush1.bf16.msra.mxu0 %v3669
        %3966 = vmatprep.subr.bf16.mxu0 0
        %3967 = vmatpush1.bf16.msra.mxu0 %v3670
        %3968 = vmatprep.subr.bf16.mxu0 0
        %3969 = vmatpush1.bf16.msra.mxu0 %v3671
        %3970 = vmatprep.subr.bf16.mxu0 0
        %3971 = vmatpush1.bf16.msra.mxu0 %v3672
        %3972 = vmatprep.subr.bf16.mxu0 0
        %3973 = vmatpush1.bf16.msra.mxu0 %v3673
        %3974 = vmatprep.subr.bf16.mxu0 0
        %3975 = vmatpush1.bf16.msra.mxu0 %v3674
        %3976 = vmatprep.subr.bf16.mxu0 0
        %3977 = vmatpush1.bf16.msra.mxu0 %v3675
        %3978 = vmatprep.subr.bf16.mxu0 0
        %3979 = vmatpush1.bf16.msra.mxu0 %v3676
        %3980 = vmatprep.subr.bf16.mxu0 0
        %3981 = vmatpush1.bf16.msra.mxu0 %v3677
        %3982 = vmatprep.subr.bf16.mxu0 0
        %3983 = vmatpush1.bf16.msra.mxu0 %v3678
        %3984 = vmatprep.subr.bf16.mxu0 0
        %3985 = vmatpush1.bf16.msra.mxu0 %v3679
        %3986 = vmatprep.subr.bf16.mxu0 0
        %3987 = vmatpush1.bf16.msra.mxu0 %v3680
        %3988 = vmatprep.mubr.bf16.mxu0 %v2997
        %3989 = vmatmul.mubr.bf16.gmra.mrb[0].mxu0 %v2981
        %v3990 = vpop.f32.mrb[0].mxu0
        %v3991 = vadd.f32 %v3926, %v3990
        %v3992 = vpop.f32.mrb[0].mxu0
        %v3993 = vpop.f32.mrb[0].mxu0
        %v3994 = vadd.f32 %v3929, %v3993
        %v3995 = vpop.f32.mrb[0].mxu0
        %3996 = vmatprep.mubr.bf16.mxu0 %v2998
        %3997 = vmatmul.mubr.bf16.gmra.mrb[0].mxu0 %v2982
        %v3998 = vpop.f32.mrb[0].mxu0
        %v3999 = vadd.f32 %v3934, %v3998
        %v4000 = vpop.f32.mrb[0].mxu0
        %v4001 = vpop.f32.mrb[0].mxu0
        %v4002 = vadd.f32 %v3937, %v4001
        %v4003 = vpop.f32.mrb[0].mxu0
        %4004 = vmatprep.mubr.bf16.mxu0 %v2999
        %4005 = vmatmul.mubr.bf16.gmra.mrb[0].mxu0 %v2983
        %v4006 = vpop.f32.mrb[0].mxu0
        %v4007 = vadd.f32 %v3942, %v4006
        %v4008 = vpop.f32.mrb[0].mxu0
        %v4009 = vpop.f32.mrb[0].mxu0
        %v4010 = vadd.f32 %v3945, %v4009
        %v4011 = vpop.f32.mrb[0].mxu0
        %4012 = vmatprep.mubr.bf16.mxu0 %v3051
        %4013 = vmatmul.mubr.bf16.gmra.mrb[0].mxu0 %v3048
        %v4014 = vpop.f32.mrb[0].mxu0
        %v4015 = vadd.f32 %v3950, %v4014
        %v4016 = vpop.f32.mrb[0].mxu0
        %v4017 = vpop.f32.mrb[0].mxu0
        %v4018 = vadd.f32 %v3953, %v4017
        %v4019 = vpop.f32.mrb[0].mxu0
        %4020 = vdwg.mxu0
        %4021 = vmatprep.subr.bf16.mxu0 0
        %4022 = vmatpush1.bf16.msra.mxu0 %v3681
        %4023 = vmatprep.subr.bf16.mxu0 0
        %4024 = vmatpush1.bf16.msra.mxu0 %v3682
        %4025 = vmatprep.subr.bf16.mxu0 0
        %4026 = vmatpush1.bf16.msra.mxu0 %v3683
        %4027 = vmatprep.subr.bf16.mxu0 0
        %4028 = vmatpush1.bf16.msra.mxu0 %v3684
        %4029 = vmatprep.subr.bf16.mxu0 0
        %4030 = vmatpush1.bf16.msra.mxu0 %v3685
        %4031 = vmatprep.subr.bf16.mxu0 0
        %4032 = vmatpush1.bf16.msra.mxu0 %v3686
        %4033 = vmatprep.subr.bf16.mxu0 0
        %4034 = vmatpush1.bf16.msra.mxu0 %v3687
        %4035 = vmatprep.subr.bf16.mxu0 0
        %4036 = vmatpush1.bf16.msra.mxu0 %v3688
        %4037 = vmatprep.subr.bf16.mxu0 0
        %4038 = vmatpush1.bf16.msra.mxu0 0
        %4039 = vmatprep.subr.bf16.mxu0 0
        %4040 = vmatpush1.bf16.msra.mxu0 0
        %4041 = vmatprep.subr.bf16.mxu0 0
        %4042 = vmatpush1.bf16.msra.mxu0 0
        %4043 = vmatprep.subr.bf16.mxu0 0
        %4044 = vmatpush1.bf16.msra.mxu0 0
        %4045 = vmatprep.subr.bf16.mxu0 0
        %4046 = vmatpush1.bf16.msra.mxu0 0
        %4047 = vmatprep.subr.bf16.mxu0 0
        %4048 = vmatpush1.bf16.msra.mxu0 0
        %4049 = vmatprep.subr.bf16.mxu0 0
        %4050 = vmatpush1.bf16.msra.mxu0 0
        %4051 = vmatprep.subr.bf16.mxu0 0
        %4052 = vmatpush1.bf16.msra.mxu0 0
        %4053 = vmatprep.mubr.bf16.mxu0 0
        %4054 = vmatmul.mubr.bf16.gmra.mrb[0].mxu0 %v3013
        %v4055 = vpop.f32.mrb[0].mxu0
        %v4056 = vadd.f32 %v3991, %v4055
        %v4057 = vpop.f32.mrb[0].mxu0
        %v4058 = vpop.f32.mrb[0].mxu0
        %v4059 = vadd.f32 %v3994, %v4058
        %v4060 = vpop.f32.mrb[0].mxu0
        %4061 = vmatprep.mubr.bf16.mxu0 0
        %4062 = vmatmul.mubr.bf16.gmra.mrb[0].mxu0 %v3014
        %v4063 = vpop.f32.mrb[0].mxu0
        %v4064 = vadd.f32 %v3999, %v4063
        %v4065 = vpop.f32.mrb[0].mxu0
        %v4066 = vpop.f32.mrb[0].mxu0
        %v4067 = vadd.f32 %v4002, %v4066
        %v4068 = vpop.f32.mrb[0].mxu0
        %4069 = vmatprep.mubr.bf16.mxu0 0
        %4070 = vmatmul.mubr.bf16.gmra.mrb[0].mxu0 %v3015
        %v4071 = vpop.f32.mrb[0].mxu0
        %v4072 = vadd.f32 %v4007, %v4071
        %v4073 = vpop.f32.mrb[0].mxu0
        %v4074 = vpop.f32.mrb[0].mxu0
        %v4075 = vadd.f32 %v4010, %v4074
        %v4076 = vpop.f32.mrb[0].mxu0
        %4077 = vmatprep.mubr.bf16.mxu0 0
        %4078 = vmatmul.mubr.bf16.gmra.mrb[0].mxu0 %v3054
        %v4079 = vpop.f32.mrb[0].mxu0
        %v4080 = vadd.f32 %v4015, %v4079
        %v4081 = vpop.f32.mrb[0].mxu0
        %v4082 = vpop.f32.mrb[0].mxu0
        %v4083 = vadd.f32 %v4018, %v4082
        %v4084 = vpop.f32.mrb[0].mxu0
        %4085 = vdwg.mxu0
        %4086 = vst [vmem:[%s325] sm:$0xff] %v4056
        %4087 = vst [vmem:[%s325 + $0x8] sm:$0xff] %v4059
        %4088 = vst [vmem:[%s325 + $0x10] sm:$0xff] %v4064
        %4089 = vst [vmem:[%s325 + $0x18] sm:$0xff] %v4067
        %4090 = vst [vmem:[%s325 + $0x20] sm:$0xff] %v4072
        %4091 = vst [vmem:[%s325 + $0x28] sm:$0xff] %v4075
        %4092 = vst [vmem:[%s325 + $0x30] sm:$0xff] %v4080
        %4093 = vst [vmem:[%s325 + $0x38] sm:$0xff] %v4083
        %s4094 = sand.u32 %s225, 1
        %s4095 = scalar_lea.sflag [#allocation4], %s4094
        %s4096 = sand.u32 %s225, 1
        %s4097 = smul.addr %s4096, 64
        %s4098 = scalar_lea.vmem [#allocation3], %s4097
        // Predicated region
        $region57: #{tpu_custom_call.1} parent=55 // pred_check
          %p4099 = pneg %p235
        $region58: #{tpu_custom_call.1} parent=55 // pred_check_branch
          %4101 = sbr.rel (%p4099) target = $region60
        $region59: #{tpu_custom_call.1} parent=55 // pred_region
          %s4103 = ssub.s32 1024, 1024
          %4104 = vsyncadd %s4095, %s4103
          %s4105 = smul.addr %s23, 8
          %s4106 = smul.addr %s4105, 128
          %s4107 = scalar_lea.hbm %s9, %s4106
          %s4108 = sshll.u32 %s4098, 4
          %s4109 = int_to_ptr.vmem [resolvable:$true] %s4108
          %4114 = dma.vmem_to_hbm [thread:$0]  %s4109, 1024, %s4107, %s4095, 128, 128, 8
        $region60: #{tpu_custom_call.1} parent=55 // pred_fallthru
          _
      $region56: #{tpu_custom_call.1} parent=5 // pred_fallthru
        _
      %p4115 = scmp.le.s32.totalorder 2, %s18
      // Predicated region
      $region61: #{tpu_custom_call.1} parent=5 // pred_check
        %p4116 = pneg %p4115
      $region62: #{tpu_custom_call.1} parent=5 // pred_check_branch
        %4118 = sbr.rel (%p4116) target = $region64
      $region63: #{tpu_custom_call.1} parent=5 // pred_region
        %s4119 = ssub.s32 %s18, 2
        // Predicated region
        $region65: #{tpu_custom_call.1} parent=63 // pred_check
          %p4120 = pneg %p241
        $region66: #{tpu_custom_call.1} parent=63 // pred_check_branch
          %4122 = sbr.rel (%p4120) target = $region68
        $region67: #{tpu_custom_call.1} parent=63 // pred_region
          %s4123 = sand.u32 %s226, 1
          %s4124 = scalar_lea.sflag [#allocation4], %s4123
          %s4125 = sand.u32 %s226, 1
          %s4126 = smul.addr %s4125, 64
          %s4127 = scalar_lea.vmem [#allocation3], %s4126
          %4128 = dma.done %s4124, 1024
        $region68: #{tpu_custom_call.1} parent=63 // pred_fallthru
          _
      $region64: #{tpu_custom_call.1} parent=5 // pred_fallthru
        _
    $region6: #{tpu_custom_call.1} parent=1 // loop_footer
      %s22 = sadd.s32 1, %s18
    $region7: #{tpu_custom_call.1} parent=1 // loop_footer_branch
      %17 = sbr.rel target = $region3
    $region8: #{tpu_custom_call.1} parent=1 // loop_exit
      _
    %4129 = vsyncpa [#allocation4], 1
    %s4130 = scalar_lea.sflag [#allocation4], 1
    %4131 = vsyncpa %s4130, 1

</llo_original>
